<compile_context>
chip_gen: v5e
topology: v5e:2x2
jax: 0.10.0
libtpu: 0.0.40
codegen_flags: <defaults>
</compile_context>

<pallas_src>
import functools

import jax
import jax.numpy as jnp
from jax.experimental import pallas as pl
from jax.experimental.pallas import tpu as pltpu


# Single-buffer grid-invariant (weight / bias) blocks; fall back gracefully if the
# running JAX build lacks pl.Buffered.
_RESIDENT = {"pipeline_mode": pl.Buffered(1)} if hasattr(pl, "Buffered") else {}


def _fused_mlp_kernel(x_ref, *refs, activations):
    """Whole MLP forward for one batch tile. refs = (w0, b0, ..., wL, bL, o_ref)."""
    o_ref = refs[-1]
    wb_refs = refs[:-1]
    n_layers = len(activations)
    last = n_layers - 1

    h = x_ref[...]  # (tm, K0) bf16 — cast already done in the wrapper
    for i in range(n_layers):
        w = wb_refs[2 * i][...]        # (K, N) bf16, VMEM-resident, single-buffered
        b = wb_refs[2 * i + 1][...]    # (1, N) f32
        # bf16 x bf16 MXU matmul with f32 accumulation; bias + activation in f32.
        y = jnp.dot(h, w, preferred_element_type=jnp.float32) + b
        if activations[i] == "relu":
            a = jnp.maximum(y, 0.0)
        else:  # "sigmoid"
            a = jax.nn.sigmoid(y)
        if i < last:
            # Fused downcast in the epilogue: intermediate is stored once as bf16.
            h = a.astype(jnp.bfloat16)
        else:
            o_ref[...] = a.astype(o_ref.dtype)


def _choose_tm(m, tm_max):
    """Largest divisor of m that is <= tm_max, preferring sublane-aligned (x8)."""
    if m <= tm_max:
        return m
    for cand in range(tm_max, 0, -1):
        if m % cand == 0 and cand % 8 == 0:
            return cand
    for cand in range(tm_max, 0, -1):
        if m % cand == 0:
            return cand
    return m


def autoencoder_forward(x, params, *, tm_max=256):
    """Fused forward: act_L(...act_0(x @ W0 + b0)...) in a single pallas_call.

    x: (M, K0) f32 or bf16.  params: list of (W:(K,N) bf16, b:(N,) f32, act:str).
    On v5e, tm_max=128 already fills the 128-row MXU and halves activation VMEM.
    """
    M, K0 = x.shape
    activations = tuple(act for _, _, act in params)
    n_out = params[-1][0].shape[1]

    tm = _choose_tm(M, tm_max)
    assert M % tm == 0

    # Half-width activation DMA; layer 0 needs no in-kernel cast.
    x_bf = x.astype(jnp.bfloat16)

    flat_inputs = []
    in_specs = [pl.BlockSpec((tm, K0), lambda i: (i, 0))]  # batch-tiled activations
    weight_bytes = 0
    bias_bytes = 0
    flops = 0
    max_width = K0
    for w, b, _ in params:
        b2 = b.reshape(1, -1).astype(jnp.float32)
        flat_inputs.append(w)
        flat_inputs.append(b2)
        # Weights / biases: full blocks, invariant across the batch grid.
        # Single-buffered (Buffered(1)) — no point double-buffering a block that
        # never changes; halves resident weight footprint in VMEM.
        in_specs.append(pl.BlockSpec(w.shape, lambda i: (0, 0), **_RESIDENT))
        in_specs.append(pl.BlockSpec(b2.shape, lambda i: (0, 0), **_RESIDENT))
        weight_bytes += w.size * w.dtype.itemsize
        bias_bytes += b2.size * 4
        flops += 2 * M * w.shape[0] * w.shape[1]
        max_width = max(max_width, w.shape[1])

    # Advisory cost estimate for XLA's scheduler around this DMA-bound call.
    transcendentals = M * n_out if activations[-1] == "sigmoid" else 0
    bytes_accessed = x_bf.size * 2 + weight_bytes + bias_bytes + M * n_out * 4
    cost = pl.CostEstimate(
        flops=flops, transcendentals=transcendentals, bytes_accessed=bytes_accessed
    )

    # Explicit VMEM budget: resident weights/biases (single-buffered) + double-
    # buffered input/output tiles + f32 intermediate headroom, with 2x margin.
    vmem_estimate = (
        weight_bytes
        + bias_bytes
        + 2 * tm * K0 * 2          # bf16 input tile, double-buffered
        + 2 * tm * n_out * 4       # f32 output tile, double-buffered
        + 4 * tm * max_width * 4   # in-flight f32 epilogue intermediates
    )
    vmem_limit = int(min(64 * 1024 * 1024, 2 * vmem_estimate + (4 << 20)))

    kernel = functools.partial(_fused_mlp_kernel, activations=activations)

    return pl.pallas_call(
        kernel,
        out_shape=jax.ShapeDtypeStruct((M, n_out), jnp.float32),
        grid_spec=pltpu.PrefetchScalarGridSpec(
            num_scalar_prefetch=0,
            grid=(M // tm,),
            in_specs=in_specs,
            out_specs=pl.BlockSpec((tm, n_out), lambda i: (i, 0)),
        ),
        compiler_params=pltpu.CompilerParams(
            dimension_semantics=("parallel",),
            vmem_limit_bytes=vmem_limit,
        ),
        cost_estimate=cost,
    )(x_bf, *flat_inputs)


def init_linear_params(key, in_dim, out_dim, *, w_dtype=jnp.bfloat16):
    """PyTorch-style uniform(-1/sqrt(in), 1/sqrt(in)); weights stored as (in, out)."""
    kw, kb = jax.random.split(key)
    bound = 1.0 / jnp.sqrt(jnp.float32(in_dim))
    w = jax.random.uniform(kw, (in_dim, out_dim), jnp.float32, -bound, bound)
    b = jax.random.uniform(kb, (out_dim,), jnp.float32, -bound, bound)
    return w.astype(w_dtype), b


def make_autoencoder_params(input_dim, encoding_dim, seed=0):
    # Keep every layer width a multiple of 128 (lane-dense, unmasked vst).
    dims = [
        (input_dim, 1024, "relu"),
        (1024, 512, "relu"),
        (512, encoding_dim, "relu"),
        (encoding_dim, 512, "relu"),
        (512, 1024, "relu"),
        (1024, input_dim, "sigmoid"),
    ]
    keys = jax.random.split(jax.random.PRNGKey(seed), len(dims))
    params = []
    for k, (din, dout, act) in zip(keys, dims):
        w, b = init_linear_params(k, din, dout)
        params.append((w, b, act))
    return params


def autoencoder_forward_ref(x, params):
    """Pure-JAX reference mirroring the kernel math (bf16 operands + intermediates,
    f32 accumulate / bias / activation)."""
    h = x.astype(jnp.bfloat16)
    last = len(params) - 1
    for i, (w, b, act) in enumerate(params):
        y = jnp.dot(h, w, preferred_element_type=jnp.float32) + b.astype(jnp.float32)
        a = jnp.maximum(y, 0.0) if act == "relu" else jax.nn.sigmoid(y)
        h = a if i == last else a.astype(jnp.bfloat16)
    return h


if __name__ == "__main__":
    batch = 8
    input_dim = 256
    encoding_dim = 128

    key = jax.random.PRNGKey(0)
    x = jax.random.normal(key, (batch, input_dim), dtype=jnp.float32)

    params = make_autoencoder_params(input_dim, encoding_dim, seed=0)

    out = autoencoder_forward(x, params)
    out = jax.block_until_ready(out)

    ref = autoencoder_forward_ref(x, params)
    assert out.shape == (batch, input_dim)
    assert jnp.allclose(out, ref, atol=2e-3, rtol=2e-3), "mismatch vs JAX reference"

    print("KERNEL_OK")
</pallas_src>

<mosaic_0001>
module attributes {stable_mosaic.version = 11 : i64} {
  func.func @_fused_mlp_kernel(%arg0: i32, %arg1: memref<8x256xbf16, #tpu.memory_space<vmem>>, %arg2: memref<256x1024xbf16, #tpu.memory_space<vmem>>, %arg3: memref<1x1024xf32, #tpu.memory_space<vmem>>, %arg4: memref<1024x512xbf16, #tpu.memory_space<vmem>>, %arg5: memref<1x512xf32, #tpu.memory_space<vmem>>, %arg6: memref<512x128xbf16, #tpu.memory_space<vmem>>, %arg7: memref<1x128xf32, #tpu.memory_space<vmem>>, %arg8: memref<128x512xbf16, #tpu.memory_space<vmem>>, %arg9: memref<1x512xf32, #tpu.memory_space<vmem>>, %arg10: memref<512x1024xbf16, #tpu.memory_space<vmem>>, %arg11: memref<1x1024xf32, #tpu.memory_space<vmem>>, %arg12: memref<1024x256xbf16, #tpu.memory_space<vmem>>, %arg13: memref<1x256xf32, #tpu.memory_space<vmem>>, %arg14: memref<8x256xf32, #tpu.memory_space<vmem>>) attributes {dimension_semantics = [#tpu.dimension_semantics<parallel>], iteration_bounds = array<i64: 1>, scalar_prefetch = 0 : i64, scratch_operands = 0 : i64, tpu.core_type = #tpu.core_type<tc>, window_params = [{transform_indices = @transform_0, window_bounds = array<i64: 8, 256>}, {pipeline_mode = #tpu.pipeline_mode<synchronous>, transform_indices = @transform_1, window_bounds = array<i64: 256, 1024>}, {pipeline_mode = #tpu.pipeline_mode<synchronous>, transform_indices = @transform_2, window_bounds = array<i64: 1, 1024>}, {pipeline_mode = #tpu.pipeline_mode<synchronous>, transform_indices = @transform_3, window_bounds = array<i64: 1024, 512>}, {pipeline_mode = #tpu.pipeline_mode<synchronous>, transform_indices = @transform_4, window_bounds = array<i64: 1, 512>}, {pipeline_mode = #tpu.pipeline_mode<synchronous>, transform_indices = @transform_5, window_bounds = array<i64: 512, 128>}, {pipeline_mode = #tpu.pipeline_mode<synchronous>, transform_indices = @transform_6, window_bounds = array<i64: 1, 128>}, {pipeline_mode = #tpu.pipeline_mode<synchronous>, transform_indices = @transform_7, window_bounds = array<i64: 128, 512>}, {pipeline_mode = #tpu.pipeline_mode<synchronous>, transform_indices = @transform_8, window_bounds = array<i64: 1, 512>}, {pipeline_mode = #tpu.pipeline_mode<synchronous>, transform_indices = @transform_9, window_bounds = array<i64: 512, 1024>}, {pipeline_mode = #tpu.pipeline_mode<synchronous>, transform_indices = @transform_10, window_bounds = array<i64: 1, 1024>}, {pipeline_mode = #tpu.pipeline_mode<synchronous>, transform_indices = @transform_11, window_bounds = array<i64: 1024, 256>}, {pipeline_mode = #tpu.pipeline_mode<synchronous>, transform_indices = @transform_12, window_bounds = array<i64: 1, 256>}, {transform_indices = @transform_13, window_bounds = array<i64: 8, 256>}]} {
    %c0 = arith.constant 0 : index
    %c0_0 = arith.constant 0 : index
    %0 = vector.load %arg1[%c0, %c0_0] : memref<8x256xbf16, #tpu.memory_space<vmem>>, vector<8x256xbf16>
    %c0_1 = arith.constant 0 : index
    %c0_2 = arith.constant 0 : index
    %1 = vector.load %arg2[%c0_1, %c0_2] : memref<256x1024xbf16, #tpu.memory_space<vmem>>, vector<256x1024xbf16>
    %c0_3 = arith.constant 0 : index
    %c0_4 = arith.constant 0 : index
    %2 = vector.load %arg3[%c0_3, %c0_4] : memref<1x1024xf32, #tpu.memory_space<vmem>>, vector<1x1024xf32>
    %cst = arith.constant dense<0.000000e+00> : vector<8x1024xf32>
    %3 = tpu.matmul %0, %1, %cst {dimension_numbers = #tpu.dot_dimension_numbers<[1], [0], [0], [1], [0, 0, 1, 1], [], []>} : vector<8x256xbf16>, vector<256x1024xbf16>, vector<8x1024xf32> -> vector<8x1024xf32>
    %4 = vector.broadcast %2 : vector<1x1024xf32> to vector<8x1024xf32>
    %5 = arith.addf %3, %4 : vector<8x1024xf32>
    %cst_5 = arith.constant 0.000000e+00 : f32
    %6 = vector.broadcast %cst_5 : f32 to vector<8x1024xf32>
    %7 = arith.maximumf %5, %6 : vector<8x1024xf32>
    %8 = arith.truncf %7 : vector<8x1024xf32> to vector<8x1024xbf16>
    %c0_6 = arith.constant 0 : index
    %c0_7 = arith.constant 0 : index
    %9 = vector.load %arg4[%c0_6, %c0_7] : memref<1024x512xbf16, #tpu.memory_space<vmem>>, vector<1024x512xbf16>
    %c0_8 = arith.constant 0 : index
    %c0_9 = arith.constant 0 : index
    %10 = vector.load %arg5[%c0_8, %c0_9] : memref<1x512xf32, #tpu.memory_space<vmem>>, vector<1x512xf32>
    %cst_10 = arith.constant dense<0.000000e+00> : vector<8x512xf32>
    %11 = tpu.matmul %8, %9, %cst_10 {dimension_numbers = #tpu.dot_dimension_numbers<[1], [0], [0], [1], [0, 0, 1, 1], [], []>} : vector<8x1024xbf16>, vector<1024x512xbf16>, vector<8x512xf32> -> vector<8x512xf32>
    %12 = vector.broadcast %10 : vector<1x512xf32> to vector<8x512xf32>
    %13 = arith.addf %11, %12 : vector<8x512xf32>
    %cst_11 = arith.constant 0.000000e+00 : f32
    %14 = vector.broadcast %cst_11 : f32 to vector<8x512xf32>
    %15 = arith.maximumf %13, %14 : vector<8x512xf32>
    %16 = arith.truncf %15 : vector<8x512xf32> to vector<8x512xbf16>
    %c0_12 = arith.constant 0 : index
    %c0_13 = arith.constant 0 : index
    %17 = vector.load %arg6[%c0_12, %c0_13] : memref<512x128xbf16, #tpu.memory_space<vmem>>, vector<512x128xbf16>
    %c0_14 = arith.constant 0 : index
    %c0_15 = arith.constant 0 : index
    %18 = vector.load %arg7[%c0_14, %c0_15] : memref<1x128xf32, #tpu.memory_space<vmem>>, vector<1x128xf32>
    %cst_16 = arith.constant dense<0.000000e+00> : vector<8x128xf32>
    %19 = tpu.matmul %16, %17, %cst_16 {dimension_numbers = #tpu.dot_dimension_numbers<[1], [0], [0], [1], [0, 0, 1, 1], [], []>} : vector<8x512xbf16>, vector<512x128xbf16>, vector<8x128xf32> -> vector<8x128xf32>
    %20 = vector.broadcast %18 : vector<1x128xf32> to vector<8x128xf32>
    %21 = arith.addf %19, %20 : vector<8x128xf32>
    %cst_17 = arith.constant 0.000000e+00 : f32
    %22 = vector.broadcast %cst_17 : f32 to vector<8x128xf32>
    %23 = arith.maximumf %21, %22 : vector<8x128xf32>
    %24 = arith.truncf %23 : vector<8x128xf32> to vector<8x128xbf16>
    %c0_18 = arith.constant 0 : index
    %c0_19 = arith.constant 0 : index
    %25 = vector.load %arg8[%c0_18, %c0_19] : memref<128x512xbf16, #tpu.memory_space<vmem>>, vector<128x512xbf16>
    %c0_20 = arith.constant 0 : index
    %c0_21 = arith.constant 0 : index
    %26 = vector.load %arg9[%c0_20, %c0_21] : memref<1x512xf32, #tpu.memory_space<vmem>>, vector<1x512xf32>
    %cst_22 = arith.constant dense<0.000000e+00> : vector<8x512xf32>
    %27 = tpu.matmul %24, %25, %cst_22 {dimension_numbers = #tpu.dot_dimension_numbers<[1], [0], [0], [1], [0, 0, 1, 1], [], []>} : vector<8x128xbf16>, vector<128x512xbf16>, vector<8x512xf32> -> vector<8x512xf32>
    %28 = vector.broadcast %26 : vector<1x512xf32> to vector<8x512xf32>
    %29 = arith.addf %27, %28 : vector<8x512xf32>
    %cst_23 = arith.constant 0.000000e+00 : f32
    %30 = vector.broadcast %cst_23 : f32 to vector<8x512xf32>
    %31 = arith.maximumf %29, %30 : vector<8x512xf32>
    %32 = arith.truncf %31 : vector<8x512xf32> to vector<8x512xbf16>
    %c0_24 = arith.constant 0 : index
    %c0_25 = arith.constant 0 : index
    %33 = vector.load %arg10[%c0_24, %c0_25] : memref<512x1024xbf16, #tpu.memory_space<vmem>>, vector<512x1024xbf16>
    %c0_26 = arith.constant 0 : index
    %c0_27 = arith.constant 0 : index
    %34 = vector.load %arg11[%c0_26, %c0_27] : memref<1x1024xf32, #tpu.memory_space<vmem>>, vector<1x1024xf32>
    %cst_28 = arith.constant dense<0.000000e+00> : vector<8x1024xf32>
    %35 = tpu.matmul %32, %33, %cst_28 {dimension_numbers = #tpu.dot_dimension_numbers<[1], [0], [0], [1], [0, 0, 1, 1], [], []>} : vector<8x512xbf16>, vector<512x1024xbf16>, vector<8x1024xf32> -> vector<8x1024xf32>
    %36 = vector.broadcast %34 : vector<1x1024xf32> to vector<8x1024xf32>
    %37 = arith.addf %35, %36 : vector<8x1024xf32>
    %cst_29 = arith.constant 0.000000e+00 : f32
    %38 = vector.broadcast %cst_29 : f32 to vector<8x1024xf32>
    %39 = arith.maximumf %37, %38 : vector<8x1024xf32>
    %40 = arith.truncf %39 : vector<8x1024xf32> to vector<8x1024xbf16>
    %c0_30 = arith.constant 0 : index
    %c0_31 = arith.constant 0 : index
    %41 = vector.load %arg12[%c0_30, %c0_31] : memref<1024x256xbf16, #tpu.memory_space<vmem>>, vector<1024x256xbf16>
    %c0_32 = arith.constant 0 : index
    %c0_33 = arith.constant 0 : index
    %42 = vector.load %arg13[%c0_32, %c0_33] : memref<1x256xf32, #tpu.memory_space<vmem>>, vector<1x256xf32>
    %cst_34 = arith.constant dense<0.000000e+00> : vector<8x256xf32>
    %43 = tpu.matmul %40, %41, %cst_34 {dimension_numbers = #tpu.dot_dimension_numbers<[1], [0], [0], [1], [0, 0, 1, 1], [], []>} : vector<8x1024xbf16>, vector<1024x256xbf16>, vector<8x256xf32> -> vector<8x256xf32>
    %44 = vector.broadcast %42 : vector<1x256xf32> to vector<8x256xf32>
    %45 = arith.addf %43, %44 : vector<8x256xf32>
    %46 = arith.negf %45 : vector<8x256xf32>
    %47 = math.exp %46 : vector<8x256xf32>
    %cst_35 = arith.constant 1.000000e+00 : f32
    %48 = vector.broadcast %cst_35 : f32 to vector<8x256xf32>
    %49 = arith.addf %48, %47 : vector<8x256xf32>
    %50 = arith.divf %48, %49 : vector<8x256xf32>
    %c0_36 = arith.constant 0 : index
    %c0_37 = arith.constant 0 : index
    %51 = vector.load %arg14[%c0_36, %c0_37] : memref<8x256xf32, #tpu.memory_space<vmem>>, vector<8x256xf32>
    tpu.vector_store %arg14[%c0_36, %c0_37], %50 {strides = array<i32>} : memref<8x256xf32, #tpu.memory_space<vmem>>, vector<8x256xf32>,
    return
  }
  func.func @transform_0(%arg0: i32) -> (i32, i32) {
    %c0_i32 = arith.constant 0 : i32
    %c0_i32_0 = arith.constant 0 : i32
    return %arg0, %c0_i32 : i32, i32
  }
  func.func @transform_1(%arg0: i32) -> (i32, i32) {
    %c0_i32 = arith.constant 0 : i32
    %c0_i32_0 = arith.constant 0 : i32
    %c0_i32_1 = arith.constant 0 : i32
    return %c0_i32, %c0_i32_0 : i32, i32
  }
  func.func @transform_2(%arg0: i32) -> (i32, i32) {
    %c0_i32 = arith.constant 0 : i32
    %c0_i32_0 = arith.constant 0 : i32
    %c0_i32_1 = arith.constant 0 : i32
    return %c0_i32, %c0_i32_0 : i32, i32
  }
  func.func @transform_3(%arg0: i32) -> (i32, i32) {
    %c0_i32 = arith.constant 0 : i32
    %c0_i32_0 = arith.constant 0 : i32
    %c0_i32_1 = arith.constant 0 : i32
    return %c0_i32, %c0_i32_0 : i32, i32
  }
  func.func @transform_4(%arg0: i32) -> (i32, i32) {
    %c0_i32 = arith.constant 0 : i32
    %c0_i32_0 = arith.constant 0 : i32
    %c0_i32_1 = arith.constant 0 : i32
    return %c0_i32, %c0_i32_0 : i32, i32
  }
  func.func @transform_5(%arg0: i32) -> (i32, i32) {
    %c0_i32 = arith.constant 0 : i32
    %c0_i32_0 = arith.constant 0 : i32
    %c0_i32_1 = arith.constant 0 : i32
    return %c0_i32, %c0_i32_0 : i32, i32
  }
  func.func @transform_6(%arg0: i32) -> (i32, i32) {
    %c0_i32 = arith.constant 0 : i32
    %c0_i32_0 = arith.constant 0 : i32
    %c0_i32_1 = arith.constant 0 : i32
    return %c0_i32, %c0_i32_0 : i32, i32
  }
  func.func @transform_7(%arg0: i32) -> (i32, i32) {
    %c0_i32 = arith.constant 0 : i32
    %c0_i32_0 = arith.constant 0 : i32
    %c0_i32_1 = arith.constant 0 : i32
    return %c0_i32, %c0_i32_0 : i32, i32
  }
  func.func @transform_8(%arg0: i32) -> (i32, i32) {
    %c0_i32 = arith.constant 0 : i32
    %c0_i32_0 = arith.constant 0 : i32
    %c0_i32_1 = arith.constant 0 : i32
    return %c0_i32, %c0_i32_0 : i32, i32
  }
  func.func @transform_9(%arg0: i32) -> (i32, i32) {
    %c0_i32 = arith.constant 0 : i32
    %c0_i32_0 = arith.constant 0 : i32
    %c0_i32_1 = arith.constant 0 : i32
    return %c0_i32, %c0_i32_0 : i32, i32
  }
  func.func @transform_10(%arg0: i32) -> (i32, i32) {
    %c0_i32 = arith.constant 0 : i32
    %c0_i32_0 = arith.constant 0 : i32
    %c0_i32_1 = arith.constant 0 : i32
    return %c0_i32, %c0_i32_0 : i32, i32
  }
  func.func @transform_11(%arg0: i32) -> (i32, i32) {
    %c0_i32 = arith.constant 0 : i32
    %c0_i32_0 = arith.constant 0 : i32
    %c0_i32_1 = arith.constant 0 : i32
    return %c0_i32, %c0_i32_0 : i32, i32
  }
  func.func @transform_12(%arg0: i32) -> (i32, i32) {
    %c0_i32 = arith.constant 0 : i32
    %c0_i32_0 = arith.constant 0 : i32
    %c0_i32_1 = arith.constant 0 : i32
    return %c0_i32, %c0_i32_0 : i32, i32
  }
  func.func @transform_13(%arg0: i32) -> (i32, i32) {
    %c0_i32 = arith.constant 0 : i32
    %c0_i32_0 = arith.constant 0 : i32
    return %arg0, %c0_i32 : i32, i32
  }
}

</mosaic_0001>

<llo_original>
// kernel: tpu_custom_call.1
$region0: #{tpu_custom_call.1}
  #allocation0 [shape = 'u32[]', space=smem, size = 0x4, offset = 0x4, fixed_abs, tag = 'smem constant byte address 0x4 - core index']
  #allocation1 [shape = 'u32[72,128]{1,0:T(1,128)}', space=vmem, size = 0x9000, scoped, tag = 'internal scratch']
  %s0 = inlined_call_operand.hbm [shape: bf16[8,256], index: 0, kind: input, shape index: {}]
  %s1 = inlined_call_operand.hbm [shape: bf16[256,1024], index: 1, kind: input, shape index: {}]
  %s2 = inlined_call_operand.hbm [shape: f32[1,1024], index: 2, kind: input, shape index: {}]
  %s3 = inlined_call_operand.hbm [shape: bf16[1024,512], index: 3, kind: input, shape index: {}]
  %s4 = inlined_call_operand.hbm [shape: f32[1,512], index: 4, kind: input, shape index: {}]
  %s5 = inlined_call_operand.hbm [shape: bf16[512,128], index: 5, kind: input, shape index: {}]
  %s6 = inlined_call_operand.hbm [shape: f32[1,128], index: 6, kind: input, shape index: {}]
  %s7 = inlined_call_operand.hbm [shape: bf16[128,512], index: 7, kind: input, shape index: {}]
  %s8 = inlined_call_operand.hbm [shape: f32[1,512], index: 8, kind: input, shape index: {}]
  %s9 = inlined_call_operand.hbm [shape: bf16[512,1024], index: 9, kind: input, shape index: {}]
  %s10 = inlined_call_operand.vmem [shape: f32[1,1024], index: 10, kind: input, shape index: {}]
  %s11 = inlined_call_operand.hbm [shape: bf16[1024,256], index: 11, kind: input, shape index: {}]
  %s12 = inlined_call_operand.vmem [shape: f32[1,256], index: 12, kind: input, shape index: {}]
  %s13 = inlined_call_operand.hbm [shape: f32[8,256], index: 13, kind: output, shape index: {}]
  %s14 = sld [smem:[#allocation0]]
  $region106: #{tpu_custom_call.1} parent=0
    _
  %s16 = ssub.s32 1, %s14
  %s17 = scalar_select 0, %s16, %s14
  $region1: #{tpu_custom_call.1} parent=0
    #allocation2 [shape = 'u8[4096]{0}', space=vmem, size = 0x1000, scoped, tag = 'input window, operand 0, single buffered']
    #allocation3 [shape = 's32[1]{0}', space=sflag, size = 0x4, scoped, tag = 'scoped memory for tpu_custom_call.1']
    #allocation4 [shape = 's32[1]{0}', space=sflag, size = 0x4, scoped, tag = 'scoped memory for tpu_custom_call.1']
    #allocation5 [shape = 'u8[524288]{0}', space=vmem, size = 0x80000, scoped, tag = 'input window, operand 1, single buffered']
    #allocation6 [shape = 's32[1]{0}', space=sflag, size = 0x4, scoped, tag = 'scoped memory for tpu_custom_call.1']
    #allocation7 [shape = 'u8[4096]{0}', space=vmem, size = 0x1000, scoped, tag = 'input window, operand 2, single buffered']
    #allocation8 [shape = 'u8[1048576]{0}', space=vmem, size = 0x100000, scoped, tag = 'input window, operand 3, single buffered']
    #allocation9 [shape = 's32[1]{0}', space=sflag, size = 0x4, scoped, tag = 'scoped memory for tpu_custom_call.1']
    #allocation10 [shape = 'u8[2048]{0}', space=vmem, size = 0x800, scoped, tag = 'input window, operand 4, single buffered']
    #allocation11 [shape = 'u8[131072]{0}', space=vmem, size = 0x20000, scoped, tag = 'input window, operand 5, single buffered']
    #allocation12 [shape = 's32[1]{0}', space=sflag, size = 0x4, scoped, tag = 'scoped memory for tpu_custom_call.1']
    #allocation13 [shape = 'u8[512]{0}', space=vmem, size = 0x400, scoped, tag = 'input window, operand 6, single buffered']
    #allocation14 [shape = 'u8[131072]{0}', space=vmem, size = 0x20000, scoped, tag = 'input window, operand 7, single buffered']
    #allocation15 [shape = 's32[1]{0}', space=sflag, size = 0x4, scoped, tag = 'scoped memory for tpu_custom_call.1']
    #allocation16 [shape = 'u8[2048]{0}', space=vmem, size = 0x800, scoped, tag = 'input window, operand 8, single buffered']
    #allocation17 [shape = 'u8[1048576]{0}', space=vmem, size = 0x100000, scoped, tag = 'input window, operand 9, single buffered']
    #allocation18 [shape = 's32[1]{0}', space=sflag, size = 0x4, scoped, tag = 'scoped memory for tpu_custom_call.1']
    #allocation19 [shape = 'u8[524288]{0}', space=vmem, size = 0x80000, scoped, tag = 'input window, operand 11, single buffered']
    #allocation20 [shape = 'u8[8192]{0}', space=vmem, size = 0x2000, scoped, tag = 'output window, operand 0, single buffered']
    %18 = vsyncpa [#allocation3], 0
    %19 = vsyncpa [#allocation6], 0
    %20 = vsyncpa [#allocation9], 0
    %21 = vsyncpa [#allocation12], 0
    %22 = vsyncpa [#allocation15], 0
    %23 = vsyncpa [#allocation18], 0
    %24 = vsyncpa [#allocation4], 0
    // Predicated region
    $region2: #{tpu_custom_call.1} parent=1 // pred_check
      _
    $region3: #{tpu_custom_call.1} parent=1 // pred_check_branch
      %26 = sbr.rel (0) target = $region5
    $region4: #{tpu_custom_call.1} parent=1 // pred_region
      %28 = vsyncadd [#allocation3], 0
      %s30 = sshll.u32 %s0, 4
      %s31 = int_to_ptr.hbm [resolvable:$true] %s30
      %s32 = sshll.u32 [#allocation2], 4
      %s33 = int_to_ptr.vmem [resolvable:$true] %s32
      %35 = dma.hbm_to_vmem [thread:$0]  %s31, 128, %s33, [#allocation3]
    $region5: #{tpu_custom_call.1} parent=1 // pred_fallthru
      _
    // Predicated region
    $region6: #{tpu_custom_call.1} parent=1 // pred_check
      _
    $region7: #{tpu_custom_call.1} parent=1 // pred_check_branch
      %37 = sbr.rel (0) target = $region9
    $region8: #{tpu_custom_call.1} parent=1 // pred_region
      %39 = vsyncadd [#allocation6], 0
      %s40 = sshll.u32 %s1, 4
      %s41 = int_to_ptr.hbm [resolvable:$true] %s40
      %s42 = sshll.u32 [#allocation5], 4
      %s43 = int_to_ptr.vmem [resolvable:$true] %s42
      %48 = dma.hbm_to_vmem [thread:$0]  %s41, 16384, %s43, [#allocation6], 512, 512, 32
    $region9: #{tpu_custom_call.1} parent=1 // pred_fallthru
      _
    // Predicated region
    $region10: #{tpu_custom_call.1} parent=1 // pred_check
      _
    $region11: #{tpu_custom_call.1} parent=1 // pred_check_branch
      %50 = sbr.rel (0) target = $region13
    $region12: #{tpu_custom_call.1} parent=1 // pred_region
      %52 = vsyncadd [#allocation6], 0
      %s54 = sshll.u32 %s2, 4
      %s55 = int_to_ptr.hbm [resolvable:$true] %s54
      %s56 = sshll.u32 [#allocation7], 4
      %s57 = int_to_ptr.vmem [resolvable:$true] %s56
      %59 = dma.hbm_to_vmem [thread:$0]  %s55, 128, %s57, [#allocation6]
    $region13: #{tpu_custom_call.1} parent=1 // pred_fallthru
      _
    // Predicated region
    $region14: #{tpu_custom_call.1} parent=1 // pred_check
      _
    $region15: #{tpu_custom_call.1} parent=1 // pred_check_branch
      %61 = sbr.rel (0) target = $region17
    $region16: #{tpu_custom_call.1} parent=1 // pred_region
      %63 = vsyncadd [#allocation9], 0
      %s64 = sshll.u32 %s3, 4
      %s65 = int_to_ptr.hbm [resolvable:$true] %s64
      %s66 = sshll.u32 [#allocation8], 4
      %s67 = int_to_ptr.vmem [resolvable:$true] %s66
      %72 = dma.hbm_to_vmem [thread:$0]  %s65, 32768, %s67, [#allocation9], 256, 256, 16
    $region17: #{tpu_custom_call.1} parent=1 // pred_fallthru
      _
    // Predicated region
    $region18: #{tpu_custom_call.1} parent=1 // pred_check
      _
    $region19: #{tpu_custom_call.1} parent=1 // pred_check_branch
      %74 = sbr.rel (0) target = $region21
    $region20: #{tpu_custom_call.1} parent=1 // pred_region
      %76 = vsyncadd [#allocation9], 0
      %s78 = sshll.u32 %s4, 4
      %s79 = int_to_ptr.hbm [resolvable:$true] %s78
      %s80 = sshll.u32 [#allocation10], 4
      %s81 = int_to_ptr.vmem [resolvable:$true] %s80
      %83 = dma.hbm_to_vmem [thread:$0]  %s79, 64, %s81, [#allocation9]
    $region21: #{tpu_custom_call.1} parent=1 // pred_fallthru
      _
    // Predicated region
    $region22: #{tpu_custom_call.1} parent=1 // pred_check
      _
    $region23: #{tpu_custom_call.1} parent=1 // pred_check_branch
      %85 = sbr.rel (0) target = $region25
    $region24: #{tpu_custom_call.1} parent=1 // pred_region
      %87 = vsyncadd [#allocation12], 0
      %s88 = sshll.u32 %s5, 4
      %s89 = int_to_ptr.hbm [resolvable:$true] %s88
      %s90 = sshll.u32 [#allocation11], 4
      %s91 = int_to_ptr.vmem [resolvable:$true] %s90
      %96 = dma.hbm_to_vmem [thread:$0]  %s89, 4096, %s91, [#allocation12], 64, 64, 4
    $region25: #{tpu_custom_call.1} parent=1 // pred_fallthru
      _
    // Predicated region
    $region26: #{tpu_custom_call.1} parent=1 // pred_check
      _
    $region27: #{tpu_custom_call.1} parent=1 // pred_check_branch
      %98 = sbr.rel (0) target = $region29
    $region28: #{tpu_custom_call.1} parent=1 // pred_region
      %100 = vsyncadd [#allocation12], 0
      %s102 = sshll.u32 %s6, 4
      %s103 = int_to_ptr.hbm [resolvable:$true] %s102
      %s104 = sshll.u32 [#allocation13], 4
      %s105 = int_to_ptr.vmem [resolvable:$true] %s104
      %107 = dma.hbm_to_vmem [thread:$0]  %s103, 16, %s105, [#allocation12]
    $region29: #{tpu_custom_call.1} parent=1 // pred_fallthru
      _
    // Predicated region
    $region30: #{tpu_custom_call.1} parent=1 // pred_check
      _
    $region31: #{tpu_custom_call.1} parent=1 // pred_check_branch
      %109 = sbr.rel (0) target = $region33
    $region32: #{tpu_custom_call.1} parent=1 // pred_region
      %111 = vsyncadd [#allocation15], 0
      %s112 = sshll.u32 %s7, 4
      %s113 = int_to_ptr.hbm [resolvable:$true] %s112
      %s114 = sshll.u32 [#allocation14], 4
      %s115 = int_to_ptr.vmem [resolvable:$true] %s114
      %120 = dma.hbm_to_vmem [thread:$0]  %s113, 4096, %s115, [#allocation15], 256, 256, 16
    $region33: #{tpu_custom_call.1} parent=1 // pred_fallthru
      _
    // Predicated region
    $region34: #{tpu_custom_call.1} parent=1 // pred_check
      _
    $region35: #{tpu_custom_call.1} parent=1 // pred_check_branch
      %122 = sbr.rel (0) target = $region37
    $region36: #{tpu_custom_call.1} parent=1 // pred_region
      %124 = vsyncadd [#allocation15], 0
      %s126 = sshll.u32 %s8, 4
      %s127 = int_to_ptr.hbm [resolvable:$true] %s126
      %s128 = sshll.u32 [#allocation16], 4
      %s129 = int_to_ptr.vmem [resolvable:$true] %s128
      %131 = dma.hbm_to_vmem [thread:$0]  %s127, 64, %s129, [#allocation15]
    $region37: #{tpu_custom_call.1} parent=1 // pred_fallthru
      _
    // Predicated region
    $region38: #{tpu_custom_call.1} parent=1 // pred_check
      _
    $region39: #{tpu_custom_call.1} parent=1 // pred_check_branch
      %133 = sbr.rel (0) target = $region41
    $region40: #{tpu_custom_call.1} parent=1 // pred_region
      %135 = vsyncadd [#allocation18], 0
      %s136 = sshll.u32 %s9, 4
      %s137 = int_to_ptr.hbm [resolvable:$true] %s136
      %s138 = sshll.u32 [#allocation17], 4
      %s139 = int_to_ptr.vmem [resolvable:$true] %s138
      %144 = dma.hbm_to_vmem [thread:$0]  %s137, 32768, %s139, [#allocation18], 512, 512, 32
    $region41: #{tpu_custom_call.1} parent=1 // pred_fallthru
      _
    // Predicated region
    $region42: #{tpu_custom_call.1} parent=1 // pred_check
      _
    $region43: #{tpu_custom_call.1} parent=1 // pred_check_branch
      %146 = sbr.rel (0) target = $region45
    $region44: #{tpu_custom_call.1} parent=1 // pred_region
      _
    $region45: #{tpu_custom_call.1} parent=1 // pred_fallthru
      _
    // Predicated region
    $region46: #{tpu_custom_call.1} parent=1 // pred_check
      _
    $region47: #{tpu_custom_call.1} parent=1 // pred_check_branch
      %148 = sbr.rel (0) target = $region49
    $region48: #{tpu_custom_call.1} parent=1 // pred_region
      %150 = vsyncadd [#allocation18], 0
      %s151 = sshll.u32 %s11, 4
      %s152 = int_to_ptr.hbm [resolvable:$true] %s151
      %s153 = sshll.u32 [#allocation19], 4
      %s154 = int_to_ptr.vmem [resolvable:$true] %s153
      %159 = dma.hbm_to_vmem [thread:$0]  %s152, 16384, %s154, [#allocation18], 128, 128, 8
    $region49: #{tpu_custom_call.1} parent=1 // pred_fallthru
      _
    // Predicated region
    $region50: #{tpu_custom_call.1} parent=1 // pred_check
      _
    $region51: #{tpu_custom_call.1} parent=1 // pred_check_branch
      %161 = sbr.rel (0) target = $region53
    $region52: #{tpu_custom_call.1} parent=1 // pred_region
      _
    $region53: #{tpu_custom_call.1} parent=1 // pred_fallthru
      _
    // Predicated region
    $region54: #{tpu_custom_call.1} parent=1 // pred_check
      _
    $region55: #{tpu_custom_call.1} parent=1 // pred_check_branch
      %163 = sbr.rel (0) target = $region57
    $region56: #{tpu_custom_call.1} parent=1 // pred_region
      %165 = dma.done [#allocation3], 128
    $region57: #{tpu_custom_call.1} parent=1 // pred_fallthru
      _
    // Predicated region
    $region58: #{tpu_custom_call.1} parent=1 // pred_check
      _
    $region59: #{tpu_custom_call.1} parent=1 // pred_check_branch
      %167 = sbr.rel (0) target = $region61
    $region60: #{tpu_custom_call.1} parent=1 // pred_region
      %169 = dma.done [#allocation6], 16384
    $region61: #{tpu_custom_call.1} parent=1 // pred_fallthru
      _
    // Predicated region
    $region62: #{tpu_custom_call.1} parent=1 // pred_check
      _
    $region63: #{tpu_custom_call.1} parent=1 // pred_check_branch
      %171 = sbr.rel (0) target = $region65
    $region64: #{tpu_custom_call.1} parent=1 // pred_region
      %173 = dma.done [#allocation6], 128
    $region65: #{tpu_custom_call.1} parent=1 // pred_fallthru
      _
    // Predicated region
    $region66: #{tpu_custom_call.1} parent=1 // pred_check
      _
    $region67: #{tpu_custom_call.1} parent=1 // pred_check_branch
      %175 = sbr.rel (0) target = $region69
    $region68: #{tpu_custom_call.1} parent=1 // pred_region
      %177 = dma.done [#allocation9], 32768
    $region69: #{tpu_custom_call.1} parent=1 // pred_fallthru
      _
    // Predicated region
    $region70: #{tpu_custom_call.1} parent=1 // pred_check
      _
    $region71: #{tpu_custom_call.1} parent=1 // pred_check_branch
      %179 = sbr.rel (0) target = $region73
    $region72: #{tpu_custom_call.1} parent=1 // pred_region
      %181 = dma.done [#allocation9], 64
    $region73: #{tpu_custom_call.1} parent=1 // pred_fallthru
      _
    // Predicated region
    $region74: #{tpu_custom_call.1} parent=1 // pred_check
      _
    $region75: #{tpu_custom_call.1} parent=1 // pred_check_branch
      %183 = sbr.rel (0) target = $region77
    $region76: #{tpu_custom_call.1} parent=1 // pred_region
      %185 = dma.done [#allocation12], 4096
    $region77: #{tpu_custom_call.1} parent=1 // pred_fallthru
      _
    // Predicated region
    $region78: #{tpu_custom_call.1} parent=1 // pred_check
      _
    $region79: #{tpu_custom_call.1} parent=1 // pred_check_branch
      %187 = sbr.rel (0) target = $region81
    $region80: #{tpu_custom_call.1} parent=1 // pred_region
      %189 = dma.done [#allocation12], 16
    $region81: #{tpu_custom_call.1} parent=1 // pred_fallthru
      _
    // Predicated region
    $region82: #{tpu_custom_call.1} parent=1 // pred_check
      _
    $region83: #{tpu_custom_call.1} parent=1 // pred_check_branch
      %191 = sbr.rel (0) target = $region85
    $region84: #{tpu_custom_call.1} parent=1 // pred_region
      %193 = dma.done [#allocation15], 4096
    $region85: #{tpu_custom_call.1} parent=1 // pred_fallthru
      _
    // Predicated region
    $region86: #{tpu_custom_call.1} parent=1 // pred_check
      _
    $region87: #{tpu_custom_call.1} parent=1 // pred_check_branch
      %195 = sbr.rel (0) target = $region89
    $region88: #{tpu_custom_call.1} parent=1 // pred_region
      %197 = dma.done [#allocation15], 64
    $region89: #{tpu_custom_call.1} parent=1 // pred_fallthru
      _
    // Predicated region
    $region90: #{tpu_custom_call.1} parent=1 // pred_check
      _
    $region91: #{tpu_custom_call.1} parent=1 // pred_check_branch
      %199 = sbr.rel (0) target = $region93
    $region92: #{tpu_custom_call.1} parent=1 // pred_region
      %201 = dma.done [#allocation18], 32768
    $region93: #{tpu_custom_call.1} parent=1 // pred_fallthru
      _
    // Predicated region
    $region94: #{tpu_custom_call.1} parent=1 // pred_check
      _
    $region95: #{tpu_custom_call.1} parent=1 // pred_check_branch
      %203 = sbr.rel (0) target = $region97
    $region96: #{tpu_custom_call.1} parent=1 // pred_region
      %205 = dma.done [#allocation18], 16384
    $region97: #{tpu_custom_call.1} parent=1 // pred_fallthru
      _
    %v206 = vld [vmem:[#allocation2] sm:$0xff]
    %v207 = vld [vmem:[#allocation5] sm:$0xff]
    %v208 = vld [vmem:[#allocation5 + $0x8] sm:$0xff]
    %v209 = vld [vmem:[#allocation5 + $0x10] sm:$0xff]
    %v210 = vld [vmem:[#allocation5 + $0x18] sm:$0xff]
    %v211 = vld [vmem:[#allocation5 + $0x20] sm:$0xff]
    %v212 = vld [vmem:[#allocation5 + $0x28] sm:$0xff]
    %v213 = vld [vmem:[#allocation5 + $0x30] sm:$0xff]
    %v214 = vld [vmem:[#allocation5 + $0x38] sm:$0xff]
    %v215 = vld [vmem:[#allocation5 + $0x40] sm:$0xff]
    %v216 = vld [vmem:[#allocation5 + $0x48] sm:$0xff]
    %v217 = vld [vmem:[#allocation5 + $0x50] sm:$0xff]
    %v218 = vld [vmem:[#allocation5 + $0x58] sm:$0xff]
    %v219 = vld [vmem:[#allocation5 + $0x60] sm:$0xff]
    %v220 = vld [vmem:[#allocation5 + $0x68] sm:$0xff]
    %v221 = vld [vmem:[#allocation5 + $0x70] sm:$0xff]
    %v222 = vld [vmem:[#allocation5 + $0x78] sm:$0xff]
    %v223 = vld [vmem:[#allocation5 + $0x80] sm:$0xff]
    %v224 = vld [vmem:[#allocation5 + $0x88] sm:$0xff]
    %v225 = vld [vmem:[#allocation5 + $0x90] sm:$0xff]
    %v226 = vld [vmem:[#allocation5 + $0x98] sm:$0xff]
    %v227 = vld [vmem:[#allocation5 + $0xa0] sm:$0xff]
    %v228 = vld [vmem:[#allocation5 + $0xa8] sm:$0xff]
    %v229 = vld [vmem:[#allocation5 + $0xb0] sm:$0xff]
    %v230 = vld [vmem:[#allocation5 + $0xb8] sm:$0xff]
    %v231 = vld [vmem:[#allocation5 + $0xc0] sm:$0xff]
    %v232 = vld [vmem:[#allocation5 + $0xc8] sm:$0xff]
    %v233 = vld [vmem:[#allocation5 + $0xd0] sm:$0xff]
    %v234 = vld [vmem:[#allocation5 + $0xd8] sm:$0xff]
    %v235 = vld [vmem:[#allocation5 + $0xe0] sm:$0xff]
    %v236 = vld [vmem:[#allocation5 + $0xe8] sm:$0xff]
    %v237 = vld [vmem:[#allocation5 + $0xf0] sm:$0xff]
    %v238 = vld [vmem:[#allocation5 + $0xf8] sm:$0xff]
    %v239 = vld [vmem:[#allocation5 + $0x100] sm:$0xff]
    %v240 = vld [vmem:[#allocation5 + $0x108] sm:$0xff]
    %v241 = vld [vmem:[#allocation5 + $0x110] sm:$0xff]
    %v242 = vld [vmem:[#allocation5 + $0x118] sm:$0xff]
    %v243 = vld [vmem:[#allocation5 + $0x120] sm:$0xff]
    %v244 = vld [vmem:[#allocation5 + $0x128] sm:$0xff]
    %v245 = vld [vmem:[#allocation5 + $0x130] sm:$0xff]
    %v246 = vld [vmem:[#allocation5 + $0x138] sm:$0xff]
    %v247 = vld [vmem:[#allocation5 + $0x140] sm:$0xff]
    %v248 = vld [vmem:[#allocation5 + $0x148] sm:$0xff]
    %v249 = vld [vmem:[#allocation5 + $0x150] sm:$0xff]
    %v250 = vld [vmem:[#allocation5 + $0x158] sm:$0xff]
    %v251 = vld [vmem:[#allocation5 + $0x160] sm:$0xff]
    %v252 = vld [vmem:[#allocation5 + $0x168] sm:$0xff]
    %v253 = vld [vmem:[#allocation5 + $0x170] sm:$0xff]
    %v254 = vld [vmem:[#allocation5 + $0x178] sm:$0xff]
    %v255 = vld [vmem:[#allocation5 + $0x180] sm:$0xff]
    %v256 = vld [vmem:[#allocation5 + $0x188] sm:$0xff]
    %v257 = vld [vmem:[#allocation5 + $0x190] sm:$0xff]
    %v258 = vld [vmem:[#allocation5 + $0x198] sm:$0xff]
    %v259 = vld [vmem:[#allocation5 + $0x1a0] sm:$0xff]
    %v260 = vld [vmem:[#allocation5 + $0x1a8] sm:$0xff]
    %v261 = vld [vmem:[#allocation5 + $0x1b0] sm:$0xff]
    %v262 = vld [vmem:[#allocation5 + $0x1b8] sm:$0xff]
    %v263 = vld [vmem:[#allocation5 + $0x1c0] sm:$0xff]
    %v264 = vld [vmem:[#allocation5 + $0x1c8] sm:$0xff]
    %v265 = vld [vmem:[#allocation5 + $0x1d0] sm:$0xff]
    %v266 = vld [vmem:[#allocation5 + $0x1d8] sm:$0xff]
    %v267 = vld [vmem:[#allocation5 + $0x1e0] sm:$0xff]
    %v268 = vld [vmem:[#allocation5 + $0x1e8] sm:$0xff]
    %v269 = vld [vmem:[#allocation5 + $0x1f0] sm:$0xff]
    %v270 = vld [vmem:[#allocation5 + $0x1f8] sm:$0xff]
    %v271 = vld [vmem:[#allocation5 + $0x200] sm:$0xff]
    %v272 = vld [vmem:[#allocation5 + $0x208] sm:$0xff]
    %v273 = vld [vmem:[#allocation5 + $0x210] sm:$0xff]
    %v274 = vld [vmem:[#allocation5 + $0x218] sm:$0xff]
    %v275 = vld [vmem:[#allocation5 + $0x220] sm:$0xff]
    %v276 = vld [vmem:[#allocation5 + $0x228] sm:$0xff]
    %v277 = vld [vmem:[#allocation5 + $0x230] sm:$0xff]
    %v278 = vld [vmem:[#allocation5 + $0x238] sm:$0xff]
    %v279 = vld [vmem:[#allocation5 + $0x240] sm:$0xff]
    %v280 = vld [vmem:[#allocation5 + $0x248] sm:$0xff]
    %v281 = vld [vmem:[#allocation5 + $0x250] sm:$0xff]
    %v282 = vld [vmem:[#allocation5 + $0x258] sm:$0xff]
    %v283 = vld [vmem:[#allocation5 + $0x260] sm:$0xff]
    %v284 = vld [vmem:[#allocation5 + $0x268] sm:$0xff]
    %v285 = vld [vmem:[#allocation5 + $0x270] sm:$0xff]
    %v286 = vld [vmem:[#allocation5 + $0x278] sm:$0xff]
    %v287 = vld [vmem:[#allocation5 + $0x280] sm:$0xff]
    %v288 = vld [vmem:[#allocation5 + $0x288] sm:$0xff]
    %v289 = vld [vmem:[#allocation5 + $0x290] sm:$0xff]
    %v290 = vld [vmem:[#allocation5 + $0x298] sm:$0xff]
    %v291 = vld [vmem:[#allocation5 + $0x2a0] sm:$0xff]
    %v292 = vld [vmem:[#allocation5 + $0x2a8] sm:$0xff]
    %v293 = vld [vmem:[#allocation5 + $0x2b0] sm:$0xff]
    %v294 = vld [vmem:[#allocation5 + $0x2b8] sm:$0xff]
    %v295 = vld [vmem:[#allocation5 + $0x2c0] sm:$0xff]
    %v296 = vld [vmem:[#allocation5 + $0x2c8] sm:$0xff]
    %v297 = vld [vmem:[#allocation5 + $0x2d0] sm:$0xff]
    %v298 = vld [vmem:[#allocation5 + $0x2d8] sm:$0xff]
    %v299 = vld [vmem:[#allocation5 + $0x2e0] sm:$0xff]
    %v300 = vld [vmem:[#allocation5 + $0x2e8] sm:$0xff]
    %v301 = vld [vmem:[#allocation5 + $0x2f0] sm:$0xff]
    %v302 = vld [vmem:[#allocation5 + $0x2f8] sm:$0xff]
    %v303 = vld [vmem:[#allocation5 + $0x300] sm:$0xff]
    %v304 = vld [vmem:[#allocation5 + $0x308] sm:$0xff]
    %v305 = vld [vmem:[#allocation5 + $0x310] sm:$0xff]
    %v306 = vld [vmem:[#allocation5 + $0x318] sm:$0xff]
    %v307 = vld [vmem:[#allocation5 + $0x320] sm:$0xff]
    %v308 = vld [vmem:[#allocation5 + $0x328] sm:$0xff]
    %v309 = vld [vmem:[#allocation5 + $0x330] sm:$0xff]
    %v310 = vld [vmem:[#allocation5 + $0x338] sm:$0xff]
    %v311 = vld [vmem:[#allocation5 + $0x340] sm:$0xff]
    %v312 = vld [vmem:[#allocation5 + $0x348] sm:$0xff]
    %v313 = vld [vmem:[#allocation5 + $0x350] sm:$0xff]
    %v314 = vld [vmem:[#allocation5 + $0x358] sm:$0xff]
    %v315 = vld [vmem:[#allocation5 + $0x360] sm:$0xff]
    %v316 = vld [vmem:[#allocation5 + $0x368] sm:$0xff]
    %v317 = vld [vmem:[#allocation5 + $0x370] sm:$0xff]
    %v318 = vld [vmem:[#allocation5 + $0x378] sm:$0xff]
    %v319 = vld [vmem:[#allocation5 + $0x380] sm:$0xff]
    %v320 = vld [vmem:[#allocation5 + $0x388] sm:$0xff]
    %v321 = vld [vmem:[#allocation5 + $0x390] sm:$0xff]
    %v322 = vld [vmem:[#allocation5 + $0x398] sm:$0xff]
    %v323 = vld [vmem:[#allocation5 + $0x3a0] sm:$0xff]
    %v324 = vld [vmem:[#allocation5 + $0x3a8] sm:$0xff]
    %v325 = vld [vmem:[#allocation5 + $0x3b0] sm:$0xff]
    %v326 = vld [vmem:[#allocation5 + $0x3b8] sm:$0xff]
    %v327 = vld [vmem:[#allocation5 + $0x3c0] sm:$0xff]
    %v328 = vld [vmem:[#allocation5 + $0x3c8] sm:$0xff]
    %v329 = vld [vmem:[#allocation5 + $0x3d0] sm:$0xff]
    %v330 = vld [vmem:[#allocation5 + $0x3d8] sm:$0xff]
    %v331 = vld [vmem:[#allocation5 + $0x3e0] sm:$0xff]
    %v332 = vld [vmem:[#allocation5 + $0x3e8] sm:$0xff]
    %v333 = vld [vmem:[#allocation5 + $0x3f0] sm:$0xff]
    %v334 = vld [vmem:[#allocation5 + $0x3f8] sm:$0xff]
    %v335 = vld [vmem:[#allocation7] sm:$0xff]
    %v337 = vperm.slane %v335, 0
    %v338 = vperm.slane %v335, 1
    %v339 = vperm.slane %v335, 2
    %v340 = vperm.slane %v335, 3
    %v341 = vperm.slane %v335, 4
    %v342 = vperm.slane %v335, 5
    %v343 = vperm.slane %v335, 6
    %v344 = vperm.slane %v335, 7
    %v354 = vunpack.c.l.b16 %v206
    %v355 = vunpack.c.h.b16 %v206
    %v356 = vpack.c.b16 %v354, %v354
    %v357 = vpack.c.b16 %v355, %v355
    %v488 = vunpack.c.l.b16 %v207
    %v489 = vunpack.c.h.b16 %v207
    %v490 = vunpack.c.l.b16 %v208
    %v491 = vunpack.c.h.b16 %v208
    %v492 = vunpack.c.l.b16 %v209
    %v493 = vunpack.c.h.b16 %v209
    %v494 = vunpack.c.l.b16 %v210
    %v495 = vunpack.c.h.b16 %v210
    %v496 = vunpack.c.l.b16 %v211
    %v497 = vunpack.c.h.b16 %v211
    %v498 = vunpack.c.l.b16 %v212
    %v499 = vunpack.c.h.b16 %v212
    %v500 = vunpack.c.l.b16 %v213
    %v501 = vunpack.c.h.b16 %v213
    %v502 = vunpack.c.l.b16 %v214
    %v503 = vunpack.c.h.b16 %v214
    %v504 = vunpack.c.l.b16 %v215
    %v505 = vunpack.c.h.b16 %v215
    %v506 = vunpack.c.l.b16 %v216
    %v507 = vunpack.c.h.b16 %v216
    %v508 = vunpack.c.l.b16 %v217
    %v509 = vunpack.c.h.b16 %v217
    %v510 = vunpack.c.l.b16 %v218
    %v511 = vunpack.c.h.b16 %v218
    %v512 = vunpack.c.l.b16 %v219
    %v513 = vunpack.c.h.b16 %v219
    %v514 = vunpack.c.l.b16 %v220
    %v515 = vunpack.c.h.b16 %v220
    %v516 = vunpack.c.l.b16 %v221
    %v517 = vunpack.c.h.b16 %v221
    %v518 = vunpack.c.l.b16 %v222
    %v519 = vunpack.c.h.b16 %v222
    %v520 = vunpack.c.l.b16 %v223
    %v521 = vunpack.c.h.b16 %v223
    %v522 = vunpack.c.l.b16 %v224
    %v523 = vunpack.c.h.b16 %v224
    %v524 = vunpack.c.l.b16 %v225
    %v525 = vunpack.c.h.b16 %v225
    %v526 = vunpack.c.l.b16 %v226
    %v527 = vunpack.c.h.b16 %v226
    %v528 = vunpack.c.l.b16 %v227
    %v529 = vunpack.c.h.b16 %v227
    %v530 = vunpack.c.l.b16 %v228
    %v531 = vunpack.c.h.b16 %v228
    %v532 = vunpack.c.l.b16 %v229
    %v533 = vunpack.c.h.b16 %v229
    %v534 = vunpack.c.l.b16 %v230
    %v535 = vunpack.c.h.b16 %v230
    %v536 = vunpack.c.l.b16 %v231
    %v537 = vunpack.c.h.b16 %v231
    %v538 = vunpack.c.l.b16 %v232
    %v539 = vunpack.c.h.b16 %v232
    %v540 = vunpack.c.l.b16 %v233
    %v541 = vunpack.c.h.b16 %v233
    %v542 = vunpack.c.l.b16 %v234
    %v543 = vunpack.c.h.b16 %v234
    %v544 = vunpack.c.l.b16 %v235
    %v545 = vunpack.c.h.b16 %v235
    %v546 = vunpack.c.l.b16 %v236
    %v547 = vunpack.c.h.b16 %v236
    %v548 = vunpack.c.l.b16 %v237
    %v549 = vunpack.c.h.b16 %v237
    %v550 = vunpack.c.l.b16 %v238
    %v551 = vunpack.c.h.b16 %v238
    %v552 = vunpack.c.l.b16 %v239
    %v553 = vunpack.c.h.b16 %v239
    %v554 = vunpack.c.l.b16 %v240
    %v555 = vunpack.c.h.b16 %v240
    %v556 = vunpack.c.l.b16 %v241
    %v557 = vunpack.c.h.b16 %v241
    %v558 = vunpack.c.l.b16 %v242
    %v559 = vunpack.c.h.b16 %v242
    %v560 = vunpack.c.l.b16 %v243
    %v561 = vunpack.c.h.b16 %v243
    %v562 = vunpack.c.l.b16 %v244
    %v563 = vunpack.c.h.b16 %v244
    %v564 = vunpack.c.l.b16 %v245
    %v565 = vunpack.c.h.b16 %v245
    %v566 = vunpack.c.l.b16 %v246
    %v567 = vunpack.c.h.b16 %v246
    %v568 = vunpack.c.l.b16 %v247
    %v569 = vunpack.c.h.b16 %v247
    %v570 = vunpack.c.l.b16 %v248
    %v571 = vunpack.c.h.b16 %v248
    %v572 = vunpack.c.l.b16 %v249
    %v573 = vunpack.c.h.b16 %v249
    %v574 = vunpack.c.l.b16 %v250
    %v575 = vunpack.c.h.b16 %v250
    %v576 = vunpack.c.l.b16 %v251
    %v577 = vunpack.c.h.b16 %v251
    %v578 = vunpack.c.l.b16 %v252
    %v579 = vunpack.c.h.b16 %v252
    %v580 = vunpack.c.l.b16 %v253
    %v581 = vunpack.c.h.b16 %v253
    %v582 = vunpack.c.l.b16 %v254
    %v583 = vunpack.c.h.b16 %v254
    %v584 = vunpack.c.l.b16 %v255
    %v585 = vunpack.c.h.b16 %v255
    %v586 = vunpack.c.l.b16 %v256
    %v587 = vunpack.c.h.b16 %v256
    %v588 = vunpack.c.l.b16 %v257
    %v589 = vunpack.c.h.b16 %v257
    %v590 = vunpack.c.l.b16 %v258
    %v591 = vunpack.c.h.b16 %v258
    %v592 = vunpack.c.l.b16 %v259
    %v593 = vunpack.c.h.b16 %v259
    %v594 = vunpack.c.l.b16 %v260
    %v595 = vunpack.c.h.b16 %v260
    %v596 = vunpack.c.l.b16 %v261
    %v597 = vunpack.c.h.b16 %v261
    %v598 = vunpack.c.l.b16 %v262
    %v599 = vunpack.c.h.b16 %v262
    %v600 = vunpack.c.l.b16 %v263
    %v601 = vunpack.c.h.b16 %v263
    %v602 = vunpack.c.l.b16 %v264
    %v603 = vunpack.c.h.b16 %v264
    %v604 = vunpack.c.l.b16 %v265
    %v605 = vunpack.c.h.b16 %v265
    %v606 = vunpack.c.l.b16 %v266
    %v607 = vunpack.c.h.b16 %v266
    %v608 = vunpack.c.l.b16 %v267
    %v609 = vunpack.c.h.b16 %v267
    %v610 = vunpack.c.l.b16 %v268
    %v611 = vunpack.c.h.b16 %v268
    %v612 = vunpack.c.l.b16 %v269
    %v613 = vunpack.c.h.b16 %v269
    %v614 = vunpack.c.l.b16 %v270
    %v615 = vunpack.c.h.b16 %v270
    %v616 = vunpack.c.l.b16 %v271
    %v617 = vunpack.c.h.b16 %v271
    %v618 = vunpack.c.l.b16 %v272
    %v619 = vunpack.c.h.b16 %v272
    %v620 = vunpack.c.l.b16 %v273
    %v621 = vunpack.c.h.b16 %v273
    %v622 = vunpack.c.l.b16 %v274
    %v623 = vunpack.c.h.b16 %v274
    %v624 = vunpack.c.l.b16 %v275
    %v625 = vunpack.c.h.b16 %v275
    %v626 = vunpack.c.l.b16 %v276
    %v627 = vunpack.c.h.b16 %v276
    %v628 = vunpack.c.l.b16 %v277
    %v629 = vunpack.c.h.b16 %v277
    %v630 = vunpack.c.l.b16 %v278
    %v631 = vunpack.c.h.b16 %v278
    %v632 = vunpack.c.l.b16 %v279
    %v633 = vunpack.c.h.b16 %v279
    %v634 = vunpack.c.l.b16 %v280
    %v635 = vunpack.c.h.b16 %v280
    %v636 = vunpack.c.l.b16 %v281
    %v637 = vunpack.c.h.b16 %v281
    %v638 = vunpack.c.l.b16 %v282
    %v639 = vunpack.c.h.b16 %v282
    %v640 = vunpack.c.l.b16 %v283
    %v641 = vunpack.c.h.b16 %v283
    %v642 = vunpack.c.l.b16 %v284
    %v643 = vunpack.c.h.b16 %v284
    %v644 = vunpack.c.l.b16 %v285
    %v645 = vunpack.c.h.b16 %v285
    %v646 = vunpack.c.l.b16 %v286
    %v647 = vunpack.c.h.b16 %v286
    %v648 = vunpack.c.l.b16 %v287
    %v649 = vunpack.c.h.b16 %v287
    %v650 = vunpack.c.l.b16 %v288
    %v651 = vunpack.c.h.b16 %v288
    %v652 = vunpack.c.l.b16 %v289
    %v653 = vunpack.c.h.b16 %v289
    %v654 = vunpack.c.l.b16 %v290
    %v655 = vunpack.c.h.b16 %v290
    %v656 = vunpack.c.l.b16 %v291
    %v657 = vunpack.c.h.b16 %v291
    %v658 = vunpack.c.l.b16 %v292
    %v659 = vunpack.c.h.b16 %v292
    %v660 = vunpack.c.l.b16 %v293
    %v661 = vunpack.c.h.b16 %v293
    %v662 = vunpack.c.l.b16 %v294
    %v663 = vunpack.c.h.b16 %v294
    %v664 = vunpack.c.l.b16 %v295
    %v665 = vunpack.c.h.b16 %v295
    %v666 = vunpack.c.l.b16 %v296
    %v667 = vunpack.c.h.b16 %v296
    %v668 = vunpack.c.l.b16 %v297
    %v669 = vunpack.c.h.b16 %v297
    %v670 = vunpack.c.l.b16 %v298
    %v671 = vunpack.c.h.b16 %v298
    %v672 = vunpack.c.l.b16 %v299
    %v673 = vunpack.c.h.b16 %v299
    %v674 = vunpack.c.l.b16 %v300
    %v675 = vunpack.c.h.b16 %v300
    %v676 = vunpack.c.l.b16 %v301
    %v677 = vunpack.c.h.b16 %v301
    %v678 = vunpack.c.l.b16 %v302
    %v679 = vunpack.c.h.b16 %v302
    %v680 = vunpack.c.l.b16 %v303
    %v681 = vunpack.c.h.b16 %v303
    %v682 = vunpack.c.l.b16 %v304
    %v683 = vunpack.c.h.b16 %v304
    %v684 = vunpack.c.l.b16 %v305
    %v685 = vunpack.c.h.b16 %v305
    %v686 = vunpack.c.l.b16 %v306
    %v687 = vunpack.c.h.b16 %v306
    %v688 = vunpack.c.l.b16 %v307
    %v689 = vunpack.c.h.b16 %v307
    %v690 = vunpack.c.l.b16 %v308
    %v691 = vunpack.c.h.b16 %v308
    %v692 = vunpack.c.l.b16 %v309
    %v693 = vunpack.c.h.b16 %v309
    %v694 = vunpack.c.l.b16 %v310
    %v695 = vunpack.c.h.b16 %v310
    %v696 = vunpack.c.l.b16 %v311
    %v697 = vunpack.c.h.b16 %v311
    %v698 = vunpack.c.l.b16 %v312
    %v699 = vunpack.c.h.b16 %v312
    %v700 = vunpack.c.l.b16 %v313
    %v701 = vunpack.c.h.b16 %v313
    %v702 = vunpack.c.l.b16 %v314
    %v703 = vunpack.c.h.b16 %v314
    %v704 = vunpack.c.l.b16 %v315
    %v705 = vunpack.c.h.b16 %v315
    %v706 = vunpack.c.l.b16 %v316
    %v707 = vunpack.c.h.b16 %v316
    %v708 = vunpack.c.l.b16 %v317
    %v709 = vunpack.c.h.b16 %v317
    %v710 = vunpack.c.l.b16 %v318
    %v711 = vunpack.c.h.b16 %v318
    %v712 = vunpack.c.l.b16 %v319
    %v713 = vunpack.c.h.b16 %v319
    %v714 = vunpack.c.l.b16 %v320
    %v715 = vunpack.c.h.b16 %v320
    %v716 = vunpack.c.l.b16 %v321
    %v717 = vunpack.c.h.b16 %v321
    %v718 = vunpack.c.l.b16 %v322
    %v719 = vunpack.c.h.b16 %v322
    %v720 = vunpack.c.l.b16 %v323
    %v721 = vunpack.c.h.b16 %v323
    %v722 = vunpack.c.l.b16 %v324
    %v723 = vunpack.c.h.b16 %v324
    %v724 = vunpack.c.l.b16 %v325
    %v725 = vunpack.c.h.b16 %v325
    %v726 = vunpack.c.l.b16 %v326
    %v727 = vunpack.c.h.b16 %v326
    %v728 = vunpack.c.l.b16 %v327
    %v729 = vunpack.c.h.b16 %v327
    %v730 = vunpack.c.l.b16 %v328
    %v731 = vunpack.c.h.b16 %v328
    %v732 = vunpack.c.l.b16 %v329
    %v733 = vunpack.c.h.b16 %v329
    %v734 = vunpack.c.l.b16 %v330
    %v735 = vunpack.c.h.b16 %v330
    %v736 = vunpack.c.l.b16 %v331
    %v737 = vunpack.c.h.b16 %v331
    %v738 = vunpack.c.l.b16 %v332
    %v739 = vunpack.c.h.b16 %v332
    %v740 = vunpack.c.l.b16 %v333
    %v741 = vunpack.c.h.b16 %v333
    %v742 = vunpack.c.l.b16 %v334
    %v743 = vunpack.c.h.b16 %v334
    %v744 = vpack.c.b16 %v496, %v488
    %v745 = vpack.c.b16 %v497, %v489
    %v746 = vpack.c.b16 %v498, %v490
    %v747 = vpack.c.b16 %v499, %v491
    %v748 = vpack.c.b16 %v500, %v492
    %v749 = vpack.c.b16 %v501, %v493
    %v750 = vpack.c.b16 %v502, %v494
    %v751 = vpack.c.b16 %v503, %v495
    %v752 = vpack.c.b16 %v512, %v504
    %v753 = vpack.c.b16 %v513, %v505
    %v754 = vpack.c.b16 %v514, %v506
    %v755 = vpack.c.b16 %v515, %v507
    %v756 = vpack.c.b16 %v516, %v508
    %v757 = vpack.c.b16 %v517, %v509
    %v758 = vpack.c.b16 %v518, %v510
    %v759 = vpack.c.b16 %v519, %v511
    %v760 = vpack.c.b16 %v528, %v520
    %v761 = vpack.c.b16 %v529, %v521
    %v762 = vpack.c.b16 %v530, %v522
    %v763 = vpack.c.b16 %v531, %v523
    %v764 = vpack.c.b16 %v532, %v524
    %v765 = vpack.c.b16 %v533, %v525
    %v766 = vpack.c.b16 %v534, %v526
    %v767 = vpack.c.b16 %v535, %v527
    %v768 = vpack.c.b16 %v544, %v536
    %v769 = vpack.c.b16 %v545, %v537
    %v770 = vpack.c.b16 %v546, %v538
    %v771 = vpack.c.b16 %v547, %v539
    %v772 = vpack.c.b16 %v548, %v540
    %v773 = vpack.c.b16 %v549, %v541
    %v774 = vpack.c.b16 %v550, %v542
    %v775 = vpack.c.b16 %v551, %v543
    %v776 = vpack.c.b16 %v560, %v552
    %v777 = vpack.c.b16 %v561, %v553
    %v778 = vpack.c.b16 %v562, %v554
    %v779 = vpack.c.b16 %v563, %v555
    %v780 = vpack.c.b16 %v564, %v556
    %v781 = vpack.c.b16 %v565, %v557
    %v782 = vpack.c.b16 %v566, %v558
    %v783 = vpack.c.b16 %v567, %v559
    %v784 = vpack.c.b16 %v576, %v568
    %v785 = vpack.c.b16 %v577, %v569
    %v786 = vpack.c.b16 %v578, %v570
    %v787 = vpack.c.b16 %v579, %v571
    %v788 = vpack.c.b16 %v580, %v572
    %v789 = vpack.c.b16 %v581, %v573
    %v790 = vpack.c.b16 %v582, %v574
    %v791 = vpack.c.b16 %v583, %v575
    %v792 = vpack.c.b16 %v592, %v584
    %v793 = vpack.c.b16 %v593, %v585
    %v794 = vpack.c.b16 %v594, %v586
    %v795 = vpack.c.b16 %v595, %v587
    %v796 = vpack.c.b16 %v596, %v588
    %v797 = vpack.c.b16 %v597, %v589
    %v798 = vpack.c.b16 %v598, %v590
    %v799 = vpack.c.b16 %v599, %v591
    %v800 = vpack.c.b16 %v608, %v600
    %v801 = vpack.c.b16 %v609, %v601
    %v802 = vpack.c.b16 %v610, %v602
    %v803 = vpack.c.b16 %v611, %v603
    %v804 = vpack.c.b16 %v612, %v604
    %v805 = vpack.c.b16 %v613, %v605
    %v806 = vpack.c.b16 %v614, %v606
    %v807 = vpack.c.b16 %v615, %v607
    %v808 = vpack.c.b16 %v624, %v616
    %v809 = vpack.c.b16 %v625, %v617
    %v810 = vpack.c.b16 %v626, %v618
    %v811 = vpack.c.b16 %v627, %v619
    %v812 = vpack.c.b16 %v628, %v620
    %v813 = vpack.c.b16 %v629, %v621
    %v814 = vpack.c.b16 %v630, %v622
    %v815 = vpack.c.b16 %v631, %v623
    %v816 = vpack.c.b16 %v640, %v632
    %v817 = vpack.c.b16 %v641, %v633
    %v818 = vpack.c.b16 %v642, %v634
    %v819 = vpack.c.b16 %v643, %v635
    %v820 = vpack.c.b16 %v644, %v636
    %v821 = vpack.c.b16 %v645, %v637
    %v822 = vpack.c.b16 %v646, %v638
    %v823 = vpack.c.b16 %v647, %v639
    %v824 = vpack.c.b16 %v656, %v648
    %v825 = vpack.c.b16 %v657, %v649
    %v826 = vpack.c.b16 %v658, %v650
    %v827 = vpack.c.b16 %v659, %v651
    %v828 = vpack.c.b16 %v660, %v652
    %v829 = vpack.c.b16 %v661, %v653
    %v830 = vpack.c.b16 %v662, %v654
    %v831 = vpack.c.b16 %v663, %v655
    %v832 = vpack.c.b16 %v672, %v664
    %v833 = vpack.c.b16 %v673, %v665
    %v834 = vpack.c.b16 %v674, %v666
    %v835 = vpack.c.b16 %v675, %v667
    %v836 = vpack.c.b16 %v676, %v668
    %v837 = vpack.c.b16 %v677, %v669
    %v838 = vpack.c.b16 %v678, %v670
    %v839 = vpack.c.b16 %v679, %v671
    %v840 = vpack.c.b16 %v688, %v680
    %v841 = vpack.c.b16 %v689, %v681
    %v842 = vpack.c.b16 %v690, %v682
    %v843 = vpack.c.b16 %v691, %v683
    %v844 = vpack.c.b16 %v692, %v684
    %v845 = vpack.c.b16 %v693, %v685
    %v846 = vpack.c.b16 %v694, %v686
    %v847 = vpack.c.b16 %v695, %v687
    %v848 = vpack.c.b16 %v704, %v696
    %v849 = vpack.c.b16 %v705, %v697
    %v850 = vpack.c.b16 %v706, %v698
    %v851 = vpack.c.b16 %v707, %v699
    %v852 = vpack.c.b16 %v708, %v700
    %v853 = vpack.c.b16 %v709, %v701
    %v854 = vpack.c.b16 %v710, %v702
    %v855 = vpack.c.b16 %v711, %v703
    %v856 = vpack.c.b16 %v720, %v712
    %v857 = vpack.c.b16 %v721, %v713
    %v858 = vpack.c.b16 %v722, %v714
    %v859 = vpack.c.b16 %v723, %v715
    %v860 = vpack.c.b16 %v724, %v716
    %v861 = vpack.c.b16 %v725, %v717
    %v862 = vpack.c.b16 %v726, %v718
    %v863 = vpack.c.b16 %v727, %v719
    %v864 = vpack.c.b16 %v736, %v728
    %v865 = vpack.c.b16 %v737, %v729
    %v866 = vpack.c.b16 %v738, %v730
    %v867 = vpack.c.b16 %v739, %v731
    %v868 = vpack.c.b16 %v740, %v732
    %v869 = vpack.c.b16 %v741, %v733
    %v870 = vpack.c.b16 %v742, %v734
    %v871 = vpack.c.b16 %v743, %v735
    %1000 = vmatpush.bf16.msra.mxu0 %v800
    %1001 = vmatpush.bf16.msra.mxu0 %v792
    %1002 = vmatpush.bf16.msra.mxu0 %v784
    %1003 = vmatpush.bf16.msra.mxu0 %v776
    %1004 = vmatpush.bf16.msra.mxu0 %v768
    %1005 = vmatpush.bf16.msra.mxu0 %v760
    %1006 = vmatpush.bf16.msra.mxu0 %v752
    %1007 = vmatpush.bf16.msra.mxu0 %v744
    %1008 = vmatmul.bf16.gmra.mxu0 %v356
    %v1009 = vpop.f32.mrf.mxu0
    %v1010 = vadd.f32 %v337, %v1009
    %v1011 = vpop.f32.mrf.mxu0
    %1012 = vdwg.mxu0
    %1013 = vmatpush.bf16.msra.mxu0 %v864
    %1014 = vmatpush.bf16.msra.mxu0 %v856
    %1015 = vmatpush.bf16.msra.mxu0 %v848
    %1016 = vmatpush.bf16.msra.mxu0 %v840
    %1017 = vmatpush.bf16.msra.mxu0 %v832
    %1018 = vmatpush.bf16.msra.mxu0 %v824
    %1019 = vmatpush.bf16.msra.mxu0 %v816
    %1020 = vmatpush.bf16.msra.mxu0 %v808
    %1021 = vmatmul.bf16.gmra.mxu0 %v357
    %v1022 = vpop.f32.mrf.mxu0
    %v1023 = vadd.f32 %v1010, %v1022
    %v1024 = vpop.f32.mrf.mxu0
    %1025 = vdwg.mxu0
    %1026 = vmatpush.bf16.msra.mxu0 %v801
    %1027 = vmatpush.bf16.msra.mxu0 %v793
    %1028 = vmatpush.bf16.msra.mxu0 %v785
    %1029 = vmatpush.bf16.msra.mxu0 %v777
    %1030 = vmatpush.bf16.msra.mxu0 %v769
    %1031 = vmatpush.bf16.msra.mxu0 %v761
    %1032 = vmatpush.bf16.msra.mxu0 %v753
    %1033 = vmatpush.bf16.msra.mxu0 %v745
    %1034 = vmatmul.bf16.gmra.mxu0 %v356
    %v1035 = vpop.f32.mrf.mxu0
    %v1036 = vadd.f32 %v338, %v1035
    %v1037 = vpop.f32.mrf.mxu0
    %1038 = vdwg.mxu0
    %1039 = vmatpush.bf16.msra.mxu0 %v865
    %1040 = vmatpush.bf16.msra.mxu0 %v857
    %1041 = vmatpush.bf16.msra.mxu0 %v849
    %1042 = vmatpush.bf16.msra.mxu0 %v841
    %1043 = vmatpush.bf16.msra.mxu0 %v833
    %1044 = vmatpush.bf16.msra.mxu0 %v825
    %1045 = vmatpush.bf16.msra.mxu0 %v817
    %1046 = vmatpush.bf16.msra.mxu0 %v809
    %1047 = vmatmul.bf16.gmra.mxu0 %v357
    %v1048 = vpop.f32.mrf.mxu0
    %v1049 = vadd.f32 %v1036, %v1048
    %v1050 = vpop.f32.mrf.mxu0
    %1051 = vdwg.mxu0
    %1052 = vmatpush.bf16.msra.mxu0 %v802
    %1053 = vmatpush.bf16.msra.mxu0 %v794
    %1054 = vmatpush.bf16.msra.mxu0 %v786
    %1055 = vmatpush.bf16.msra.mxu0 %v778
    %1056 = vmatpush.bf16.msra.mxu0 %v770
    %1057 = vmatpush.bf16.msra.mxu0 %v762
    %1058 = vmatpush.bf16.msra.mxu0 %v754
    %1059 = vmatpush.bf16.msra.mxu0 %v746
    %1060 = vmatmul.bf16.gmra.mxu0 %v356
    %v1061 = vpop.f32.mrf.mxu0
    %v1062 = vadd.f32 %v339, %v1061
    %v1063 = vpop.f32.mrf.mxu0
    %1064 = vdwg.mxu0
    %1065 = vmatpush.bf16.msra.mxu0 %v866
    %1066 = vmatpush.bf16.msra.mxu0 %v858
    %1067 = vmatpush.bf16.msra.mxu0 %v850
    %1068 = vmatpush.bf16.msra.mxu0 %v842
    %1069 = vmatpush.bf16.msra.mxu0 %v834
    %1070 = vmatpush.bf16.msra.mxu0 %v826
    %1071 = vmatpush.bf16.msra.mxu0 %v818
    %1072 = vmatpush.bf16.msra.mxu0 %v810
    %1073 = vmatmul.bf16.gmra.mxu0 %v357
    %v1074 = vpop.f32.mrf.mxu0
    %v1075 = vadd.f32 %v1062, %v1074
    %v1076 = vpop.f32.mrf.mxu0
    %1077 = vdwg.mxu0
    %1078 = vmatpush.bf16.msra.mxu0 %v803
    %1079 = vmatpush.bf16.msra.mxu0 %v795
    %1080 = vmatpush.bf16.msra.mxu0 %v787
    %1081 = vmatpush.bf16.msra.mxu0 %v779
    %1082 = vmatpush.bf16.msra.mxu0 %v771
    %1083 = vmatpush.bf16.msra.mxu0 %v763
    %1084 = vmatpush.bf16.msra.mxu0 %v755
    %1085 = vmatpush.bf16.msra.mxu0 %v747
    %1086 = vmatmul.bf16.gmra.mxu0 %v356
    %v1087 = vpop.f32.mrf.mxu0
    %v1088 = vadd.f32 %v340, %v1087
    %v1089 = vpop.f32.mrf.mxu0
    %1090 = vdwg.mxu0
    %1091 = vmatpush.bf16.msra.mxu0 %v867
    %1092 = vmatpush.bf16.msra.mxu0 %v859
    %1093 = vmatpush.bf16.msra.mxu0 %v851
    %1094 = vmatpush.bf16.msra.mxu0 %v843
    %1095 = vmatpush.bf16.msra.mxu0 %v835
    %1096 = vmatpush.bf16.msra.mxu0 %v827
    %1097 = vmatpush.bf16.msra.mxu0 %v819
    %1098 = vmatpush.bf16.msra.mxu0 %v811
    %1099 = vmatmul.bf16.gmra.mxu0 %v357
    %v1100 = vpop.f32.mrf.mxu0
    %v1101 = vadd.f32 %v1088, %v1100
    %v1102 = vpop.f32.mrf.mxu0
    %1103 = vdwg.mxu0
    %1104 = vmatpush.bf16.msra.mxu0 %v804
    %1105 = vmatpush.bf16.msra.mxu0 %v796
    %1106 = vmatpush.bf16.msra.mxu0 %v788
    %1107 = vmatpush.bf16.msra.mxu0 %v780
    %1108 = vmatpush.bf16.msra.mxu0 %v772
    %1109 = vmatpush.bf16.msra.mxu0 %v764
    %1110 = vmatpush.bf16.msra.mxu0 %v756
    %1111 = vmatpush.bf16.msra.mxu0 %v748
    %1112 = vmatmul.bf16.gmra.mxu0 %v356
    %v1113 = vpop.f32.mrf.mxu0
    %v1114 = vadd.f32 %v341, %v1113
    %v1115 = vpop.f32.mrf.mxu0
    %1116 = vdwg.mxu0
    %1117 = vmatpush.bf16.msra.mxu0 %v868
    %1118 = vmatpush.bf16.msra.mxu0 %v860
    %1119 = vmatpush.bf16.msra.mxu0 %v852
    %1120 = vmatpush.bf16.msra.mxu0 %v844
    %1121 = vmatpush.bf16.msra.mxu0 %v836
    %1122 = vmatpush.bf16.msra.mxu0 %v828
    %1123 = vmatpush.bf16.msra.mxu0 %v820
    %1124 = vmatpush.bf16.msra.mxu0 %v812
    %1125 = vmatmul.bf16.gmra.mxu0 %v357
    %v1126 = vpop.f32.mrf.mxu0
    %v1127 = vadd.f32 %v1114, %v1126
    %v1128 = vpop.f32.mrf.mxu0
    %1129 = vdwg.mxu0
    %1130 = vmatpush.bf16.msra.mxu0 %v805
    %1131 = vmatpush.bf16.msra.mxu0 %v797
    %1132 = vmatpush.bf16.msra.mxu0 %v789
    %1133 = vmatpush.bf16.msra.mxu0 %v781
    %1134 = vmatpush.bf16.msra.mxu0 %v773
    %1135 = vmatpush.bf16.msra.mxu0 %v765
    %1136 = vmatpush.bf16.msra.mxu0 %v757
    %1137 = vmatpush.bf16.msra.mxu0 %v749
    %1138 = vmatmul.bf16.gmra.mxu0 %v356
    %v1139 = vpop.f32.mrf.mxu0
    %v1140 = vadd.f32 %v342, %v1139
    %v1141 = vpop.f32.mrf.mxu0
    %1142 = vdwg.mxu0
    %1143 = vmatpush.bf16.msra.mxu0 %v869
    %1144 = vmatpush.bf16.msra.mxu0 %v861
    %1145 = vmatpush.bf16.msra.mxu0 %v853
    %1146 = vmatpush.bf16.msra.mxu0 %v845
    %1147 = vmatpush.bf16.msra.mxu0 %v837
    %1148 = vmatpush.bf16.msra.mxu0 %v829
    %1149 = vmatpush.bf16.msra.mxu0 %v821
    %1150 = vmatpush.bf16.msra.mxu0 %v813
    %1151 = vmatmul.bf16.gmra.mxu0 %v357
    %v1152 = vpop.f32.mrf.mxu0
    %v1153 = vadd.f32 %v1140, %v1152
    %v1154 = vpop.f32.mrf.mxu0
    %1155 = vdwg.mxu0
    %1156 = vmatpush.bf16.msra.mxu0 %v806
    %1157 = vmatpush.bf16.msra.mxu0 %v798
    %1158 = vmatpush.bf16.msra.mxu0 %v790
    %1159 = vmatpush.bf16.msra.mxu0 %v782
    %1160 = vmatpush.bf16.msra.mxu0 %v774
    %1161 = vmatpush.bf16.msra.mxu0 %v766
    %1162 = vmatpush.bf16.msra.mxu0 %v758
    %1163 = vmatpush.bf16.msra.mxu0 %v750
    %1164 = vmatmul.bf16.gmra.mxu0 %v356
    %v1165 = vpop.f32.mrf.mxu0
    %v1166 = vadd.f32 %v343, %v1165
    %v1167 = vpop.f32.mrf.mxu0
    %1168 = vdwg.mxu0
    %1169 = vmatpush.bf16.msra.mxu0 %v870
    %1170 = vmatpush.bf16.msra.mxu0 %v862
    %1171 = vmatpush.bf16.msra.mxu0 %v854
    %1172 = vmatpush.bf16.msra.mxu0 %v846
    %1173 = vmatpush.bf16.msra.mxu0 %v838
    %1174 = vmatpush.bf16.msra.mxu0 %v830
    %1175 = vmatpush.bf16.msra.mxu0 %v822
    %1176 = vmatpush.bf16.msra.mxu0 %v814
    %1177 = vmatmul.bf16.gmra.mxu0 %v357
    %v1178 = vpop.f32.mrf.mxu0
    %v1179 = vadd.f32 %v1166, %v1178
    %v1180 = vpop.f32.mrf.mxu0
    %1181 = vdwg.mxu0
    %1182 = vmatpush.bf16.msra.mxu0 %v807
    %1183 = vmatpush.bf16.msra.mxu0 %v799
    %1184 = vmatpush.bf16.msra.mxu0 %v791
    %1185 = vmatpush.bf16.msra.mxu0 %v783
    %1186 = vmatpush.bf16.msra.mxu0 %v775
    %1187 = vmatpush.bf16.msra.mxu0 %v767
    %1188 = vmatpush.bf16.msra.mxu0 %v759
    %1189 = vmatpush.bf16.msra.mxu0 %v751
    %1190 = vmatmul.bf16.gmra.mxu0 %v356
    %v1191 = vpop.f32.mrf.mxu0
    %v1192 = vadd.f32 %v344, %v1191
    %v1193 = vpop.f32.mrf.mxu0
    %1194 = vdwg.mxu0
    %1195 = vmatpush.bf16.msra.mxu0 %v871
    %1196 = vmatpush.bf16.msra.mxu0 %v863
    %1197 = vmatpush.bf16.msra.mxu0 %v855
    %1198 = vmatpush.bf16.msra.mxu0 %v847
    %1199 = vmatpush.bf16.msra.mxu0 %v839
    %1200 = vmatpush.bf16.msra.mxu0 %v831
    %1201 = vmatpush.bf16.msra.mxu0 %v823
    %1202 = vmatpush.bf16.msra.mxu0 %v815
    %1203 = vmatmul.bf16.gmra.mxu0 %v357
    %v1204 = vpop.f32.mrf.mxu0
    %v1205 = vadd.f32 %v1192, %v1204
    %v1206 = vpop.f32.mrf.mxu0
    %1207 = vdwg.mxu0
    %v1208 = vmax.f32 %v1023, 0.0
    %v1209 = vmax.f32 %v1049, 0.0
    %v1210 = vmax.f32 %v1075, 0.0
    %v1211 = vmax.f32 %v1101, 0.0
    %v1212 = vmax.f32 %v1127, 0.0
    %v1213 = vmax.f32 %v1153, 0.0
    %v1214 = vmax.f32 %v1179, 0.0
    %v1215 = vmax.f32 %v1205, 0.0
    %v1216 = vpack.c.bf16 %v1208, %v1208
    %v1217 = vpack.c.bf16 %v1209, %v1209
    %v1218 = vpack.c.bf16 %v1210, %v1210
    %v1219 = vpack.c.bf16 %v1211, %v1211
    %v1220 = vpack.c.bf16 %v1212, %v1212
    %v1221 = vpack.c.bf16 %v1213, %v1213
    %v1222 = vpack.c.bf16 %v1214, %v1214
    %v1223 = vpack.c.bf16 %v1215, %v1215
    %v1224 = vld [vmem:[#allocation8] sm:$0xff]
    %v1225 = vld [vmem:[#allocation8 + $0x8] sm:$0xff]
    %v1226 = vld [vmem:[#allocation8 + $0x10] sm:$0xff]
    %v1227 = vld [vmem:[#allocation8 + $0x18] sm:$0xff]
    %v1228 = vld [vmem:[#allocation8 + $0x20] sm:$0xff]
    %v1229 = vld [vmem:[#allocation8 + $0x28] sm:$0xff]
    %v1230 = vld [vmem:[#allocation8 + $0x30] sm:$0xff]
    %v1231 = vld [vmem:[#allocation8 + $0x38] sm:$0xff]
    %v1232 = vld [vmem:[#allocation8 + $0x40] sm:$0xff]
    %v1233 = vld [vmem:[#allocation8 + $0x48] sm:$0xff]
    %v1234 = vld [vmem:[#allocation8 + $0x50] sm:$0xff]
    %v1235 = vld [vmem:[#allocation8 + $0x58] sm:$0xff]
    %v1236 = vld [vmem:[#allocation8 + $0x60] sm:$0xff]
    %v1237 = vld [vmem:[#allocation8 + $0x68] sm:$0xff]
    %v1238 = vld [vmem:[#allocation8 + $0x70] sm:$0xff]
    %v1239 = vld [vmem:[#allocation8 + $0x78] sm:$0xff]
    %v1240 = vld [vmem:[#allocation8 + $0x80] sm:$0xff]
    %v1241 = vld [vmem:[#allocation8 + $0x88] sm:$0xff]
    %v1242 = vld [vmem:[#allocation8 + $0x90] sm:$0xff]
    %v1243 = vld [vmem:[#allocation8 + $0x98] sm:$0xff]
    %v1244 = vld [vmem:[#allocation8 + $0xa0] sm:$0xff]
    %v1245 = vld [vmem:[#allocation8 + $0xa8] sm:$0xff]
    %v1246 = vld [vmem:[#allocation8 + $0xb0] sm:$0xff]
    %v1247 = vld [vmem:[#allocation8 + $0xb8] sm:$0xff]
    %v1248 = vld [vmem:[#allocation8 + $0xc0] sm:$0xff]
    %v1249 = vld [vmem:[#allocation8 + $0xc8] sm:$0xff]
    %v1250 = vld [vmem:[#allocation8 + $0xd0] sm:$0xff]
    %v1251 = vld [vmem:[#allocation8 + $0xd8] sm:$0xff]
    %v1252 = vld [vmem:[#allocation8 + $0xe0] sm:$0xff]
    %v1253 = vld [vmem:[#allocation8 + $0xe8] sm:$0xff]
    %v1254 = vld [vmem:[#allocation8 + $0xf0] sm:$0xff]
    %v1255 = vld [vmem:[#allocation8 + $0xf8] sm:$0xff]
    %v1256 = vld [vmem:[#allocation8 + $0x100] sm:$0xff]
    %v1257 = vld [vmem:[#allocation8 + $0x108] sm:$0xff]
    %v1258 = vld [vmem:[#allocation8 + $0x110] sm:$0xff]
    %v1259 = vld [vmem:[#allocation8 + $0x118] sm:$0xff]
    %v1260 = vld [vmem:[#allocation8 + $0x120] sm:$0xff]
    %v1261 = vld [vmem:[#allocation8 + $0x128] sm:$0xff]
    %v1262 = vld [vmem:[#allocation8 + $0x130] sm:$0xff]
    %v1263 = vld [vmem:[#allocation8 + $0x138] sm:$0xff]
    %v1264 = vld [vmem:[#allocation8 + $0x140] sm:$0xff]
    %v1265 = vld [vmem:[#allocation8 + $0x148] sm:$0xff]
    %v1266 = vld [vmem:[#allocation8 + $0x150] sm:$0xff]
    %v1267 = vld [vmem:[#allocation8 + $0x158] sm:$0xff]
    %v1268 = vld [vmem:[#allocation8 + $0x160] sm:$0xff]
    %v1269 = vld [vmem:[#allocation8 + $0x168] sm:$0xff]
    %v1270 = vld [vmem:[#allocation8 + $0x170] sm:$0xff]
    %v1271 = vld [vmem:[#allocation8 + $0x178] sm:$0xff]
    %v1272 = vld [vmem:[#allocation8 + $0x180] sm:$0xff]
    %v1273 = vld [vmem:[#allocation8 + $0x188] sm:$0xff]
    %v1274 = vld [vmem:[#allocation8 + $0x190] sm:$0xff]
    %v1275 = vld [vmem:[#allocation8 + $0x198] sm:$0xff]
    %v1276 = vld [vmem:[#allocation8 + $0x1a0] sm:$0xff]
    %v1277 = vld [vmem:[#allocation8 + $0x1a8] sm:$0xff]
    %v1278 = vld [vmem:[#allocation8 + $0x1b0] sm:$0xff]
    %v1279 = vld [vmem:[#allocation8 + $0x1b8] sm:$0xff]
    %v1280 = vld [vmem:[#allocation8 + $0x1c0] sm:$0xff]
    %v1281 = vld [vmem:[#allocation8 + $0x1c8] sm:$0xff]
    %v1282 = vld [vmem:[#allocation8 + $0x1d0] sm:$0xff]
    %v1283 = vld [vmem:[#allocation8 + $0x1d8] sm:$0xff]
    %v1284 = vld [vmem:[#allocation8 + $0x1e0] sm:$0xff]
    %v1285 = vld [vmem:[#allocation8 + $0x1e8] sm:$0xff]
    %v1286 = vld [vmem:[#allocation8 + $0x1f0] sm:$0xff]
    %v1287 = vld [vmem:[#allocation8 + $0x1f8] sm:$0xff]
    %v1288 = vld [vmem:[#allocation8 + $0x200] sm:$0xff]
    %v1289 = vld [vmem:[#allocation8 + $0x208] sm:$0xff]
    %v1290 = vld [vmem:[#allocation8 + $0x210] sm:$0xff]
    %v1291 = vld [vmem:[#allocation8 + $0x218] sm:$0xff]
    %v1292 = vld [vmem:[#allocation8 + $0x220] sm:$0xff]
    %v1293 = vld [vmem:[#allocation8 + $0x228] sm:$0xff]
    %v1294 = vld [vmem:[#allocation8 + $0x230] sm:$0xff]
    %v1295 = vld [vmem:[#allocation8 + $0x238] sm:$0xff]
    %v1296 = vld [vmem:[#allocation8 + $0x240] sm:$0xff]
    %v1297 = vld [vmem:[#allocation8 + $0x248] sm:$0xff]
    %v1298 = vld [vmem:[#allocation8 + $0x250] sm:$0xff]
    %v1299 = vld [vmem:[#allocation8 + $0x258] sm:$0xff]
    %v1300 = vld [vmem:[#allocation8 + $0x260] sm:$0xff]
    %v1301 = vld [vmem:[#allocation8 + $0x268] sm:$0xff]
    %v1302 = vld [vmem:[#allocation8 + $0x270] sm:$0xff]
    %v1303 = vld [vmem:[#allocation8 + $0x278] sm:$0xff]
    %v1304 = vld [vmem:[#allocation8 + $0x280] sm:$0xff]
    %v1305 = vld [vmem:[#allocation8 + $0x288] sm:$0xff]
    %v1306 = vld [vmem:[#allocation8 + $0x290] sm:$0xff]
    %v1307 = vld [vmem:[#allocation8 + $0x298] sm:$0xff]
    %v1308 = vld [vmem:[#allocation8 + $0x2a0] sm:$0xff]
    %v1309 = vld [vmem:[#allocation8 + $0x2a8] sm:$0xff]
    %v1310 = vld [vmem:[#allocation8 + $0x2b0] sm:$0xff]
    %v1311 = vld [vmem:[#allocation8 + $0x2b8] sm:$0xff]
    %v1312 = vld [vmem:[#allocation8 + $0x2c0] sm:$0xff]
    %v1313 = vld [vmem:[#allocation8 + $0x2c8] sm:$0xff]
    %v1314 = vld [vmem:[#allocation8 + $0x2d0] sm:$0xff]
    %v1315 = vld [vmem:[#allocation8 + $0x2d8] sm:$0xff]
    %v1316 = vld [vmem:[#allocation8 + $0x2e0] sm:$0xff]
    %v1317 = vld [vmem:[#allocation8 + $0x2e8] sm:$0xff]
    %v1318 = vld [vmem:[#allocation8 + $0x2f0] sm:$0xff]
    %v1319 = vld [vmem:[#allocation8 + $0x2f8] sm:$0xff]
    %v1320 = vld [vmem:[#allocation8 + $0x300] sm:$0xff]
    %v1321 = vld [vmem:[#allocation8 + $0x308] sm:$0xff]
    %v1322 = vld [vmem:[#allocation8 + $0x310] sm:$0xff]
    %v1323 = vld [vmem:[#allocation8 + $0x318] sm:$0xff]
    %v1324 = vld [vmem:[#allocation8 + $0x320] sm:$0xff]
    %v1325 = vld [vmem:[#allocation8 + $0x328] sm:$0xff]
    %v1326 = vld [vmem:[#allocation8 + $0x330] sm:$0xff]
    %v1327 = vld [vmem:[#allocation8 + $0x338] sm:$0xff]
    %v1328 = vld [vmem:[#allocation8 + $0x340] sm:$0xff]
    %v1329 = vld [vmem:[#allocation8 + $0x348] sm:$0xff]
    %v1330 = vld [vmem:[#allocation8 + $0x350] sm:$0xff]
    %v1331 = vld [vmem:[#allocation8 + $0x358] sm:$0xff]
    %v1332 = vld [vmem:[#allocation8 + $0x360] sm:$0xff]
    %v1333 = vld [vmem:[#allocation8 + $0x368] sm:$0xff]
    %v1334 = vld [vmem:[#allocation8 + $0x370] sm:$0xff]
    %v1335 = vld [vmem:[#allocation8 + $0x378] sm:$0xff]
    %v1336 = vld [vmem:[#allocation8 + $0x380] sm:$0xff]
    %v1337 = vld [vmem:[#allocation8 + $0x388] sm:$0xff]
    %v1338 = vld [vmem:[#allocation8 + $0x390] sm:$0xff]
    %v1339 = vld [vmem:[#allocation8 + $0x398] sm:$0xff]
    %v1340 = vld [vmem:[#allocation8 + $0x3a0] sm:$0xff]
    %v1341 = vld [vmem:[#allocation8 + $0x3a8] sm:$0xff]
    %v1342 = vld [vmem:[#allocation8 + $0x3b0] sm:$0xff]
    %v1343 = vld [vmem:[#allocation8 + $0x3b8] sm:$0xff]
    %v1344 = vld [vmem:[#allocation8 + $0x3c0] sm:$0xff]
    %v1345 = vld [vmem:[#allocation8 + $0x3c8] sm:$0xff]
    %v1346 = vld [vmem:[#allocation8 + $0x3d0] sm:$0xff]
    %v1347 = vld [vmem:[#allocation8 + $0x3d8] sm:$0xff]
    %v1348 = vld [vmem:[#allocation8 + $0x3e0] sm:$0xff]
    %v1349 = vld [vmem:[#allocation8 + $0x3e8] sm:$0xff]
    %v1350 = vld [vmem:[#allocation8 + $0x3f0] sm:$0xff]
    %v1351 = vld [vmem:[#allocation8 + $0x3f8] sm:$0xff]
    %v1352 = vld [vmem:[#allocation8 + $0x400] sm:$0xff]
    %v1353 = vld [vmem:[#allocation8 + $0x408] sm:$0xff]
    %v1354 = vld [vmem:[#allocation8 + $0x410] sm:$0xff]
    %v1355 = vld [vmem:[#allocation8 + $0x418] sm:$0xff]
    %v1356 = vld [vmem:[#allocation8 + $0x420] sm:$0xff]
    %v1357 = vld [vmem:[#allocation8 + $0x428] sm:$0xff]
    %v1358 = vld [vmem:[#allocation8 + $0x430] sm:$0xff]
    %v1359 = vld [vmem:[#allocation8 + $0x438] sm:$0xff]
    %v1360 = vld [vmem:[#allocation8 + $0x440] sm:$0xff]
    %v1361 = vld [vmem:[#allocation8 + $0x448] sm:$0xff]
    %v1362 = vld [vmem:[#allocation8 + $0x450] sm:$0xff]
    %v1363 = vld [vmem:[#allocation8 + $0x458] sm:$0xff]
    %v1364 = vld [vmem:[#allocation8 + $0x460] sm:$0xff]
    %v1365 = vld [vmem:[#allocation8 + $0x468] sm:$0xff]
    %v1366 = vld [vmem:[#allocation8 + $0x470] sm:$0xff]
    %v1367 = vld [vmem:[#allocation8 + $0x478] sm:$0xff]
    %v1368 = vld [vmem:[#allocation8 + $0x480] sm:$0xff]
    %v1369 = vld [vmem:[#allocation8 + $0x488] sm:$0xff]
    %v1370 = vld [vmem:[#allocation8 + $0x490] sm:$0xff]
    %v1371 = vld [vmem:[#allocation8 + $0x498] sm:$0xff]
    %v1372 = vld [vmem:[#allocation8 + $0x4a0] sm:$0xff]
    %v1373 = vld [vmem:[#allocation8 + $0x4a8] sm:$0xff]
    %v1374 = vld [vmem:[#allocation8 + $0x4b0] sm:$0xff]
    %v1375 = vld [vmem:[#allocation8 + $0x4b8] sm:$0xff]
    %v1376 = vld [vmem:[#allocation8 + $0x4c0] sm:$0xff]
    %v1377 = vld [vmem:[#allocation8 + $0x4c8] sm:$0xff]
    %v1378 = vld [vmem:[#allocation8 + $0x4d0] sm:$0xff]
    %v1379 = vld [vmem:[#allocation8 + $0x4d8] sm:$0xff]
    %v1380 = vld [vmem:[#allocation8 + $0x4e0] sm:$0xff]
    %v1381 = vld [vmem:[#allocation8 + $0x4e8] sm:$0xff]
    %v1382 = vld [vmem:[#allocation8 + $0x4f0] sm:$0xff]
    %v1383 = vld [vmem:[#allocation8 + $0x4f8] sm:$0xff]
    %v1384 = vld [vmem:[#allocation8 + $0x500] sm:$0xff]
    %v1385 = vld [vmem:[#allocation8 + $0x508] sm:$0xff]
    %v1386 = vld [vmem:[#allocation8 + $0x510] sm:$0xff]
    %v1387 = vld [vmem:[#allocation8 + $0x518] sm:$0xff]
    %v1388 = vld [vmem:[#allocation8 + $0x520] sm:$0xff]
    %v1389 = vld [vmem:[#allocation8 + $0x528] sm:$0xff]
    %v1390 = vld [vmem:[#allocation8 + $0x530] sm:$0xff]
    %v1391 = vld [vmem:[#allocation8 + $0x538] sm:$0xff]
    %v1392 = vld [vmem:[#allocation8 + $0x540] sm:$0xff]
    %v1393 = vld [vmem:[#allocation8 + $0x548] sm:$0xff]
    %v1394 = vld [vmem:[#allocation8 + $0x550] sm:$0xff]
    %v1395 = vld [vmem:[#allocation8 + $0x558] sm:$0xff]
    %v1396 = vld [vmem:[#allocation8 + $0x560] sm:$0xff]
    %v1397 = vld [vmem:[#allocation8 + $0x568] sm:$0xff]
    %v1398 = vld [vmem:[#allocation8 + $0x570] sm:$0xff]
    %v1399 = vld [vmem:[#allocation8 + $0x578] sm:$0xff]
    %v1400 = vld [vmem:[#allocation8 + $0x580] sm:$0xff]
    %v1401 = vld [vmem:[#allocation8 + $0x588] sm:$0xff]
    %v1402 = vld [vmem:[#allocation8 + $0x590] sm:$0xff]
    %v1403 = vld [vmem:[#allocation8 + $0x598] sm:$0xff]
    %v1404 = vld [vmem:[#allocation8 + $0x5a0] sm:$0xff]
    %v1405 = vld [vmem:[#allocation8 + $0x5a8] sm:$0xff]
    %v1406 = vld [vmem:[#allocation8 + $0x5b0] sm:$0xff]
    %v1407 = vld [vmem:[#allocation8 + $0x5b8] sm:$0xff]
    %v1408 = vld [vmem:[#allocation8 + $0x5c0] sm:$0xff]
    %v1409 = vld [vmem:[#allocation8 + $0x5c8] sm:$0xff]
    %v1410 = vld [vmem:[#allocation8 + $0x5d0] sm:$0xff]
    %v1411 = vld [vmem:[#allocation8 + $0x5d8] sm:$0xff]
    %v1412 = vld [vmem:[#allocation8 + $0x5e0] sm:$0xff]
    %v1413 = vld [vmem:[#allocation8 + $0x5e8] sm:$0xff]
    %v1414 = vld [vmem:[#allocation8 + $0x5f0] sm:$0xff]
    %v1415 = vld [vmem:[#allocation8 + $0x5f8] sm:$0xff]
    %v1416 = vld [vmem:[#allocation8 + $0x600] sm:$0xff]
    %v1417 = vld [vmem:[#allocation8 + $0x608] sm:$0xff]
    %v1418 = vld [vmem:[#allocation8 + $0x610] sm:$0xff]
    %v1419 = vld [vmem:[#allocation8 + $0x618] sm:$0xff]
    %v1420 = vld [vmem:[#allocation8 + $0x620] sm:$0xff]
    %v1421 = vld [vmem:[#allocation8 + $0x628] sm:$0xff]
    %v1422 = vld [vmem:[#allocation8 + $0x630] sm:$0xff]
    %v1423 = vld [vmem:[#allocation8 + $0x638] sm:$0xff]
    %v1424 = vld [vmem:[#allocation8 + $0x640] sm:$0xff]
    %v1425 = vld [vmem:[#allocation8 + $0x648] sm:$0xff]
    %v1426 = vld [vmem:[#allocation8 + $0x650] sm:$0xff]
    %v1427 = vld [vmem:[#allocation8 + $0x658] sm:$0xff]
    %v1428 = vld [vmem:[#allocation8 + $0x660] sm:$0xff]
    %v1429 = vld [vmem:[#allocation8 + $0x668] sm:$0xff]
    %v1430 = vld [vmem:[#allocation8 + $0x670] sm:$0xff]
    %v1431 = vld [vmem:[#allocation8 + $0x678] sm:$0xff]
    %v1432 = vld [vmem:[#allocation8 + $0x680] sm:$0xff]
    %v1433 = vld [vmem:[#allocation8 + $0x688] sm:$0xff]
    %v1434 = vld [vmem:[#allocation8 + $0x690] sm:$0xff]
    %v1435 = vld [vmem:[#allocation8 + $0x698] sm:$0xff]
    %v1436 = vld [vmem:[#allocation8 + $0x6a0] sm:$0xff]
    %v1437 = vld [vmem:[#allocation8 + $0x6a8] sm:$0xff]
    %v1438 = vld [vmem:[#allocation8 + $0x6b0] sm:$0xff]
    %v1439 = vld [vmem:[#allocation8 + $0x6b8] sm:$0xff]
    %v1440 = vld [vmem:[#allocation8 + $0x6c0] sm:$0xff]
    %v1441 = vld [vmem:[#allocation8 + $0x6c8] sm:$0xff]
    %v1442 = vld [vmem:[#allocation8 + $0x6d0] sm:$0xff]
    %v1443 = vld [vmem:[#allocation8 + $0x6d8] sm:$0xff]
    %v1444 = vld [vmem:[#allocation8 + $0x6e0] sm:$0xff]
    %v1445 = vld [vmem:[#allocation8 + $0x6e8] sm:$0xff]
    %v1446 = vld [vmem:[#allocation8 + $0x6f0] sm:$0xff]
    %v1447 = vld [vmem:[#allocation8 + $0x6f8] sm:$0xff]
    %v1448 = vld [vmem:[#allocation8 + $0x700] sm:$0xff]
    %v1449 = vld [vmem:[#allocation8 + $0x708] sm:$0xff]
    %v1450 = vld [vmem:[#allocation8 + $0x710] sm:$0xff]
    %v1451 = vld [vmem:[#allocation8 + $0x718] sm:$0xff]
    %v1452 = vld [vmem:[#allocation8 + $0x720] sm:$0xff]
    %v1453 = vld [vmem:[#allocation8 + $0x728] sm:$0xff]
    %v1454 = vld [vmem:[#allocation8 + $0x730] sm:$0xff]
    %v1455 = vld [vmem:[#allocation8 + $0x738] sm:$0xff]
    %v1456 = vld [vmem:[#allocation8 + $0x740] sm:$0xff]
    %v1457 = vld [vmem:[#allocation8 + $0x748] sm:$0xff]
    %v1458 = vld [vmem:[#allocation8 + $0x750] sm:$0xff]
    %v1459 = vld [vmem:[#allocation8 + $0x758] sm:$0xff]
    %v1460 = vld [vmem:[#allocation8 + $0x760] sm:$0xff]
    %v1461 = vld [vmem:[#allocation8 + $0x768] sm:$0xff]
    %v1462 = vld [vmem:[#allocation8 + $0x770] sm:$0xff]
    %v1463 = vld [vmem:[#allocation8 + $0x778] sm:$0xff]
    %v1464 = vld [vmem:[#allocation8 + $0x780] sm:$0xff]
    %v1465 = vld [vmem:[#allocation8 + $0x788] sm:$0xff]
    %v1466 = vld [vmem:[#allocation8 + $0x790] sm:$0xff]
    %v1467 = vld [vmem:[#allocation8 + $0x798] sm:$0xff]
    %v1468 = vld [vmem:[#allocation8 + $0x7a0] sm:$0xff]
    %v1469 = vld [vmem:[#allocation8 + $0x7a8] sm:$0xff]
    %v1470 = vld [vmem:[#allocation8 + $0x7b0] sm:$0xff]
    %v1471 = vld [vmem:[#allocation8 + $0x7b8] sm:$0xff]
    %v1472 = vld [vmem:[#allocation8 + $0x7c0] sm:$0xff]
    %v1473 = vld [vmem:[#allocation8 + $0x7c8] sm:$0xff]
    %v1474 = vld [vmem:[#allocation8 + $0x7d0] sm:$0xff]
    %v1475 = vld [vmem:[#allocation8 + $0x7d8] sm:$0xff]
    %v1476 = vld [vmem:[#allocation8 + $0x7e0] sm:$0xff]
    %v1477 = vld [vmem:[#allocation8 + $0x7e8] sm:$0xff]
    %v1478 = vld [vmem:[#allocation8 + $0x7f0] sm:$0xff]
    %v1479 = vld [vmem:[#allocation8 + $0x7f8] sm:$0xff]
    %v1480 = vld [vmem:[#allocation10] sm:$0xf]
    %v1482 = vperm.slane %v1480, 0
    %v1483 = vperm.slane %v1480, 1
    %v1484 = vperm.slane %v1480, 2
    %v1485 = vperm.slane %v1480, 3
    %v1746 = vunpack.c.l.b16 %v1224
    %v1747 = vunpack.c.h.b16 %v1224
    %v1748 = vunpack.c.l.b16 %v1225
    %v1749 = vunpack.c.h.b16 %v1225
    %v1750 = vunpack.c.l.b16 %v1226
    %v1751 = vunpack.c.h.b16 %v1226
    %v1752 = vunpack.c.l.b16 %v1227
    %v1753 = vunpack.c.h.b16 %v1227
    %v1754 = vunpack.c.l.b16 %v1228
    %v1755 = vunpack.c.h.b16 %v1228
    %v1756 = vunpack.c.l.b16 %v1229
    %v1757 = vunpack.c.h.b16 %v1229
    %v1758 = vunpack.c.l.b16 %v1230
    %v1759 = vunpack.c.h.b16 %v1230
    %v1760 = vunpack.c.l.b16 %v1231
    %v1761 = vunpack.c.h.b16 %v1231
    %v1762 = vunpack.c.l.b16 %v1232
    %v1763 = vunpack.c.h.b16 %v1232
    %v1764 = vunpack.c.l.b16 %v1233
    %v1765 = vunpack.c.h.b16 %v1233
    %v1766 = vunpack.c.l.b16 %v1234
    %v1767 = vunpack.c.h.b16 %v1234
    %v1768 = vunpack.c.l.b16 %v1235
    %v1769 = vunpack.c.h.b16 %v1235
    %v1770 = vunpack.c.l.b16 %v1236
    %v1771 = vunpack.c.h.b16 %v1236
    %v1772 = vunpack.c.l.b16 %v1237
    %v1773 = vunpack.c.h.b16 %v1237
    %v1774 = vunpack.c.l.b16 %v1238
    %v1775 = vunpack.c.h.b16 %v1238
    %v1776 = vunpack.c.l.b16 %v1239
    %v1777 = vunpack.c.h.b16 %v1239
    %v1778 = vunpack.c.l.b16 %v1240
    %v1779 = vunpack.c.h.b16 %v1240
    %v1780 = vunpack.c.l.b16 %v1241
    %v1781 = vunpack.c.h.b16 %v1241
    %v1782 = vunpack.c.l.b16 %v1242
    %v1783 = vunpack.c.h.b16 %v1242
    %v1784 = vunpack.c.l.b16 %v1243
    %v1785 = vunpack.c.h.b16 %v1243
    %v1786 = vunpack.c.l.b16 %v1244
    %v1787 = vunpack.c.h.b16 %v1244
    %v1788 = vunpack.c.l.b16 %v1245
    %v1789 = vunpack.c.h.b16 %v1245
    %v1790 = vunpack.c.l.b16 %v1246
    %v1791 = vunpack.c.h.b16 %v1246
    %v1792 = vunpack.c.l.b16 %v1247
    %v1793 = vunpack.c.h.b16 %v1247
    %v1794 = vunpack.c.l.b16 %v1248
    %v1795 = vunpack.c.h.b16 %v1248
    %v1796 = vunpack.c.l.b16 %v1249
    %v1797 = vunpack.c.h.b16 %v1249
    %v1798 = vunpack.c.l.b16 %v1250
    %v1799 = vunpack.c.h.b16 %v1250
    %v1800 = vunpack.c.l.b16 %v1251
    %v1801 = vunpack.c.h.b16 %v1251
    %v1802 = vunpack.c.l.b16 %v1252
    %v1803 = vunpack.c.h.b16 %v1252
    %v1804 = vunpack.c.l.b16 %v1253
    %v1805 = vunpack.c.h.b16 %v1253
    %v1806 = vunpack.c.l.b16 %v1254
    %v1807 = vunpack.c.h.b16 %v1254
    %v1808 = vunpack.c.l.b16 %v1255
    %v1809 = vunpack.c.h.b16 %v1255
    %v1810 = vunpack.c.l.b16 %v1256
    %v1811 = vunpack.c.h.b16 %v1256
    %v1812 = vunpack.c.l.b16 %v1257
    %v1813 = vunpack.c.h.b16 %v1257
    %v1814 = vunpack.c.l.b16 %v1258
    %v1815 = vunpack.c.h.b16 %v1258
    %v1816 = vunpack.c.l.b16 %v1259
    %v1817 = vunpack.c.h.b16 %v1259
    %v1818 = vunpack.c.l.b16 %v1260
    %v1819 = vunpack.c.h.b16 %v1260
    %v1820 = vunpack.c.l.b16 %v1261
    %v1821 = vunpack.c.h.b16 %v1261
    %v1822 = vunpack.c.l.b16 %v1262
    %v1823 = vunpack.c.h.b16 %v1262
    %v1824 = vunpack.c.l.b16 %v1263
    %v1825 = vunpack.c.h.b16 %v1263
    %v1826 = vunpack.c.l.b16 %v1264
    %v1827 = vunpack.c.h.b16 %v1264
    %v1828 = vunpack.c.l.b16 %v1265
    %v1829 = vunpack.c.h.b16 %v1265
    %v1830 = vunpack.c.l.b16 %v1266
    %v1831 = vunpack.c.h.b16 %v1266
    %v1832 = vunpack.c.l.b16 %v1267
    %v1833 = vunpack.c.h.b16 %v1267
    %v1834 = vunpack.c.l.b16 %v1268
    %v1835 = vunpack.c.h.b16 %v1268
    %v1836 = vunpack.c.l.b16 %v1269
    %v1837 = vunpack.c.h.b16 %v1269
    %v1838 = vunpack.c.l.b16 %v1270
    %v1839 = vunpack.c.h.b16 %v1270
    %v1840 = vunpack.c.l.b16 %v1271
    %v1841 = vunpack.c.h.b16 %v1271
    %v1842 = vunpack.c.l.b16 %v1272
    %v1843 = vunpack.c.h.b16 %v1272
    %v1844 = vunpack.c.l.b16 %v1273
    %v1845 = vunpack.c.h.b16 %v1273
    %v1846 = vunpack.c.l.b16 %v1274
    %v1847 = vunpack.c.h.b16 %v1274
    %v1848 = vunpack.c.l.b16 %v1275
    %v1849 = vunpack.c.h.b16 %v1275
    %v1850 = vunpack.c.l.b16 %v1276
    %v1851 = vunpack.c.h.b16 %v1276
    %v1852 = vunpack.c.l.b16 %v1277
    %v1853 = vunpack.c.h.b16 %v1277
    %v1854 = vunpack.c.l.b16 %v1278
    %v1855 = vunpack.c.h.b16 %v1278
    %v1856 = vunpack.c.l.b16 %v1279
    %v1857 = vunpack.c.h.b16 %v1279
    %v1858 = vunpack.c.l.b16 %v1280
    %v1859 = vunpack.c.h.b16 %v1280
    %v1860 = vunpack.c.l.b16 %v1281
    %v1861 = vunpack.c.h.b16 %v1281
    %v1862 = vunpack.c.l.b16 %v1282
    %v1863 = vunpack.c.h.b16 %v1282
    %v1864 = vunpack.c.l.b16 %v1283
    %v1865 = vunpack.c.h.b16 %v1283
    %v1866 = vunpack.c.l.b16 %v1284
    %v1867 = vunpack.c.h.b16 %v1284
    %v1868 = vunpack.c.l.b16 %v1285
    %v1869 = vunpack.c.h.b16 %v1285
    %v1870 = vunpack.c.l.b16 %v1286
    %v1871 = vunpack.c.h.b16 %v1286
    %v1872 = vunpack.c.l.b16 %v1287
    %v1873 = vunpack.c.h.b16 %v1287
    %v1874 = vunpack.c.l.b16 %v1288
    %v1875 = vunpack.c.h.b16 %v1288
    %v1876 = vunpack.c.l.b16 %v1289
    %v1877 = vunpack.c.h.b16 %v1289
    %v1878 = vunpack.c.l.b16 %v1290
    %v1879 = vunpack.c.h.b16 %v1290
    %v1880 = vunpack.c.l.b16 %v1291
    %v1881 = vunpack.c.h.b16 %v1291
    %v1882 = vunpack.c.l.b16 %v1292
    %v1883 = vunpack.c.h.b16 %v1292
    %v1884 = vunpack.c.l.b16 %v1293
    %v1885 = vunpack.c.h.b16 %v1293
    %v1886 = vunpack.c.l.b16 %v1294
    %v1887 = vunpack.c.h.b16 %v1294
    %v1888 = vunpack.c.l.b16 %v1295
    %v1889 = vunpack.c.h.b16 %v1295
    %v1890 = vunpack.c.l.b16 %v1296
    %v1891 = vunpack.c.h.b16 %v1296
    %v1892 = vunpack.c.l.b16 %v1297
    %v1893 = vunpack.c.h.b16 %v1297
    %v1894 = vunpack.c.l.b16 %v1298
    %v1895 = vunpack.c.h.b16 %v1298
    %v1896 = vunpack.c.l.b16 %v1299
    %v1897 = vunpack.c.h.b16 %v1299
    %v1898 = vunpack.c.l.b16 %v1300
    %v1899 = vunpack.c.h.b16 %v1300
    %v1900 = vunpack.c.l.b16 %v1301
    %v1901 = vunpack.c.h.b16 %v1301
    %v1902 = vunpack.c.l.b16 %v1302
    %v1903 = vunpack.c.h.b16 %v1302
    %v1904 = vunpack.c.l.b16 %v1303
    %v1905 = vunpack.c.h.b16 %v1303
    %v1906 = vunpack.c.l.b16 %v1304
    %v1907 = vunpack.c.h.b16 %v1304
    %v1908 = vunpack.c.l.b16 %v1305
    %v1909 = vunpack.c.h.b16 %v1305
    %v1910 = vunpack.c.l.b16 %v1306
    %v1911 = vunpack.c.h.b16 %v1306
    %v1912 = vunpack.c.l.b16 %v1307
    %v1913 = vunpack.c.h.b16 %v1307
    %v1914 = vunpack.c.l.b16 %v1308
    %v1915 = vunpack.c.h.b16 %v1308
    %v1916 = vunpack.c.l.b16 %v1309
    %v1917 = vunpack.c.h.b16 %v1309
    %v1918 = vunpack.c.l.b16 %v1310
    %v1919 = vunpack.c.h.b16 %v1310
    %v1920 = vunpack.c.l.b16 %v1311
    %v1921 = vunpack.c.h.b16 %v1311
    %v1922 = vunpack.c.l.b16 %v1312
    %v1923 = vunpack.c.h.b16 %v1312
    %v1924 = vunpack.c.l.b16 %v1313
    %v1925 = vunpack.c.h.b16 %v1313
    %v1926 = vunpack.c.l.b16 %v1314
    %v1927 = vunpack.c.h.b16 %v1314
    %v1928 = vunpack.c.l.b16 %v1315
    %v1929 = vunpack.c.h.b16 %v1315
    %v1930 = vunpack.c.l.b16 %v1316
    %v1931 = vunpack.c.h.b16 %v1316
    %v1932 = vunpack.c.l.b16 %v1317
    %v1933 = vunpack.c.h.b16 %v1317
    %v1934 = vunpack.c.l.b16 %v1318
    %v1935 = vunpack.c.h.b16 %v1318
    %v1936 = vunpack.c.l.b16 %v1319
    %v1937 = vunpack.c.h.b16 %v1319
    %v1938 = vunpack.c.l.b16 %v1320
    %v1939 = vunpack.c.h.b16 %v1320
    %v1940 = vunpack.c.l.b16 %v1321
    %v1941 = vunpack.c.h.b16 %v1321
    %v1942 = vunpack.c.l.b16 %v1322
    %v1943 = vunpack.c.h.b16 %v1322
    %v1944 = vunpack.c.l.b16 %v1323
    %v1945 = vunpack.c.h.b16 %v1323
    %v1946 = vunpack.c.l.b16 %v1324
    %v1947 = vunpack.c.h.b16 %v1324
    %v1948 = vunpack.c.l.b16 %v1325
    %v1949 = vunpack.c.h.b16 %v1325
    %v1950 = vunpack.c.l.b16 %v1326
    %v1951 = vunpack.c.h.b16 %v1326
    %v1952 = vunpack.c.l.b16 %v1327
    %v1953 = vunpack.c.h.b16 %v1327
    %v1954 = vunpack.c.l.b16 %v1328
    %v1955 = vunpack.c.h.b16 %v1328
    %v1956 = vunpack.c.l.b16 %v1329
    %v1957 = vunpack.c.h.b16 %v1329
    %v1958 = vunpack.c.l.b16 %v1330
    %v1959 = vunpack.c.h.b16 %v1330
    %v1960 = vunpack.c.l.b16 %v1331
    %v1961 = vunpack.c.h.b16 %v1331
    %v1962 = vunpack.c.l.b16 %v1332
    %v1963 = vunpack.c.h.b16 %v1332
    %v1964 = vunpack.c.l.b16 %v1333
    %v1965 = vunpack.c.h.b16 %v1333
    %v1966 = vunpack.c.l.b16 %v1334
    %v1967 = vunpack.c.h.b16 %v1334
    %v1968 = vunpack.c.l.b16 %v1335
    %v1969 = vunpack.c.h.b16 %v1335
    %v1970 = vunpack.c.l.b16 %v1336
    %v1971 = vunpack.c.h.b16 %v1336
    %v1972 = vunpack.c.l.b16 %v1337
    %v1973 = vunpack.c.h.b16 %v1337
    %v1974 = vunpack.c.l.b16 %v1338
    %v1975 = vunpack.c.h.b16 %v1338
    %v1976 = vunpack.c.l.b16 %v1339
    %v1977 = vunpack.c.h.b16 %v1339
    %v1978 = vunpack.c.l.b16 %v1340
    %v1979 = vunpack.c.h.b16 %v1340
    %v1980 = vunpack.c.l.b16 %v1341
    %v1981 = vunpack.c.h.b16 %v1341
    %v1982 = vunpack.c.l.b16 %v1342
    %v1983 = vunpack.c.h.b16 %v1342
    %v1984 = vunpack.c.l.b16 %v1343
    %v1985 = vunpack.c.h.b16 %v1343
    %v1986 = vunpack.c.l.b16 %v1344
    %v1987 = vunpack.c.h.b16 %v1344
    %v1988 = vunpack.c.l.b16 %v1345
    %v1989 = vunpack.c.h.b16 %v1345
    %v1990 = vunpack.c.l.b16 %v1346
    %v1991 = vunpack.c.h.b16 %v1346
    %v1992 = vunpack.c.l.b16 %v1347
    %v1993 = vunpack.c.h.b16 %v1347
    %v1994 = vunpack.c.l.b16 %v1348
    %v1995 = vunpack.c.h.b16 %v1348
    %v1996 = vunpack.c.l.b16 %v1349
    %v1997 = vunpack.c.h.b16 %v1349
    %v1998 = vunpack.c.l.b16 %v1350
    %v1999 = vunpack.c.h.b16 %v1350
    %v2000 = vunpack.c.l.b16 %v1351
    %v2001 = vunpack.c.h.b16 %v1351
    %v2002 = vunpack.c.l.b16 %v1352
    %v2003 = vunpack.c.h.b16 %v1352
    %v2004 = vunpack.c.l.b16 %v1353
    %v2005 = vunpack.c.h.b16 %v1353
    %v2006 = vunpack.c.l.b16 %v1354
    %v2007 = vunpack.c.h.b16 %v1354
    %v2008 = vunpack.c.l.b16 %v1355
    %v2009 = vunpack.c.h.b16 %v1355
    %v2010 = vunpack.c.l.b16 %v1356
    %v2011 = vunpack.c.h.b16 %v1356
    %v2012 = vunpack.c.l.b16 %v1357
    %v2013 = vunpack.c.h.b16 %v1357
    %v2014 = vunpack.c.l.b16 %v1358
    %v2015 = vunpack.c.h.b16 %v1358
    %v2016 = vunpack.c.l.b16 %v1359
    %v2017 = vunpack.c.h.b16 %v1359
    %v2018 = vunpack.c.l.b16 %v1360
    %v2019 = vunpack.c.h.b16 %v1360
    %v2020 = vunpack.c.l.b16 %v1361
    %v2021 = vunpack.c.h.b16 %v1361
    %v2022 = vunpack.c.l.b16 %v1362
    %v2023 = vunpack.c.h.b16 %v1362
    %v2024 = vunpack.c.l.b16 %v1363
    %v2025 = vunpack.c.h.b16 %v1363
    %v2026 = vunpack.c.l.b16 %v1364
    %v2027 = vunpack.c.h.b16 %v1364
    %v2028 = vunpack.c.l.b16 %v1365
    %v2029 = vunpack.c.h.b16 %v1365
    %v2030 = vunpack.c.l.b16 %v1366
    %v2031 = vunpack.c.h.b16 %v1366
    %v2032 = vunpack.c.l.b16 %v1367
    %v2033 = vunpack.c.h.b16 %v1367
    %v2034 = vunpack.c.l.b16 %v1368
    %v2035 = vunpack.c.h.b16 %v1368
    %v2036 = vunpack.c.l.b16 %v1369
    %v2037 = vunpack.c.h.b16 %v1369
    %v2038 = vunpack.c.l.b16 %v1370
    %v2039 = vunpack.c.h.b16 %v1370
    %v2040 = vunpack.c.l.b16 %v1371
    %v2041 = vunpack.c.h.b16 %v1371
    %v2042 = vunpack.c.l.b16 %v1372
    %v2043 = vunpack.c.h.b16 %v1372
    %v2044 = vunpack.c.l.b16 %v1373
    %v2045 = vunpack.c.h.b16 %v1373
    %v2046 = vunpack.c.l.b16 %v1374
    %v2047 = vunpack.c.h.b16 %v1374
    %v2048 = vunpack.c.l.b16 %v1375
    %v2049 = vunpack.c.h.b16 %v1375
    %v2050 = vunpack.c.l.b16 %v1376
    %v2051 = vunpack.c.h.b16 %v1376
    %v2052 = vunpack.c.l.b16 %v1377
    %v2053 = vunpack.c.h.b16 %v1377
    %v2054 = vunpack.c.l.b16 %v1378
    %v2055 = vunpack.c.h.b16 %v1378
    %v2056 = vunpack.c.l.b16 %v1379
    %v2057 = vunpack.c.h.b16 %v1379
    %v2058 = vunpack.c.l.b16 %v1380
    %v2059 = vunpack.c.h.b16 %v1380
    %v2060 = vunpack.c.l.b16 %v1381
    %v2061 = vunpack.c.h.b16 %v1381
    %v2062 = vunpack.c.l.b16 %v1382
    %v2063 = vunpack.c.h.b16 %v1382
    %v2064 = vunpack.c.l.b16 %v1383
    %v2065 = vunpack.c.h.b16 %v1383
    %v2066 = vunpack.c.l.b16 %v1384
    %v2067 = vunpack.c.h.b16 %v1384
    %v2068 = vunpack.c.l.b16 %v1385
    %v2069 = vunpack.c.h.b16 %v1385
    %v2070 = vunpack.c.l.b16 %v1386
    %v2071 = vunpack.c.h.b16 %v1386
    %v2072 = vunpack.c.l.b16 %v1387
    %v2073 = vunpack.c.h.b16 %v1387
    %v2074 = vunpack.c.l.b16 %v1388
    %v2075 = vunpack.c.h.b16 %v1388
    %v2076 = vunpack.c.l.b16 %v1389
    %v2077 = vunpack.c.h.b16 %v1389
    %v2078 = vunpack.c.l.b16 %v1390
    %v2079 = vunpack.c.h.b16 %v1390
    %v2080 = vunpack.c.l.b16 %v1391
    %v2081 = vunpack.c.h.b16 %v1391
    %v2082 = vunpack.c.l.b16 %v1392
    %v2083 = vunpack.c.h.b16 %v1392
    %v2084 = vunpack.c.l.b16 %v1393
    %v2085 = vunpack.c.h.b16 %v1393
    %v2086 = vunpack.c.l.b16 %v1394
    %v2087 = vunpack.c.h.b16 %v1394
    %v2088 = vunpack.c.l.b16 %v1395
    %v2089 = vunpack.c.h.b16 %v1395
    %v2090 = vunpack.c.l.b16 %v1396
    %v2091 = vunpack.c.h.b16 %v1396
    %v2092 = vunpack.c.l.b16 %v1397
    %v2093 = vunpack.c.h.b16 %v1397
    %v2094 = vunpack.c.l.b16 %v1398
    %v2095 = vunpack.c.h.b16 %v1398
    %v2096 = vunpack.c.l.b16 %v1399
    %v2097 = vunpack.c.h.b16 %v1399
    %v2098 = vunpack.c.l.b16 %v1400
    %v2099 = vunpack.c.h.b16 %v1400
    %v2100 = vunpack.c.l.b16 %v1401
    %v2101 = vunpack.c.h.b16 %v1401
    %v2102 = vunpack.c.l.b16 %v1402
    %v2103 = vunpack.c.h.b16 %v1402
    %v2104 = vunpack.c.l.b16 %v1403
    %v2105 = vunpack.c.h.b16 %v1403
    %v2106 = vunpack.c.l.b16 %v1404
    %v2107 = vunpack.c.h.b16 %v1404
    %v2108 = vunpack.c.l.b16 %v1405
    %v2109 = vunpack.c.h.b16 %v1405
    %v2110 = vunpack.c.l.b16 %v1406
    %v2111 = vunpack.c.h.b16 %v1406
    %v2112 = vunpack.c.l.b16 %v1407
    %v2113 = vunpack.c.h.b16 %v1407
    %v2114 = vunpack.c.l.b16 %v1408
    %v2115 = vunpack.c.h.b16 %v1408
    %v2116 = vunpack.c.l.b16 %v1409
    %v2117 = vunpack.c.h.b16 %v1409
    %v2118 = vunpack.c.l.b16 %v1410
    %v2119 = vunpack.c.h.b16 %v1410
    %v2120 = vunpack.c.l.b16 %v1411
    %v2121 = vunpack.c.h.b16 %v1411
    %v2122 = vunpack.c.l.b16 %v1412
    %v2123 = vunpack.c.h.b16 %v1412
    %v2124 = vunpack.c.l.b16 %v1413
    %v2125 = vunpack.c.h.b16 %v1413
    %v2126 = vunpack.c.l.b16 %v1414
    %v2127 = vunpack.c.h.b16 %v1414
    %v2128 = vunpack.c.l.b16 %v1415
    %v2129 = vunpack.c.h.b16 %v1415
    %v2130 = vunpack.c.l.b16 %v1416
    %v2131 = vunpack.c.h.b16 %v1416
    %v2132 = vunpack.c.l.b16 %v1417
    %v2133 = vunpack.c.h.b16 %v1417
    %v2134 = vunpack.c.l.b16 %v1418
    %v2135 = vunpack.c.h.b16 %v1418
    %v2136 = vunpack.c.l.b16 %v1419
    %v2137 = vunpack.c.h.b16 %v1419
    %v2138 = vunpack.c.l.b16 %v1420
    %v2139 = vunpack.c.h.b16 %v1420
    %v2140 = vunpack.c.l.b16 %v1421
    %v2141 = vunpack.c.h.b16 %v1421
    %v2142 = vunpack.c.l.b16 %v1422
    %v2143 = vunpack.c.h.b16 %v1422
    %v2144 = vunpack.c.l.b16 %v1423
    %v2145 = vunpack.c.h.b16 %v1423
    %v2146 = vunpack.c.l.b16 %v1424
    %v2147 = vunpack.c.h.b16 %v1424
    %v2148 = vunpack.c.l.b16 %v1425
    %v2149 = vunpack.c.h.b16 %v1425
    %v2150 = vunpack.c.l.b16 %v1426
    %v2151 = vunpack.c.h.b16 %v1426
    %v2152 = vunpack.c.l.b16 %v1427
    %v2153 = vunpack.c.h.b16 %v1427
    %v2154 = vunpack.c.l.b16 %v1428
    %v2155 = vunpack.c.h.b16 %v1428
    %v2156 = vunpack.c.l.b16 %v1429
    %v2157 = vunpack.c.h.b16 %v1429
    %v2158 = vunpack.c.l.b16 %v1430
    %v2159 = vunpack.c.h.b16 %v1430
    %v2160 = vunpack.c.l.b16 %v1431
    %v2161 = vunpack.c.h.b16 %v1431
    %v2162 = vunpack.c.l.b16 %v1432
    %v2163 = vunpack.c.h.b16 %v1432
    %v2164 = vunpack.c.l.b16 %v1433
    %v2165 = vunpack.c.h.b16 %v1433
    %v2166 = vunpack.c.l.b16 %v1434
    %v2167 = vunpack.c.h.b16 %v1434
    %v2168 = vunpack.c.l.b16 %v1435
    %v2169 = vunpack.c.h.b16 %v1435
    %v2170 = vunpack.c.l.b16 %v1436
    %v2171 = vunpack.c.h.b16 %v1436
    %v2172 = vunpack.c.l.b16 %v1437
    %v2173 = vunpack.c.h.b16 %v1437
    %v2174 = vunpack.c.l.b16 %v1438
    %v2175 = vunpack.c.h.b16 %v1438
    %v2176 = vunpack.c.l.b16 %v1439
    %v2177 = vunpack.c.h.b16 %v1439
    %v2178 = vunpack.c.l.b16 %v1440
    %v2179 = vunpack.c.h.b16 %v1440
    %v2180 = vunpack.c.l.b16 %v1441
    %v2181 = vunpack.c.h.b16 %v1441
    %v2182 = vunpack.c.l.b16 %v1442
    %v2183 = vunpack.c.h.b16 %v1442
    %v2184 = vunpack.c.l.b16 %v1443
    %v2185 = vunpack.c.h.b16 %v1443
    %v2186 = vunpack.c.l.b16 %v1444
    %v2187 = vunpack.c.h.b16 %v1444
    %v2188 = vunpack.c.l.b16 %v1445
    %v2189 = vunpack.c.h.b16 %v1445
    %v2190 = vunpack.c.l.b16 %v1446
    %v2191 = vunpack.c.h.b16 %v1446
    %v2192 = vunpack.c.l.b16 %v1447
    %v2193 = vunpack.c.h.b16 %v1447
    %v2194 = vunpack.c.l.b16 %v1448
    %v2195 = vunpack.c.h.b16 %v1448
    %v2196 = vunpack.c.l.b16 %v1449
    %v2197 = vunpack.c.h.b16 %v1449
    %v2198 = vunpack.c.l.b16 %v1450
    %v2199 = vunpack.c.h.b16 %v1450
    %v2200 = vunpack.c.l.b16 %v1451
    %v2201 = vunpack.c.h.b16 %v1451
    %v2202 = vunpack.c.l.b16 %v1452
    %v2203 = vunpack.c.h.b16 %v1452
    %v2204 = vunpack.c.l.b16 %v1453
    %v2205 = vunpack.c.h.b16 %v1453
    %v2206 = vunpack.c.l.b16 %v1454
    %v2207 = vunpack.c.h.b16 %v1454
    %v2208 = vunpack.c.l.b16 %v1455
    %v2209 = vunpack.c.h.b16 %v1455
    %v2210 = vunpack.c.l.b16 %v1456
    %v2211 = vunpack.c.h.b16 %v1456
    %v2212 = vunpack.c.l.b16 %v1457
    %v2213 = vunpack.c.h.b16 %v1457
    %v2214 = vunpack.c.l.b16 %v1458
    %v2215 = vunpack.c.h.b16 %v1458
    %v2216 = vunpack.c.l.b16 %v1459
    %v2217 = vunpack.c.h.b16 %v1459
    %v2218 = vunpack.c.l.b16 %v1460
    %v2219 = vunpack.c.h.b16 %v1460
    %v2220 = vunpack.c.l.b16 %v1461
    %v2221 = vunpack.c.h.b16 %v1461
    %v2222 = vunpack.c.l.b16 %v1462
    %v2223 = vunpack.c.h.b16 %v1462
    %v2224 = vunpack.c.l.b16 %v1463
    %v2225 = vunpack.c.h.b16 %v1463
    %v2226 = vunpack.c.l.b16 %v1464
    %v2227 = vunpack.c.h.b16 %v1464
    %v2228 = vunpack.c.l.b16 %v1465
    %v2229 = vunpack.c.h.b16 %v1465
    %v2230 = vunpack.c.l.b16 %v1466
    %v2231 = vunpack.c.h.b16 %v1466
    %v2232 = vunpack.c.l.b16 %v1467
    %v2233 = vunpack.c.h.b16 %v1467
    %v2234 = vunpack.c.l.b16 %v1468
    %v2235 = vunpack.c.h.b16 %v1468
    %v2236 = vunpack.c.l.b16 %v1469
    %v2237 = vunpack.c.h.b16 %v1469
    %v2238 = vunpack.c.l.b16 %v1470
    %v2239 = vunpack.c.h.b16 %v1470
    %v2240 = vunpack.c.l.b16 %v1471
    %v2241 = vunpack.c.h.b16 %v1471
    %v2242 = vunpack.c.l.b16 %v1472
    %v2243 = vunpack.c.h.b16 %v1472
    %v2244 = vunpack.c.l.b16 %v1473
    %v2245 = vunpack.c.h.b16 %v1473
    %v2246 = vunpack.c.l.b16 %v1474
    %v2247 = vunpack.c.h.b16 %v1474
    %v2248 = vunpack.c.l.b16 %v1475
    %v2249 = vunpack.c.h.b16 %v1475
    %v2250 = vunpack.c.l.b16 %v1476
    %v2251 = vunpack.c.h.b16 %v1476
    %v2252 = vunpack.c.l.b16 %v1477
    %v2253 = vunpack.c.h.b16 %v1477
    %v2254 = vunpack.c.l.b16 %v1478
    %v2255 = vunpack.c.h.b16 %v1478
    %v2256 = vunpack.c.l.b16 %v1479
    %v2257 = vunpack.c.h.b16 %v1479
    %v2258 = vpack.c.b16 %v1750, %v1746
    %v2259 = vpack.c.b16 %v1751, %v1747
    %v2260 = vpack.c.b16 %v1752, %v1748
    %v2261 = vpack.c.b16 %v1753, %v1749
    %v2262 = vpack.c.b16 %v1758, %v1754
    %v2263 = vpack.c.b16 %v1759, %v1755
    %v2264 = vpack.c.b16 %v1760, %v1756
    %v2265 = vpack.c.b16 %v1761, %v1757
    %v2266 = vpack.c.b16 %v1766, %v1762
    %v2267 = vpack.c.b16 %v1767, %v1763
    %v2268 = vpack.c.b16 %v1768, %v1764
    %v2269 = vpack.c.b16 %v1769, %v1765
    %v2270 = vpack.c.b16 %v1774, %v1770
    %v2271 = vpack.c.b16 %v1775, %v1771
    %v2272 = vpack.c.b16 %v1776, %v1772
    %v2273 = vpack.c.b16 %v1777, %v1773
    %v2274 = vpack.c.b16 %v1782, %v1778
    %v2275 = vpack.c.b16 %v1783, %v1779
    %v2276 = vpack.c.b16 %v1784, %v1780
    %v2277 = vpack.c.b16 %v1785, %v1781
    %v2278 = vpack.c.b16 %v1790, %v1786
    %v2279 = vpack.c.b16 %v1791, %v1787
    %v2280 = vpack.c.b16 %v1792, %v1788
    %v2281 = vpack.c.b16 %v1793, %v1789
    %v2282 = vpack.c.b16 %v1798, %v1794
    %v2283 = vpack.c.b16 %v1799, %v1795
    %v2284 = vpack.c.b16 %v1800, %v1796
    %v2285 = vpack.c.b16 %v1801, %v1797
    %v2286 = vpack.c.b16 %v1806, %v1802
    %v2287 = vpack.c.b16 %v1807, %v1803
    %v2288 = vpack.c.b16 %v1808, %v1804
    %v2289 = vpack.c.b16 %v1809, %v1805
    %v2290 = vpack.c.b16 %v1814, %v1810
    %v2291 = vpack.c.b16 %v1815, %v1811
    %v2292 = vpack.c.b16 %v1816, %v1812
    %v2293 = vpack.c.b16 %v1817, %v1813
    %v2294 = vpack.c.b16 %v1822, %v1818
    %v2295 = vpack.c.b16 %v1823, %v1819
    %v2296 = vpack.c.b16 %v1824, %v1820
    %v2297 = vpack.c.b16 %v1825, %v1821
    %v2298 = vpack.c.b16 %v1830, %v1826
    %v2299 = vpack.c.b16 %v1831, %v1827
    %v2300 = vpack.c.b16 %v1832, %v1828
    %v2301 = vpack.c.b16 %v1833, %v1829
    %v2302 = vpack.c.b16 %v1838, %v1834
    %v2303 = vpack.c.b16 %v1839, %v1835
    %v2304 = vpack.c.b16 %v1840, %v1836
    %v2305 = vpack.c.b16 %v1841, %v1837
    %v2306 = vpack.c.b16 %v1846, %v1842
    %v2307 = vpack.c.b16 %v1847, %v1843
    %v2308 = vpack.c.b16 %v1848, %v1844
    %v2309 = vpack.c.b16 %v1849, %v1845
    %v2310 = vpack.c.b16 %v1854, %v1850
    %v2311 = vpack.c.b16 %v1855, %v1851
    %v2312 = vpack.c.b16 %v1856, %v1852
    %v2313 = vpack.c.b16 %v1857, %v1853
    %v2314 = vpack.c.b16 %v1862, %v1858
    %v2315 = vpack.c.b16 %v1863, %v1859
    %v2316 = vpack.c.b16 %v1864, %v1860
    %v2317 = vpack.c.b16 %v1865, %v1861
    %v2318 = vpack.c.b16 %v1870, %v1866
    %v2319 = vpack.c.b16 %v1871, %v1867
    %v2320 = vpack.c.b16 %v1872, %v1868
    %v2321 = vpack.c.b16 %v1873, %v1869
    %v2322 = vpack.c.b16 %v1878, %v1874
    %v2323 = vpack.c.b16 %v1879, %v1875
    %v2324 = vpack.c.b16 %v1880, %v1876
    %v2325 = vpack.c.b16 %v1881, %v1877
    %v2326 = vpack.c.b16 %v1886, %v1882
    %v2327 = vpack.c.b16 %v1887, %v1883
    %v2328 = vpack.c.b16 %v1888, %v1884
    %v2329 = vpack.c.b16 %v1889, %v1885
    %v2330 = vpack.c.b16 %v1894, %v1890
    %v2331 = vpack.c.b16 %v1895, %v1891
    %v2332 = vpack.c.b16 %v1896, %v1892
    %v2333 = vpack.c.b16 %v1897, %v1893
    %v2334 = vpack.c.b16 %v1902, %v1898
    %v2335 = vpack.c.b16 %v1903, %v1899
    %v2336 = vpack.c.b16 %v1904, %v1900
    %v2337 = vpack.c.b16 %v1905, %v1901
    %v2338 = vpack.c.b16 %v1910, %v1906
    %v2339 = vpack.c.b16 %v1911, %v1907
    %v2340 = vpack.c.b16 %v1912, %v1908
    %v2341 = vpack.c.b16 %v1913, %v1909
    %v2342 = vpack.c.b16 %v1918, %v1914
    %v2343 = vpack.c.b16 %v1919, %v1915
    %v2344 = vpack.c.b16 %v1920, %v1916
    %v2345 = vpack.c.b16 %v1921, %v1917
    %v2346 = vpack.c.b16 %v1926, %v1922
    %v2347 = vpack.c.b16 %v1927, %v1923
    %v2348 = vpack.c.b16 %v1928, %v1924
    %v2349 = vpack.c.b16 %v1929, %v1925
    %v2350 = vpack.c.b16 %v1934, %v1930
    %v2351 = vpack.c.b16 %v1935, %v1931
    %v2352 = vpack.c.b16 %v1936, %v1932
    %v2353 = vpack.c.b16 %v1937, %v1933
    %v2354 = vpack.c.b16 %v1942, %v1938
    %v2355 = vpack.c.b16 %v1943, %v1939
    %v2356 = vpack.c.b16 %v1944, %v1940
    %v2357 = vpack.c.b16 %v1945, %v1941
    %v2358 = vpack.c.b16 %v1950, %v1946
    %v2359 = vpack.c.b16 %v1951, %v1947
    %v2360 = vpack.c.b16 %v1952, %v1948
    %v2361 = vpack.c.b16 %v1953, %v1949
    %v2362 = vpack.c.b16 %v1958, %v1954
    %v2363 = vpack.c.b16 %v1959, %v1955
    %v2364 = vpack.c.b16 %v1960, %v1956
    %v2365 = vpack.c.b16 %v1961, %v1957
    %v2366 = vpack.c.b16 %v1966, %v1962
    %v2367 = vpack.c.b16 %v1967, %v1963
    %v2368 = vpack.c.b16 %v1968, %v1964
    %v2369 = vpack.c.b16 %v1969, %v1965
    %v2370 = vpack.c.b16 %v1974, %v1970
    %v2371 = vpack.c.b16 %v1975, %v1971
    %v2372 = vpack.c.b16 %v1976, %v1972
    %v2373 = vpack.c.b16 %v1977, %v1973
    %v2374 = vpack.c.b16 %v1982, %v1978
    %v2375 = vpack.c.b16 %v1983, %v1979
    %v2376 = vpack.c.b16 %v1984, %v1980
    %v2377 = vpack.c.b16 %v1985, %v1981
    %v2378 = vpack.c.b16 %v1990, %v1986
    %v2379 = vpack.c.b16 %v1991, %v1987
    %v2380 = vpack.c.b16 %v1992, %v1988
    %v2381 = vpack.c.b16 %v1993, %v1989
    %v2382 = vpack.c.b16 %v1998, %v1994
    %v2383 = vpack.c.b16 %v1999, %v1995
    %v2384 = vpack.c.b16 %v2000, %v1996
    %v2385 = vpack.c.b16 %v2001, %v1997
    %v2386 = vpack.c.b16 %v2006, %v2002
    %v2387 = vpack.c.b16 %v2007, %v2003
    %v2388 = vpack.c.b16 %v2008, %v2004
    %v2389 = vpack.c.b16 %v2009, %v2005
    %v2390 = vpack.c.b16 %v2014, %v2010
    %v2391 = vpack.c.b16 %v2015, %v2011
    %v2392 = vpack.c.b16 %v2016, %v2012
    %v2393 = vpack.c.b16 %v2017, %v2013
    %v2394 = vpack.c.b16 %v2022, %v2018
    %v2395 = vpack.c.b16 %v2023, %v2019
    %v2396 = vpack.c.b16 %v2024, %v2020
    %v2397 = vpack.c.b16 %v2025, %v2021
    %v2398 = vpack.c.b16 %v2030, %v2026
    %v2399 = vpack.c.b16 %v2031, %v2027
    %v2400 = vpack.c.b16 %v2032, %v2028
    %v2401 = vpack.c.b16 %v2033, %v2029
    %v2402 = vpack.c.b16 %v2038, %v2034
    %v2403 = vpack.c.b16 %v2039, %v2035
    %v2404 = vpack.c.b16 %v2040, %v2036
    %v2405 = vpack.c.b16 %v2041, %v2037
    %v2406 = vpack.c.b16 %v2046, %v2042
    %v2407 = vpack.c.b16 %v2047, %v2043
    %v2408 = vpack.c.b16 %v2048, %v2044
    %v2409 = vpack.c.b16 %v2049, %v2045
    %v2410 = vpack.c.b16 %v2054, %v2050
    %v2411 = vpack.c.b16 %v2055, %v2051
    %v2412 = vpack.c.b16 %v2056, %v2052
    %v2413 = vpack.c.b16 %v2057, %v2053
    %v2414 = vpack.c.b16 %v2062, %v2058
    %v2415 = vpack.c.b16 %v2063, %v2059
    %v2416 = vpack.c.b16 %v2064, %v2060
    %v2417 = vpack.c.b16 %v2065, %v2061
    %v2418 = vpack.c.b16 %v2070, %v2066
    %v2419 = vpack.c.b16 %v2071, %v2067
    %v2420 = vpack.c.b16 %v2072, %v2068
    %v2421 = vpack.c.b16 %v2073, %v2069
    %v2422 = vpack.c.b16 %v2078, %v2074
    %v2423 = vpack.c.b16 %v2079, %v2075
    %v2424 = vpack.c.b16 %v2080, %v2076
    %v2425 = vpack.c.b16 %v2081, %v2077
    %v2426 = vpack.c.b16 %v2086, %v2082
    %v2427 = vpack.c.b16 %v2087, %v2083
    %v2428 = vpack.c.b16 %v2088, %v2084
    %v2429 = vpack.c.b16 %v2089, %v2085
    %v2430 = vpack.c.b16 %v2094, %v2090
    %v2431 = vpack.c.b16 %v2095, %v2091
    %v2432 = vpack.c.b16 %v2096, %v2092
    %v2433 = vpack.c.b16 %v2097, %v2093
    %v2434 = vpack.c.b16 %v2102, %v2098
    %v2435 = vpack.c.b16 %v2103, %v2099
    %v2436 = vpack.c.b16 %v2104, %v2100
    %v2437 = vpack.c.b16 %v2105, %v2101
    %v2438 = vpack.c.b16 %v2110, %v2106
    %v2439 = vpack.c.b16 %v2111, %v2107
    %v2440 = vpack.c.b16 %v2112, %v2108
    %v2441 = vpack.c.b16 %v2113, %v2109
    %v2442 = vpack.c.b16 %v2118, %v2114
    %v2443 = vpack.c.b16 %v2119, %v2115
    %v2444 = vpack.c.b16 %v2120, %v2116
    %v2445 = vpack.c.b16 %v2121, %v2117
    %v2446 = vpack.c.b16 %v2126, %v2122
    %v2447 = vpack.c.b16 %v2127, %v2123
    %v2448 = vpack.c.b16 %v2128, %v2124
    %v2449 = vpack.c.b16 %v2129, %v2125
    %v2450 = vpack.c.b16 %v2134, %v2130
    %v2451 = vpack.c.b16 %v2135, %v2131
    %v2452 = vpack.c.b16 %v2136, %v2132
    %v2453 = vpack.c.b16 %v2137, %v2133
    %v2454 = vpack.c.b16 %v2142, %v2138
    %v2455 = vpack.c.b16 %v2143, %v2139
    %v2456 = vpack.c.b16 %v2144, %v2140
    %v2457 = vpack.c.b16 %v2145, %v2141
    %v2458 = vpack.c.b16 %v2150, %v2146
    %v2459 = vpack.c.b16 %v2151, %v2147
    %v2460 = vpack.c.b16 %v2152, %v2148
    %v2461 = vpack.c.b16 %v2153, %v2149
    %v2462 = vpack.c.b16 %v2158, %v2154
    %v2463 = vpack.c.b16 %v2159, %v2155
    %v2464 = vpack.c.b16 %v2160, %v2156
    %v2465 = vpack.c.b16 %v2161, %v2157
    %v2466 = vpack.c.b16 %v2166, %v2162
    %v2467 = vpack.c.b16 %v2167, %v2163
    %v2468 = vpack.c.b16 %v2168, %v2164
    %v2469 = vpack.c.b16 %v2169, %v2165
    %v2470 = vpack.c.b16 %v2174, %v2170
    %v2471 = vpack.c.b16 %v2175, %v2171
    %v2472 = vpack.c.b16 %v2176, %v2172
    %v2473 = vpack.c.b16 %v2177, %v2173
    %v2474 = vpack.c.b16 %v2182, %v2178
    %v2475 = vpack.c.b16 %v2183, %v2179
    %v2476 = vpack.c.b16 %v2184, %v2180
    %v2477 = vpack.c.b16 %v2185, %v2181
    %v2478 = vpack.c.b16 %v2190, %v2186
    %v2479 = vpack.c.b16 %v2191, %v2187
    %v2480 = vpack.c.b16 %v2192, %v2188
    %v2481 = vpack.c.b16 %v2193, %v2189
    %v2482 = vpack.c.b16 %v2198, %v2194
    %v2483 = vpack.c.b16 %v2199, %v2195
    %v2484 = vpack.c.b16 %v2200, %v2196
    %v2485 = vpack.c.b16 %v2201, %v2197
    %v2486 = vpack.c.b16 %v2206, %v2202
    %v2487 = vpack.c.b16 %v2207, %v2203
    %v2488 = vpack.c.b16 %v2208, %v2204
    %v2489 = vpack.c.b16 %v2209, %v2205
    %v2490 = vpack.c.b16 %v2214, %v2210
    %v2491 = vpack.c.b16 %v2215, %v2211
    %v2492 = vpack.c.b16 %v2216, %v2212
    %v2493 = vpack.c.b16 %v2217, %v2213
    %v2494 = vpack.c.b16 %v2222, %v2218
    %v2495 = vpack.c.b16 %v2223, %v2219
    %v2496 = vpack.c.b16 %v2224, %v2220
    %v2497 = vpack.c.b16 %v2225, %v2221
    %v2498 = vpack.c.b16 %v2230, %v2226
    %v2499 = vpack.c.b16 %v2231, %v2227
    %v2500 = vpack.c.b16 %v2232, %v2228
    %v2501 = vpack.c.b16 %v2233, %v2229
    %v2502 = vpack.c.b16 %v2238, %v2234
    %v2503 = vpack.c.b16 %v2239, %v2235
    %v2504 = vpack.c.b16 %v2240, %v2236
    %v2505 = vpack.c.b16 %v2241, %v2237
    %v2506 = vpack.c.b16 %v2246, %v2242
    %v2507 = vpack.c.b16 %v2247, %v2243
    %v2508 = vpack.c.b16 %v2248, %v2244
    %v2509 = vpack.c.b16 %v2249, %v2245
    %v2510 = vpack.c.b16 %v2254, %v2250
    %v2511 = vpack.c.b16 %v2255, %v2251
    %v2512 = vpack.c.b16 %v2256, %v2252
    %v2513 = vpack.c.b16 %v2257, %v2253
    %2770 = vmatpush.bf16.msra.mxu0 %v2286
    %2771 = vmatpush.bf16.msra.mxu0 %v2282
    %2772 = vmatpush.bf16.msra.mxu0 %v2278
    %2773 = vmatpush.bf16.msra.mxu0 %v2274
    %2774 = vmatpush.bf16.msra.mxu0 %v2270
    %2775 = vmatpush.bf16.msra.mxu0 %v2266
    %2776 = vmatpush.bf16.msra.mxu0 %v2262
    %2777 = vmatpush.bf16.msra.mxu0 %v2258
    %2778 = vmatmul.bf16.gmra.mxu0 %v1216
    %v2779 = vpop.f32.mrf.mxu0
    %v2780 = vadd.f32 %v1482, %v2779
    %v2781 = vpop.f32.mrf.mxu0
    %2782 = vdwg.mxu0
    %2783 = vmatpush.bf16.msra.mxu0 %v2318
    %2784 = vmatpush.bf16.msra.mxu0 %v2314
    %2785 = vmatpush.bf16.msra.mxu0 %v2310
    %2786 = vmatpush.bf16.msra.mxu0 %v2306
    %2787 = vmatpush.bf16.msra.mxu0 %v2302
    %2788 = vmatpush.bf16.msra.mxu0 %v2298
    %2789 = vmatpush.bf16.msra.mxu0 %v2294
    %2790 = vmatpush.bf16.msra.mxu0 %v2290
    %2791 = vmatmul.bf16.gmra.mxu0 %v1217
    %v2792 = vpop.f32.mrf.mxu0
    %v2793 = vadd.f32 %v2780, %v2792
    %v2794 = vpop.f32.mrf.mxu0
    %2795 = vdwg.mxu0
    %2796 = vmatpush.bf16.msra.mxu0 %v2350
    %2797 = vmatpush.bf16.msra.mxu0 %v2346
    %2798 = vmatpush.bf16.msra.mxu0 %v2342
    %2799 = vmatpush.bf16.msra.mxu0 %v2338
    %2800 = vmatpush.bf16.msra.mxu0 %v2334
    %2801 = vmatpush.bf16.msra.mxu0 %v2330
    %2802 = vmatpush.bf16.msra.mxu0 %v2326
    %2803 = vmatpush.bf16.msra.mxu0 %v2322
    %2804 = vmatmul.bf16.gmra.mxu0 %v1218
    %v2805 = vpop.f32.mrf.mxu0
    %v2806 = vadd.f32 %v2793, %v2805
    %v2807 = vpop.f32.mrf.mxu0
    %2808 = vdwg.mxu0
    %2809 = vmatpush.bf16.msra.mxu0 %v2382
    %2810 = vmatpush.bf16.msra.mxu0 %v2378
    %2811 = vmatpush.bf16.msra.mxu0 %v2374
    %2812 = vmatpush.bf16.msra.mxu0 %v2370
    %2813 = vmatpush.bf16.msra.mxu0 %v2366
    %2814 = vmatpush.bf16.msra.mxu0 %v2362
    %2815 = vmatpush.bf16.msra.mxu0 %v2358
    %2816 = vmatpush.bf16.msra.mxu0 %v2354
    %2817 = vmatmul.bf16.gmra.mxu0 %v1219
    %v2818 = vpop.f32.mrf.mxu0
    %v2819 = vadd.f32 %v2806, %v2818
    %v2820 = vpop.f32.mrf.mxu0
    %2821 = vdwg.mxu0
    %2822 = vmatpush.bf16.msra.mxu0 %v2414
    %2823 = vmatpush.bf16.msra.mxu0 %v2410
    %2824 = vmatpush.bf16.msra.mxu0 %v2406
    %2825 = vmatpush.bf16.msra.mxu0 %v2402
    %2826 = vmatpush.bf16.msra.mxu0 %v2398
    %2827 = vmatpush.bf16.msra.mxu0 %v2394
    %2828 = vmatpush.bf16.msra.mxu0 %v2390
    %2829 = vmatpush.bf16.msra.mxu0 %v2386
    %2830 = vmatmul.bf16.gmra.mxu0 %v1220
    %v2831 = vpop.f32.mrf.mxu0
    %v2832 = vadd.f32 %v2819, %v2831
    %v2833 = vpop.f32.mrf.mxu0
    %2834 = vdwg.mxu0
    %2835 = vmatpush.bf16.msra.mxu0 %v2446
    %2836 = vmatpush.bf16.msra.mxu0 %v2442
    %2837 = vmatpush.bf16.msra.mxu0 %v2438
    %2838 = vmatpush.bf16.msra.mxu0 %v2434
    %2839 = vmatpush.bf16.msra.mxu0 %v2430
    %2840 = vmatpush.bf16.msra.mxu0 %v2426
    %2841 = vmatpush.bf16.msra.mxu0 %v2422
    %2842 = vmatpush.bf16.msra.mxu0 %v2418
    %2843 = vmatmul.bf16.gmra.mxu0 %v1221
    %v2844 = vpop.f32.mrf.mxu0
    %v2845 = vadd.f32 %v2832, %v2844
    %v2846 = vpop.f32.mrf.mxu0
    %2847 = vdwg.mxu0
    %2848 = vmatpush.bf16.msra.mxu0 %v2478
    %2849 = vmatpush.bf16.msra.mxu0 %v2474
    %2850 = vmatpush.bf16.msra.mxu0 %v2470
    %2851 = vmatpush.bf16.msra.mxu0 %v2466
    %2852 = vmatpush.bf16.msra.mxu0 %v2462
    %2853 = vmatpush.bf16.msra.mxu0 %v2458
    %2854 = vmatpush.bf16.msra.mxu0 %v2454
    %2855 = vmatpush.bf16.msra.mxu0 %v2450
    %2856 = vmatmul.bf16.gmra.mxu0 %v1222
    %v2857 = vpop.f32.mrf.mxu0
    %v2858 = vadd.f32 %v2845, %v2857
    %v2859 = vpop.f32.mrf.mxu0
    %2860 = vdwg.mxu0
    %2861 = vmatpush.bf16.msra.mxu0 %v2510
    %2862 = vmatpush.bf16.msra.mxu0 %v2506
    %2863 = vmatpush.bf16.msra.mxu0 %v2502
    %2864 = vmatpush.bf16.msra.mxu0 %v2498
    %2865 = vmatpush.bf16.msra.mxu0 %v2494
    %2866 = vmatpush.bf16.msra.mxu0 %v2490
    %2867 = vmatpush.bf16.msra.mxu0 %v2486
    %2868 = vmatpush.bf16.msra.mxu0 %v2482
    %2869 = vmatmul.bf16.gmra.mxu0 %v1223
    %v2870 = vpop.f32.mrf.mxu0
    %v2871 = vadd.f32 %v2858, %v2870
    %v2872 = vpop.f32.mrf.mxu0
    %2873 = vdwg.mxu0
    %2874 = vmatpush.bf16.msra.mxu0 %v2287
    %2875 = vmatpush.bf16.msra.mxu0 %v2283
    %2876 = vmatpush.bf16.msra.mxu0 %v2279
    %2877 = vmatpush.bf16.msra.mxu0 %v2275
    %2878 = vmatpush.bf16.msra.mxu0 %v2271
    %2879 = vmatpush.bf16.msra.mxu0 %v2267
    %2880 = vmatpush.bf16.msra.mxu0 %v2263
    %2881 = vmatpush.bf16.msra.mxu0 %v2259
    %2882 = vmatmul.bf16.gmra.mxu0 %v1216
    %v2883 = vpop.f32.mrf.mxu0
    %v2884 = vadd.f32 %v1483, %v2883
    %v2885 = vpop.f32.mrf.mxu0
    %2886 = vdwg.mxu0
    %2887 = vmatpush.bf16.msra.mxu0 %v2319
    %2888 = vmatpush.bf16.msra.mxu0 %v2315
    %2889 = vmatpush.bf16.msra.mxu0 %v2311
    %2890 = vmatpush.bf16.msra.mxu0 %v2307
    %2891 = vmatpush.bf16.msra.mxu0 %v2303
    %2892 = vmatpush.bf16.msra.mxu0 %v2299
    %2893 = vmatpush.bf16.msra.mxu0 %v2295
    %2894 = vmatpush.bf16.msra.mxu0 %v2291
    %2895 = vmatmul.bf16.gmra.mxu0 %v1217
    %v2896 = vpop.f32.mrf.mxu0
    %v2897 = vadd.f32 %v2884, %v2896
    %v2898 = vpop.f32.mrf.mxu0
    %2899 = vdwg.mxu0
    %2900 = vmatpush.bf16.msra.mxu0 %v2351
    %2901 = vmatpush.bf16.msra.mxu0 %v2347
    %2902 = vmatpush.bf16.msra.mxu0 %v2343
    %2903 = vmatpush.bf16.msra.mxu0 %v2339
    %2904 = vmatpush.bf16.msra.mxu0 %v2335
    %2905 = vmatpush.bf16.msra.mxu0 %v2331
    %2906 = vmatpush.bf16.msra.mxu0 %v2327
    %2907 = vmatpush.bf16.msra.mxu0 %v2323
    %2908 = vmatmul.bf16.gmra.mxu0 %v1218
    %v2909 = vpop.f32.mrf.mxu0
    %v2910 = vadd.f32 %v2897, %v2909
    %v2911 = vpop.f32.mrf.mxu0
    %2912 = vdwg.mxu0
    %2913 = vmatpush.bf16.msra.mxu0 %v2383
    %2914 = vmatpush.bf16.msra.mxu0 %v2379
    %2915 = vmatpush.bf16.msra.mxu0 %v2375
    %2916 = vmatpush.bf16.msra.mxu0 %v2371
    %2917 = vmatpush.bf16.msra.mxu0 %v2367
    %2918 = vmatpush.bf16.msra.mxu0 %v2363
    %2919 = vmatpush.bf16.msra.mxu0 %v2359
    %2920 = vmatpush.bf16.msra.mxu0 %v2355
    %2921 = vmatmul.bf16.gmra.mxu0 %v1219
    %v2922 = vpop.f32.mrf.mxu0
    %v2923 = vadd.f32 %v2910, %v2922
    %v2924 = vpop.f32.mrf.mxu0
    %2925 = vdwg.mxu0
    %2926 = vmatpush.bf16.msra.mxu0 %v2415
    %2927 = vmatpush.bf16.msra.mxu0 %v2411
    %2928 = vmatpush.bf16.msra.mxu0 %v2407
    %2929 = vmatpush.bf16.msra.mxu0 %v2403
    %2930 = vmatpush.bf16.msra.mxu0 %v2399
    %2931 = vmatpush.bf16.msra.mxu0 %v2395
    %2932 = vmatpush.bf16.msra.mxu0 %v2391
    %2933 = vmatpush.bf16.msra.mxu0 %v2387
    %2934 = vmatmul.bf16.gmra.mxu0 %v1220
    %v2935 = vpop.f32.mrf.mxu0
    %v2936 = vadd.f32 %v2923, %v2935
    %v2937 = vpop.f32.mrf.mxu0
    %2938 = vdwg.mxu0
    %2939 = vmatpush.bf16.msra.mxu0 %v2447
    %2940 = vmatpush.bf16.msra.mxu0 %v2443
    %2941 = vmatpush.bf16.msra.mxu0 %v2439
    %2942 = vmatpush.bf16.msra.mxu0 %v2435
    %2943 = vmatpush.bf16.msra.mxu0 %v2431
    %2944 = vmatpush.bf16.msra.mxu0 %v2427
    %2945 = vmatpush.bf16.msra.mxu0 %v2423
    %2946 = vmatpush.bf16.msra.mxu0 %v2419
    %2947 = vmatmul.bf16.gmra.mxu0 %v1221
    %v2948 = vpop.f32.mrf.mxu0
    %v2949 = vadd.f32 %v2936, %v2948
    %v2950 = vpop.f32.mrf.mxu0
    %2951 = vdwg.mxu0
    %2952 = vmatpush.bf16.msra.mxu0 %v2479
    %2953 = vmatpush.bf16.msra.mxu0 %v2475
    %2954 = vmatpush.bf16.msra.mxu0 %v2471
    %2955 = vmatpush.bf16.msra.mxu0 %v2467
    %2956 = vmatpush.bf16.msra.mxu0 %v2463
    %2957 = vmatpush.bf16.msra.mxu0 %v2459
    %2958 = vmatpush.bf16.msra.mxu0 %v2455
    %2959 = vmatpush.bf16.msra.mxu0 %v2451
    %2960 = vmatmul.bf16.gmra.mxu0 %v1222
    %v2961 = vpop.f32.mrf.mxu0
    %v2962 = vadd.f32 %v2949, %v2961
    %v2963 = vpop.f32.mrf.mxu0
    %2964 = vdwg.mxu0
    %2965 = vmatpush.bf16.msra.mxu0 %v2511
    %2966 = vmatpush.bf16.msra.mxu0 %v2507
    %2967 = vmatpush.bf16.msra.mxu0 %v2503
    %2968 = vmatpush.bf16.msra.mxu0 %v2499
    %2969 = vmatpush.bf16.msra.mxu0 %v2495
    %2970 = vmatpush.bf16.msra.mxu0 %v2491
    %2971 = vmatpush.bf16.msra.mxu0 %v2487
    %2972 = vmatpush.bf16.msra.mxu0 %v2483
    %2973 = vmatmul.bf16.gmra.mxu0 %v1223
    %v2974 = vpop.f32.mrf.mxu0
    %v2975 = vadd.f32 %v2962, %v2974
    %v2976 = vpop.f32.mrf.mxu0
    %2977 = vdwg.mxu0
    %2978 = vmatpush.bf16.msra.mxu0 %v2288
    %2979 = vmatpush.bf16.msra.mxu0 %v2284
    %2980 = vmatpush.bf16.msra.mxu0 %v2280
    %2981 = vmatpush.bf16.msra.mxu0 %v2276
    %2982 = vmatpush.bf16.msra.mxu0 %v2272
    %2983 = vmatpush.bf16.msra.mxu0 %v2268
    %2984 = vmatpush.bf16.msra.mxu0 %v2264
    %2985 = vmatpush.bf16.msra.mxu0 %v2260
    %2986 = vmatmul.bf16.gmra.mxu0 %v1216
    %v2987 = vpop.f32.mrf.mxu0
    %v2988 = vadd.f32 %v1484, %v2987
    %v2989 = vpop.f32.mrf.mxu0
    %2990 = vdwg.mxu0
    %2991 = vmatpush.bf16.msra.mxu0 %v2320
    %2992 = vmatpush.bf16.msra.mxu0 %v2316
    %2993 = vmatpush.bf16.msra.mxu0 %v2312
    %2994 = vmatpush.bf16.msra.mxu0 %v2308
    %2995 = vmatpush.bf16.msra.mxu0 %v2304
    %2996 = vmatpush.bf16.msra.mxu0 %v2300
    %2997 = vmatpush.bf16.msra.mxu0 %v2296
    %2998 = vmatpush.bf16.msra.mxu0 %v2292
    %2999 = vmatmul.bf16.gmra.mxu0 %v1217
    %v3000 = vpop.f32.mrf.mxu0
    %v3001 = vadd.f32 %v2988, %v3000
    %v3002 = vpop.f32.mrf.mxu0
    %3003 = vdwg.mxu0
    %3004 = vmatpush.bf16.msra.mxu0 %v2352
    %3005 = vmatpush.bf16.msra.mxu0 %v2348
    %3006 = vmatpush.bf16.msra.mxu0 %v2344
    %3007 = vmatpush.bf16.msra.mxu0 %v2340
    %3008 = vmatpush.bf16.msra.mxu0 %v2336
    %3009 = vmatpush.bf16.msra.mxu0 %v2332
    %3010 = vmatpush.bf16.msra.mxu0 %v2328
    %3011 = vmatpush.bf16.msra.mxu0 %v2324
    %3012 = vmatmul.bf16.gmra.mxu0 %v1218
    %v3013 = vpop.f32.mrf.mxu0
    %v3014 = vadd.f32 %v3001, %v3013
    %v3015 = vpop.f32.mrf.mxu0
    %3016 = vdwg.mxu0
    %3017 = vmatpush.bf16.msra.mxu0 %v2384
    %3018 = vmatpush.bf16.msra.mxu0 %v2380
    %3019 = vmatpush.bf16.msra.mxu0 %v2376
    %3020 = vmatpush.bf16.msra.mxu0 %v2372
    %3021 = vmatpush.bf16.msra.mxu0 %v2368
    %3022 = vmatpush.bf16.msra.mxu0 %v2364
    %3023 = vmatpush.bf16.msra.mxu0 %v2360
    %3024 = vmatpush.bf16.msra.mxu0 %v2356
    %3025 = vmatmul.bf16.gmra.mxu0 %v1219
    %v3026 = vpop.f32.mrf.mxu0
    %v3027 = vadd.f32 %v3014, %v3026
    %v3028 = vpop.f32.mrf.mxu0
    %3029 = vdwg.mxu0
    %3030 = vmatpush.bf16.msra.mxu0 %v2416
    %3031 = vmatpush.bf16.msra.mxu0 %v2412
    %3032 = vmatpush.bf16.msra.mxu0 %v2408
    %3033 = vmatpush.bf16.msra.mxu0 %v2404
    %3034 = vmatpush.bf16.msra.mxu0 %v2400
    %3035 = vmatpush.bf16.msra.mxu0 %v2396
    %3036 = vmatpush.bf16.msra.mxu0 %v2392
    %3037 = vmatpush.bf16.msra.mxu0 %v2388
    %3038 = vmatmul.bf16.gmra.mxu0 %v1220
    %v3039 = vpop.f32.mrf.mxu0
    %v3040 = vadd.f32 %v3027, %v3039
    %v3041 = vpop.f32.mrf.mxu0
    %3042 = vdwg.mxu0
    %3043 = vmatpush.bf16.msra.mxu0 %v2448
    %3044 = vmatpush.bf16.msra.mxu0 %v2444
    %3045 = vmatpush.bf16.msra.mxu0 %v2440
    %3046 = vmatpush.bf16.msra.mxu0 %v2436
    %3047 = vmatpush.bf16.msra.mxu0 %v2432
    %3048 = vmatpush.bf16.msra.mxu0 %v2428
    %3049 = vmatpush.bf16.msra.mxu0 %v2424
    %3050 = vmatpush.bf16.msra.mxu0 %v2420
    %3051 = vmatmul.bf16.gmra.mxu0 %v1221
    %v3052 = vpop.f32.mrf.mxu0
    %v3053 = vadd.f32 %v3040, %v3052
    %v3054 = vpop.f32.mrf.mxu0
    %3055 = vdwg.mxu0
    %3056 = vmatpush.bf16.msra.mxu0 %v2480
    %3057 = vmatpush.bf16.msra.mxu0 %v2476
    %3058 = vmatpush.bf16.msra.mxu0 %v2472
    %3059 = vmatpush.bf16.msra.mxu0 %v2468
    %3060 = vmatpush.bf16.msra.mxu0 %v2464
    %3061 = vmatpush.bf16.msra.mxu0 %v2460
    %3062 = vmatpush.bf16.msra.mxu0 %v2456
    %3063 = vmatpush.bf16.msra.mxu0 %v2452
    %3064 = vmatmul.bf16.gmra.mxu0 %v1222
    %v3065 = vpop.f32.mrf.mxu0
    %v3066 = vadd.f32 %v3053, %v3065
    %v3067 = vpop.f32.mrf.mxu0
    %3068 = vdwg.mxu0
    %3069 = vmatpush.bf16.msra.mxu0 %v2512
    %3070 = vmatpush.bf16.msra.mxu0 %v2508
    %3071 = vmatpush.bf16.msra.mxu0 %v2504
    %3072 = vmatpush.bf16.msra.mxu0 %v2500
    %3073 = vmatpush.bf16.msra.mxu0 %v2496
    %3074 = vmatpush.bf16.msra.mxu0 %v2492
    %3075 = vmatpush.bf16.msra.mxu0 %v2488
    %3076 = vmatpush.bf16.msra.mxu0 %v2484
    %3077 = vmatmul.bf16.gmra.mxu0 %v1223
    %v3078 = vpop.f32.mrf.mxu0
    %v3079 = vadd.f32 %v3066, %v3078
    %v3080 = vpop.f32.mrf.mxu0
    %3081 = vdwg.mxu0
    %3082 = vmatpush.bf16.msra.mxu0 %v2289
    %3083 = vmatpush.bf16.msra.mxu0 %v2285
    %3084 = vmatpush.bf16.msra.mxu0 %v2281
    %3085 = vmatpush.bf16.msra.mxu0 %v2277
    %3086 = vmatpush.bf16.msra.mxu0 %v2273
    %3087 = vmatpush.bf16.msra.mxu0 %v2269
    %3088 = vmatpush.bf16.msra.mxu0 %v2265
    %3089 = vmatpush.bf16.msra.mxu0 %v2261
    %3090 = vmatmul.bf16.gmra.mxu0 %v1216
    %v3091 = vpop.f32.mrf.mxu0
    %v3092 = vadd.f32 %v1485, %v3091
    %v3093 = vpop.f32.mrf.mxu0
    %3094 = vdwg.mxu0
    %3095 = vmatpush.bf16.msra.mxu0 %v2321
    %3096 = vmatpush.bf16.msra.mxu0 %v2317
    %3097 = vmatpush.bf16.msra.mxu0 %v2313
    %3098 = vmatpush.bf16.msra.mxu0 %v2309
    %3099 = vmatpush.bf16.msra.mxu0 %v2305
    %3100 = vmatpush.bf16.msra.mxu0 %v2301
    %3101 = vmatpush.bf16.msra.mxu0 %v2297
    %3102 = vmatpush.bf16.msra.mxu0 %v2293
    %3103 = vmatmul.bf16.gmra.mxu0 %v1217
    %v3104 = vpop.f32.mrf.mxu0
    %v3105 = vadd.f32 %v3092, %v3104
    %v3106 = vpop.f32.mrf.mxu0
    %3107 = vdwg.mxu0
    %3108 = vmatpush.bf16.msra.mxu0 %v2353
    %3109 = vmatpush.bf16.msra.mxu0 %v2349
    %3110 = vmatpush.bf16.msra.mxu0 %v2345
    %3111 = vmatpush.bf16.msra.mxu0 %v2341
    %3112 = vmatpush.bf16.msra.mxu0 %v2337
    %3113 = vmatpush.bf16.msra.mxu0 %v2333
    %3114 = vmatpush.bf16.msra.mxu0 %v2329
    %3115 = vmatpush.bf16.msra.mxu0 %v2325
    %3116 = vmatmul.bf16.gmra.mxu0 %v1218
    %v3117 = vpop.f32.mrf.mxu0
    %v3118 = vadd.f32 %v3105, %v3117
    %v3119 = vpop.f32.mrf.mxu0
    %3120 = vdwg.mxu0
    %3121 = vmatpush.bf16.msra.mxu0 %v2385
    %3122 = vmatpush.bf16.msra.mxu0 %v2381
    %3123 = vmatpush.bf16.msra.mxu0 %v2377
    %3124 = vmatpush.bf16.msra.mxu0 %v2373
    %3125 = vmatpush.bf16.msra.mxu0 %v2369
    %3126 = vmatpush.bf16.msra.mxu0 %v2365
    %3127 = vmatpush.bf16.msra.mxu0 %v2361
    %3128 = vmatpush.bf16.msra.mxu0 %v2357
    %3129 = vmatmul.bf16.gmra.mxu0 %v1219
    %v3130 = vpop.f32.mrf.mxu0
    %v3131 = vadd.f32 %v3118, %v3130
    %v3132 = vpop.f32.mrf.mxu0
    %3133 = vdwg.mxu0
    %3134 = vmatpush.bf16.msra.mxu0 %v2417
    %3135 = vmatpush.bf16.msra.mxu0 %v2413
    %3136 = vmatpush.bf16.msra.mxu0 %v2409
    %3137 = vmatpush.bf16.msra.mxu0 %v2405
    %3138 = vmatpush.bf16.msra.mxu0 %v2401
    %3139 = vmatpush.bf16.msra.mxu0 %v2397
    %3140 = vmatpush.bf16.msra.mxu0 %v2393
    %3141 = vmatpush.bf16.msra.mxu0 %v2389
    %3142 = vmatmul.bf16.gmra.mxu0 %v1220
    %v3143 = vpop.f32.mrf.mxu0
    %v3144 = vadd.f32 %v3131, %v3143
    %v3145 = vpop.f32.mrf.mxu0
    %3146 = vdwg.mxu0
    %3147 = vmatpush.bf16.msra.mxu0 %v2449
    %3148 = vmatpush.bf16.msra.mxu0 %v2445
    %3149 = vmatpush.bf16.msra.mxu0 %v2441
    %3150 = vmatpush.bf16.msra.mxu0 %v2437
    %3151 = vmatpush.bf16.msra.mxu0 %v2433
    %3152 = vmatpush.bf16.msra.mxu0 %v2429
    %3153 = vmatpush.bf16.msra.mxu0 %v2425
    %3154 = vmatpush.bf16.msra.mxu0 %v2421
    %3155 = vmatmul.bf16.gmra.mxu0 %v1221
    %v3156 = vpop.f32.mrf.mxu0
    %v3157 = vadd.f32 %v3144, %v3156
    %v3158 = vpop.f32.mrf.mxu0
    %3159 = vdwg.mxu0
    %3160 = vmatpush.bf16.msra.mxu0 %v2481
    %3161 = vmatpush.bf16.msra.mxu0 %v2477
    %3162 = vmatpush.bf16.msra.mxu0 %v2473
    %3163 = vmatpush.bf16.msra.mxu0 %v2469
    %3164 = vmatpush.bf16.msra.mxu0 %v2465
    %3165 = vmatpush.bf16.msra.mxu0 %v2461
    %3166 = vmatpush.bf16.msra.mxu0 %v2457
    %3167 = vmatpush.bf16.msra.mxu0 %v2453
    %3168 = vmatmul.bf16.gmra.mxu0 %v1222
    %v3169 = vpop.f32.mrf.mxu0
    %v3170 = vadd.f32 %v3157, %v3169
    %v3171 = vpop.f32.mrf.mxu0
    %3172 = vdwg.mxu0
    %3173 = vmatpush.bf16.msra.mxu0 %v2513
    %3174 = vmatpush.bf16.msra.mxu0 %v2509
    %3175 = vmatpush.bf16.msra.mxu0 %v2505
    %3176 = vmatpush.bf16.msra.mxu0 %v2501
    %3177 = vmatpush.bf16.msra.mxu0 %v2497
    %3178 = vmatpush.bf16.msra.mxu0 %v2493
    %3179 = vmatpush.bf16.msra.mxu0 %v2489
    %3180 = vmatpush.bf16.msra.mxu0 %v2485
    %3181 = vmatmul.bf16.gmra.mxu0 %v1223
    %v3182 = vpop.f32.mrf.mxu0
    %v3183 = vadd.f32 %v3170, %v3182
    %v3184 = vpop.f32.mrf.mxu0
    %3185 = vdwg.mxu0
    %v3186 = vmax.f32 %v2871, 0.0
    %v3187 = vmax.f32 %v2975, 0.0
    %v3188 = vmax.f32 %v3079, 0.0
    %v3189 = vmax.f32 %v3183, 0.0
    %v3190 = vpack.c.bf16 %v3186, %v3186
    %v3191 = vpack.c.bf16 %v3187, %v3187
    %v3192 = vpack.c.bf16 %v3188, %v3188
    %v3193 = vpack.c.bf16 %v3189, %v3189
    %v3194 = vld [vmem:[#allocation11] sm:$0xf]
    %v3195 = vld [vmem:[#allocation11 + $0x4] sm:$0xf]
    %v3196 = vld [vmem:[#allocation11 + $0x8] sm:$0xf]
    %v3197 = vld [vmem:[#allocation11 + $0xc] sm:$0xf]
    %v3198 = vld [vmem:[#allocation11 + $0x10] sm:$0xf]
    %v3199 = vld [vmem:[#allocation11 + $0x14] sm:$0xf]
    %v3200 = vld [vmem:[#allocation11 + $0x18] sm:$0xf]
    %v3201 = vld [vmem:[#allocation11 + $0x1c] sm:$0xf]
    %v3202 = vld [vmem:[#allocation11 + $0x20] sm:$0xf]
    %v3203 = vld [vmem:[#allocation11 + $0x24] sm:$0xf]
    %v3204 = vld [vmem:[#allocation11 + $0x28] sm:$0xf]
    %v3205 = vld [vmem:[#allocation11 + $0x2c] sm:$0xf]
    %v3206 = vld [vmem:[#allocation11 + $0x30] sm:$0xf]
    %v3207 = vld [vmem:[#allocation11 + $0x34] sm:$0xf]
    %v3208 = vld [vmem:[#allocation11 + $0x38] sm:$0xf]
    %v3209 = vld [vmem:[#allocation11 + $0x3c] sm:$0xf]
    %v3210 = vld [vmem:[#allocation11 + $0x40] sm:$0xf]
    %v3211 = vld [vmem:[#allocation11 + $0x44] sm:$0xf]
    %v3212 = vld [vmem:[#allocation11 + $0x48] sm:$0xf]
    %v3213 = vld [vmem:[#allocation11 + $0x4c] sm:$0xf]
    %v3214 = vld [vmem:[#allocation11 + $0x50] sm:$0xf]
    %v3215 = vld [vmem:[#allocation11 + $0x54] sm:$0xf]
    %v3216 = vld [vmem:[#allocation11 + $0x58] sm:$0xf]
    %v3217 = vld [vmem:[#allocation11 + $0x5c] sm:$0xf]
    %v3218 = vld [vmem:[#allocation11 + $0x60] sm:$0xf]
    %v3219 = vld [vmem:[#allocation11 + $0x64] sm:$0xf]
    %v3220 = vld [vmem:[#allocation11 + $0x68] sm:$0xf]
    %v3221 = vld [vmem:[#allocation11 + $0x6c] sm:$0xf]
    %v3222 = vld [vmem:[#allocation11 + $0x70] sm:$0xf]
    %v3223 = vld [vmem:[#allocation11 + $0x74] sm:$0xf]
    %v3224 = vld [vmem:[#allocation11 + $0x78] sm:$0xf]
    %v3225 = vld [vmem:[#allocation11 + $0x7c] sm:$0xf]
    %v3226 = vld [vmem:[#allocation11 + $0x80] sm:$0xf]
    %v3227 = vld [vmem:[#allocation11 + $0x84] sm:$0xf]
    %v3228 = vld [vmem:[#allocation11 + $0x88] sm:$0xf]
    %v3229 = vld [vmem:[#allocation11 + $0x8c] sm:$0xf]
    %v3230 = vld [vmem:[#allocation11 + $0x90] sm:$0xf]
    %v3231 = vld [vmem:[#allocation11 + $0x94] sm:$0xf]
    %v3232 = vld [vmem:[#allocation11 + $0x98] sm:$0xf]
    %v3233 = vld [vmem:[#allocation11 + $0x9c] sm:$0xf]
    %v3234 = vld [vmem:[#allocation11 + $0xa0] sm:$0xf]
    %v3235 = vld [vmem:[#allocation11 + $0xa4] sm:$0xf]
    %v3236 = vld [vmem:[#allocation11 + $0xa8] sm:$0xf]
    %v3237 = vld [vmem:[#allocation11 + $0xac] sm:$0xf]
    %v3238 = vld [vmem:[#allocation11 + $0xb0] sm:$0xf]
    %v3239 = vld [vmem:[#allocation11 + $0xb4] sm:$0xf]
    %v3240 = vld [vmem:[#allocation11 + $0xb8] sm:$0xf]
    %v3241 = vld [vmem:[#allocation11 + $0xbc] sm:$0xf]
    %v3242 = vld [vmem:[#allocation11 + $0xc0] sm:$0xf]
    %v3243 = vld [vmem:[#allocation11 + $0xc4] sm:$0xf]
    %v3244 = vld [vmem:[#allocation11 + $0xc8] sm:$0xf]
    %v3245 = vld [vmem:[#allocation11 + $0xcc] sm:$0xf]
    %v3246 = vld [vmem:[#allocation11 + $0xd0] sm:$0xf]
    %v3247 = vld [vmem:[#allocation11 + $0xd4] sm:$0xf]
    %v3248 = vld [vmem:[#allocation11 + $0xd8] sm:$0xf]
    %v3249 = vld [vmem:[#allocation11 + $0xdc] sm:$0xf]
    %v3250 = vld [vmem:[#allocation11 + $0xe0] sm:$0xf]
    %v3251 = vld [vmem:[#allocation11 + $0xe4] sm:$0xf]
    %v3252 = vld [vmem:[#allocation11 + $0xe8] sm:$0xf]
    %v3253 = vld [vmem:[#allocation11 + $0xec] sm:$0xf]
    %v3254 = vld [vmem:[#allocation11 + $0xf0] sm:$0xf]
    %v3255 = vld [vmem:[#allocation11 + $0xf4] sm:$0xf]
    %v3256 = vld [vmem:[#allocation11 + $0xf8] sm:$0xf]
    %v3257 = vld [vmem:[#allocation11 + $0xfc] sm:$0xf]
    %v3258 = vld [vmem:[#allocation13] sm:$0x1]
    %v3260 = vperm.slane %v3258, 0
    %v3326 = vunpack.c.l.b16 %v3194
    %v3327 = vunpack.c.l.b16 %v3195
    %v3328 = vunpack.c.l.b16 %v3196
    %v3329 = vunpack.c.l.b16 %v3197
    %v3330 = vunpack.c.l.b16 %v3198
    %v3331 = vunpack.c.l.b16 %v3199
    %v3332 = vunpack.c.l.b16 %v3200
    %v3333 = vunpack.c.l.b16 %v3201
    %v3334 = vunpack.c.l.b16 %v3202
    %v3335 = vunpack.c.l.b16 %v3203
    %v3336 = vunpack.c.l.b16 %v3204
    %v3337 = vunpack.c.l.b16 %v3205
    %v3338 = vunpack.c.l.b16 %v3206
    %v3339 = vunpack.c.l.b16 %v3207
    %v3340 = vunpack.c.l.b16 %v3208
    %v3341 = vunpack.c.l.b16 %v3209
    %v3342 = vunpack.c.l.b16 %v3210
    %v3343 = vunpack.c.l.b16 %v3211
    %v3344 = vunpack.c.l.b16 %v3212
    %v3345 = vunpack.c.l.b16 %v3213
    %v3346 = vunpack.c.l.b16 %v3214
    %v3347 = vunpack.c.l.b16 %v3215
    %v3348 = vunpack.c.l.b16 %v3216
    %v3349 = vunpack.c.l.b16 %v3217
    %v3350 = vunpack.c.l.b16 %v3218
    %v3351 = vunpack.c.l.b16 %v3219
    %v3352 = vunpack.c.l.b16 %v3220
    %v3353 = vunpack.c.l.b16 %v3221
    %v3354 = vunpack.c.l.b16 %v3222
    %v3355 = vunpack.c.l.b16 %v3223
    %v3356 = vunpack.c.l.b16 %v3224
    %v3357 = vunpack.c.l.b16 %v3225
    %v3358 = vunpack.c.l.b16 %v3226
    %v3359 = vunpack.c.l.b16 %v3227
    %v3360 = vunpack.c.l.b16 %v3228
    %v3361 = vunpack.c.l.b16 %v3229
    %v3362 = vunpack.c.l.b16 %v3230
    %v3363 = vunpack.c.l.b16 %v3231
    %v3364 = vunpack.c.l.b16 %v3232
    %v3365 = vunpack.c.l.b16 %v3233
    %v3366 = vunpack.c.l.b16 %v3234
    %v3367 = vunpack.c.l.b16 %v3235
    %v3368 = vunpack.c.l.b16 %v3236
    %v3369 = vunpack.c.l.b16 %v3237
    %v3370 = vunpack.c.l.b16 %v3238
    %v3371 = vunpack.c.l.b16 %v3239
    %v3372 = vunpack.c.l.b16 %v3240
    %v3373 = vunpack.c.l.b16 %v3241
    %v3374 = vunpack.c.l.b16 %v3242
    %v3375 = vunpack.c.l.b16 %v3243
    %v3376 = vunpack.c.l.b16 %v3244
    %v3377 = vunpack.c.l.b16 %v3245
    %v3378 = vunpack.c.l.b16 %v3246
    %v3379 = vunpack.c.l.b16 %v3247
    %v3380 = vunpack.c.l.b16 %v3248
    %v3381 = vunpack.c.l.b16 %v3249
    %v3382 = vunpack.c.l.b16 %v3250
    %v3383 = vunpack.c.l.b16 %v3251
    %v3384 = vunpack.c.l.b16 %v3252
    %v3385 = vunpack.c.l.b16 %v3253
    %v3386 = vunpack.c.l.b16 %v3254
    %v3387 = vunpack.c.l.b16 %v3255
    %v3388 = vunpack.c.l.b16 %v3256
    %v3389 = vunpack.c.l.b16 %v3257
    %v3390 = vpack.c.b16 %v3327, %v3326
    %v3391 = vpack.c.b16 %v3329, %v3328
    %v3392 = vpack.c.b16 %v3331, %v3330
    %v3393 = vpack.c.b16 %v3333, %v3332
    %v3394 = vpack.c.b16 %v3335, %v3334
    %v3395 = vpack.c.b16 %v3337, %v3336
    %v3396 = vpack.c.b16 %v3339, %v3338
    %v3397 = vpack.c.b16 %v3341, %v3340
    %v3398 = vpack.c.b16 %v3343, %v3342
    %v3399 = vpack.c.b16 %v3345, %v3344
    %v3400 = vpack.c.b16 %v3347, %v3346
    %v3401 = vpack.c.b16 %v3349, %v3348
    %v3402 = vpack.c.b16 %v3351, %v3350
    %v3403 = vpack.c.b16 %v3353, %v3352
    %v3404 = vpack.c.b16 %v3355, %v3354
    %v3405 = vpack.c.b16 %v3357, %v3356
    %v3406 = vpack.c.b16 %v3359, %v3358
    %v3407 = vpack.c.b16 %v3361, %v3360
    %v3408 = vpack.c.b16 %v3363, %v3362
    %v3409 = vpack.c.b16 %v3365, %v3364
    %v3410 = vpack.c.b16 %v3367, %v3366
    %v3411 = vpack.c.b16 %v3369, %v3368
    %v3412 = vpack.c.b16 %v3371, %v3370
    %v3413 = vpack.c.b16 %v3373, %v3372
    %v3414 = vpack.c.b16 %v3375, %v3374
    %v3415 = vpack.c.b16 %v3377, %v3376
    %v3416 = vpack.c.b16 %v3379, %v3378
    %v3417 = vpack.c.b16 %v3381, %v3380
    %v3418 = vpack.c.b16 %v3383, %v3382
    %v3419 = vpack.c.b16 %v3385, %v3384
    %v3420 = vpack.c.b16 %v3387, %v3386
    %v3421 = vpack.c.b16 %v3389, %v3388
    %3454 = vmatpush.bf16.msra.mxu0 %v3397
    %3455 = vmatpush.bf16.msra.mxu0 %v3396
    %3456 = vmatpush.bf16.msra.mxu0 %v3395
    %3457 = vmatpush.bf16.msra.mxu0 %v3394
    %3458 = vmatpush.bf16.msra.mxu0 %v3393
    %3459 = vmatpush.bf16.msra.mxu0 %v3392
    %3460 = vmatpush.bf16.msra.mxu0 %v3391
    %3461 = vmatpush.bf16.msra.mxu0 %v3390
    %3462 = vmatmul.bf16.gmra.mxu0 %v3190
    %v3463 = vpop.f32.mrf.mxu0
    %v3464 = vadd.f32 %v3260, %v3463
    %v3465 = vpop.f32.mrf.mxu0
    %3466 = vdwg.mxu0
    %3467 = vmatpush.bf16.msra.mxu0 %v3405
    %3468 = vmatpush.bf16.msra.mxu0 %v3404
    %3469 = vmatpush.bf16.msra.mxu0 %v3403
    %3470 = vmatpush.bf16.msra.mxu0 %v3402
    %3471 = vmatpush.bf16.msra.mxu0 %v3401
    %3472 = vmatpush.bf16.msra.mxu0 %v3400
    %3473 = vmatpush.bf16.msra.mxu0 %v3399
    %3474 = vmatpush.bf16.msra.mxu0 %v3398
    %3475 = vmatmul.bf16.gmra.mxu0 %v3191
    %v3476 = vpop.f32.mrf.mxu0
    %v3477 = vadd.f32 %v3464, %v3476
    %v3478 = vpop.f32.mrf.mxu0
    %3479 = vdwg.mxu0
    %3480 = vmatpush.bf16.msra.mxu0 %v3413
    %3481 = vmatpush.bf16.msra.mxu0 %v3412
    %3482 = vmatpush.bf16.msra.mxu0 %v3411
    %3483 = vmatpush.bf16.msra.mxu0 %v3410
    %3484 = vmatpush.bf16.msra.mxu0 %v3409
    %3485 = vmatpush.bf16.msra.mxu0 %v3408
    %3486 = vmatpush.bf16.msra.mxu0 %v3407
    %3487 = vmatpush.bf16.msra.mxu0 %v3406
    %3488 = vmatmul.bf16.gmra.mxu0 %v3192
    %v3489 = vpop.f32.mrf.mxu0
    %v3490 = vadd.f32 %v3477, %v3489
    %v3491 = vpop.f32.mrf.mxu0
    %3492 = vdwg.mxu0
    %3493 = vmatpush.bf16.msra.mxu0 %v3421
    %3494 = vmatpush.bf16.msra.mxu0 %v3420
    %3495 = vmatpush.bf16.msra.mxu0 %v3419
    %3496 = vmatpush.bf16.msra.mxu0 %v3418
    %3497 = vmatpush.bf16.msra.mxu0 %v3417
    %3498 = vmatpush.bf16.msra.mxu0 %v3416
    %3499 = vmatpush.bf16.msra.mxu0 %v3415
    %3500 = vmatpush.bf16.msra.mxu0 %v3414
    %3501 = vmatmul.bf16.gmra.mxu0 %v3193
    %v3502 = vpop.f32.mrf.mxu0
    %v3503 = vadd.f32 %v3490, %v3502
    %v3504 = vpop.f32.mrf.mxu0
    %3505 = vdwg.mxu0
    %v3506 = vmax.f32 %v3503, 0.0
    %v3507 = vpack.c.bf16 %v3506, %v3506
    %v3508 = vld [vmem:[#allocation14] sm:$0xff]
    %v3509 = vld [vmem:[#allocation14 + $0x8] sm:$0xff]
    %v3510 = vld [vmem:[#allocation14 + $0x10] sm:$0xff]
    %v3511 = vld [vmem:[#allocation14 + $0x18] sm:$0xff]
    %v3512 = vld [vmem:[#allocation14 + $0x20] sm:$0xff]
    %v3513 = vld [vmem:[#allocation14 + $0x28] sm:$0xff]
    %v3514 = vld [vmem:[#allocation14 + $0x30] sm:$0xff]
    %v3515 = vld [vmem:[#allocation14 + $0x38] sm:$0xff]
    %v3516 = vld [vmem:[#allocation14 + $0x40] sm:$0xff]
    %v3517 = vld [vmem:[#allocation14 + $0x48] sm:$0xff]
    %v3518 = vld [vmem:[#allocation14 + $0x50] sm:$0xff]
    %v3519 = vld [vmem:[#allocation14 + $0x58] sm:$0xff]
    %v3520 = vld [vmem:[#allocation14 + $0x60] sm:$0xff]
    %v3521 = vld [vmem:[#allocation14 + $0x68] sm:$0xff]
    %v3522 = vld [vmem:[#allocation14 + $0x70] sm:$0xff]
    %v3523 = vld [vmem:[#allocation14 + $0x78] sm:$0xff]
    %v3524 = vld [vmem:[#allocation14 + $0x80] sm:$0xff]
    %v3525 = vld [vmem:[#allocation14 + $0x88] sm:$0xff]
    %v3526 = vld [vmem:[#allocation14 + $0x90] sm:$0xff]
    %v3527 = vld [vmem:[#allocation14 + $0x98] sm:$0xff]
    %v3528 = vld [vmem:[#allocation14 + $0xa0] sm:$0xff]
    %v3529 = vld [vmem:[#allocation14 + $0xa8] sm:$0xff]
    %v3530 = vld [vmem:[#allocation14 + $0xb0] sm:$0xff]
    %v3531 = vld [vmem:[#allocation14 + $0xb8] sm:$0xff]
    %v3532 = vld [vmem:[#allocation14 + $0xc0] sm:$0xff]
    %v3533 = vld [vmem:[#allocation14 + $0xc8] sm:$0xff]
    %v3534 = vld [vmem:[#allocation14 + $0xd0] sm:$0xff]
    %v3535 = vld [vmem:[#allocation14 + $0xd8] sm:$0xff]
    %v3536 = vld [vmem:[#allocation14 + $0xe0] sm:$0xff]
    %v3537 = vld [vmem:[#allocation14 + $0xe8] sm:$0xff]
    %v3538 = vld [vmem:[#allocation14 + $0xf0] sm:$0xff]
    %v3539 = vld [vmem:[#allocation14 + $0xf8] sm:$0xff]
    %v3540 = vld [vmem:[#allocation16] sm:$0xf]
    %v3542 = vperm.slane %v3540, 0
    %v3543 = vperm.slane %v3540, 1
    %v3544 = vperm.slane %v3540, 2
    %v3545 = vperm.slane %v3540, 3
    %v3582 = vunpack.c.l.b16 %v3508
    %v3583 = vunpack.c.h.b16 %v3508
    %v3584 = vunpack.c.l.b16 %v3509
    %v3585 = vunpack.c.h.b16 %v3509
    %v3586 = vunpack.c.l.b16 %v3510
    %v3587 = vunpack.c.h.b16 %v3510
    %v3588 = vunpack.c.l.b16 %v3511
    %v3589 = vunpack.c.h.b16 %v3511
    %v3590 = vunpack.c.l.b16 %v3512
    %v3591 = vunpack.c.h.b16 %v3512
    %v3592 = vunpack.c.l.b16 %v3513
    %v3593 = vunpack.c.h.b16 %v3513
    %v3594 = vunpack.c.l.b16 %v3514
    %v3595 = vunpack.c.h.b16 %v3514
    %v3596 = vunpack.c.l.b16 %v3515
    %v3597 = vunpack.c.h.b16 %v3515
    %v3598 = vunpack.c.l.b16 %v3516
    %v3599 = vunpack.c.h.b16 %v3516
    %v3600 = vunpack.c.l.b16 %v3517
    %v3601 = vunpack.c.h.b16 %v3517
    %v3602 = vunpack.c.l.b16 %v3518
    %v3603 = vunpack.c.h.b16 %v3518
    %v3604 = vunpack.c.l.b16 %v3519
    %v3605 = vunpack.c.h.b16 %v3519
    %v3606 = vunpack.c.l.b16 %v3520
    %v3607 = vunpack.c.h.b16 %v3520
    %v3608 = vunpack.c.l.b16 %v3521
    %v3609 = vunpack.c.h.b16 %v3521
    %v3610 = vunpack.c.l.b16 %v3522
    %v3611 = vunpack.c.h.b16 %v3522
    %v3612 = vunpack.c.l.b16 %v3523
    %v3613 = vunpack.c.h.b16 %v3523
    %v3614 = vunpack.c.l.b16 %v3524
    %v3615 = vunpack.c.h.b16 %v3524
    %v3616 = vunpack.c.l.b16 %v3525
    %v3617 = vunpack.c.h.b16 %v3525
    %v3618 = vunpack.c.l.b16 %v3526
    %v3619 = vunpack.c.h.b16 %v3526
    %v3620 = vunpack.c.l.b16 %v3527
    %v3621 = vunpack.c.h.b16 %v3527
    %v3622 = vunpack.c.l.b16 %v3528
    %v3623 = vunpack.c.h.b16 %v3528
    %v3624 = vunpack.c.l.b16 %v3529
    %v3625 = vunpack.c.h.b16 %v3529
    %v3626 = vunpack.c.l.b16 %v3530
    %v3627 = vunpack.c.h.b16 %v3530
    %v3628 = vunpack.c.l.b16 %v3531
    %v3629 = vunpack.c.h.b16 %v3531
    %v3630 = vunpack.c.l.b16 %v3532
    %v3631 = vunpack.c.h.b16 %v3532
    %v3632 = vunpack.c.l.b16 %v3533
    %v3633 = vunpack.c.h.b16 %v3533
    %v3634 = vunpack.c.l.b16 %v3534
    %v3635 = vunpack.c.h.b16 %v3534
    %v3636 = vunpack.c.l.b16 %v3535
    %v3637 = vunpack.c.h.b16 %v3535
    %v3638 = vunpack.c.l.b16 %v3536
    %v3639 = vunpack.c.h.b16 %v3536
    %v3640 = vunpack.c.l.b16 %v3537
    %v3641 = vunpack.c.h.b16 %v3537
    %v3642 = vunpack.c.l.b16 %v3538
    %v3643 = vunpack.c.h.b16 %v3538
    %v3644 = vunpack.c.l.b16 %v3539
    %v3645 = vunpack.c.h.b16 %v3539
    %v3646 = vpack.c.b16 %v3586, %v3582
    %v3647 = vpack.c.b16 %v3587, %v3583
    %v3648 = vpack.c.b16 %v3588, %v3584
    %v3649 = vpack.c.b16 %v3589, %v3585
    %v3650 = vpack.c.b16 %v3594, %v3590
    %v3651 = vpack.c.b16 %v3595, %v3591
    %v3652 = vpack.c.b16 %v3596, %v3592
    %v3653 = vpack.c.b16 %v3597, %v3593
    %v3654 = vpack.c.b16 %v3602, %v3598
    %v3655 = vpack.c.b16 %v3603, %v3599
    %v3656 = vpack.c.b16 %v3604, %v3600
    %v3657 = vpack.c.b16 %v3605, %v3601
    %v3658 = vpack.c.b16 %v3610, %v3606
    %v3659 = vpack.c.b16 %v3611, %v3607
    %v3660 = vpack.c.b16 %v3612, %v3608
    %v3661 = vpack.c.b16 %v3613, %v3609
    %v3662 = vpack.c.b16 %v3618, %v3614
    %v3663 = vpack.c.b16 %v3619, %v3615
    %v3664 = vpack.c.b16 %v3620, %v3616
    %v3665 = vpack.c.b16 %v3621, %v3617
    %v3666 = vpack.c.b16 %v3626, %v3622
    %v3667 = vpack.c.b16 %v3627, %v3623
    %v3668 = vpack.c.b16 %v3628, %v3624
    %v3669 = vpack.c.b16 %v3629, %v3625
    %v3670 = vpack.c.b16 %v3634, %v3630
    %v3671 = vpack.c.b16 %v3635, %v3631
    %v3672 = vpack.c.b16 %v3636, %v3632
    %v3673 = vpack.c.b16 %v3637, %v3633
    %v3674 = vpack.c.b16 %v3642, %v3638
    %v3675 = vpack.c.b16 %v3643, %v3639
    %v3676 = vpack.c.b16 %v3644, %v3640
    %v3677 = vpack.c.b16 %v3645, %v3641
    %3710 = vmatpush.bf16.msra.mxu0 %v3674
    %3711 = vmatpush.bf16.msra.mxu0 %v3670
    %3712 = vmatpush.bf16.msra.mxu0 %v3666
    %3713 = vmatpush.bf16.msra.mxu0 %v3662
    %3714 = vmatpush.bf16.msra.mxu0 %v3658
    %3715 = vmatpush.bf16.msra.mxu0 %v3654
    %3716 = vmatpush.bf16.msra.mxu0 %v3650
    %3717 = vmatpush.bf16.msra.mxu0 %v3646
    %3718 = vmatmul.bf16.gmra.mxu0 %v3507
    %v3719 = vpop.f32.mrf.mxu0
    %v3720 = vadd.f32 %v3542, %v3719
    %v3721 = vpop.f32.mrf.mxu0
    %3722 = vdwg.mxu0
    %3723 = vmatpush.bf16.msra.mxu0 %v3675
    %3724 = vmatpush.bf16.msra.mxu0 %v3671
    %3725 = vmatpush.bf16.msra.mxu0 %v3667
    %3726 = vmatpush.bf16.msra.mxu0 %v3663
    %3727 = vmatpush.bf16.msra.mxu0 %v3659
    %3728 = vmatpush.bf16.msra.mxu0 %v3655
    %3729 = vmatpush.bf16.msra.mxu0 %v3651
    %3730 = vmatpush.bf16.msra.mxu0 %v3647
    %3731 = vmatmul.bf16.gmra.mxu0 %v3507
    %v3732 = vpop.f32.mrf.mxu0
    %v3733 = vadd.f32 %v3543, %v3732
    %v3734 = vpop.f32.mrf.mxu0
    %3735 = vdwg.mxu0
    %3736 = vmatpush.bf16.msra.mxu0 %v3676
    %3737 = vmatpush.bf16.msra.mxu0 %v3672
    %3738 = vmatpush.bf16.msra.mxu0 %v3668
    %3739 = vmatpush.bf16.msra.mxu0 %v3664
    %3740 = vmatpush.bf16.msra.mxu0 %v3660
    %3741 = vmatpush.bf16.msra.mxu0 %v3656
    %3742 = vmatpush.bf16.msra.mxu0 %v3652
    %3743 = vmatpush.bf16.msra.mxu0 %v3648
    %3744 = vmatmul.bf16.gmra.mxu0 %v3507
    %v3745 = vpop.f32.mrf.mxu0
    %v3746 = vadd.f32 %v3544, %v3745
    %v3747 = vpop.f32.mrf.mxu0
    %3748 = vdwg.mxu0
    %3749 = vmatpush.bf16.msra.mxu0 %v3677
    %3750 = vmatpush.bf16.msra.mxu0 %v3673
    %3751 = vmatpush.bf16.msra.mxu0 %v3669
    %3752 = vmatpush.bf16.msra.mxu0 %v3665
    %3753 = vmatpush.bf16.msra.mxu0 %v3661
    %3754 = vmatpush.bf16.msra.mxu0 %v3657
    %3755 = vmatpush.bf16.msra.mxu0 %v3653
    %3756 = vmatpush.bf16.msra.mxu0 %v3649
    %3757 = vmatmul.bf16.gmra.mxu0 %v3507
    %v3758 = vpop.f32.mrf.mxu0
    %v3759 = vadd.f32 %v3545, %v3758
    %v3760 = vpop.f32.mrf.mxu0
    %3761 = vdwg.mxu0
    %v3762 = vmax.f32 %v3720, 0.0
    %v3763 = vmax.f32 %v3733, 0.0
    %v3764 = vmax.f32 %v3746, 0.0
    %v3765 = vmax.f32 %v3759, 0.0
    %v3766 = vpack.c.bf16 %v3762, %v3762
    %v3767 = vpack.c.bf16 %v3763, %v3763
    %v3768 = vpack.c.bf16 %v3764, %v3764
    %v3769 = vpack.c.bf16 %v3765, %v3765
    %v3770 = vld [vmem:[#allocation17] sm:$0xff]
    %v3771 = vld [vmem:[#allocation17 + $0x8] sm:$0xff]
    %v3772 = vld [vmem:[#allocation17 + $0x10] sm:$0xff]
    %v3773 = vld [vmem:[#allocation17 + $0x18] sm:$0xff]
    %v3774 = vld [vmem:[#allocation17 + $0x20] sm:$0xff]
    %v3775 = vld [vmem:[#allocation17 + $0x28] sm:$0xff]
    %v3776 = vld [vmem:[#allocation17 + $0x30] sm:$0xff]
    %v3777 = vld [vmem:[#allocation17 + $0x38] sm:$0xff]
    %v3778 = vld [vmem:[#allocation17 + $0x40] sm:$0xff]
    %v3779 = vld [vmem:[#allocation17 + $0x48] sm:$0xff]
    %v3780 = vld [vmem:[#allocation17 + $0x50] sm:$0xff]
    %v3781 = vld [vmem:[#allocation17 + $0x58] sm:$0xff]
    %v3782 = vld [vmem:[#allocation17 + $0x60] sm:$0xff]
    %v3783 = vld [vmem:[#allocation17 + $0x68] sm:$0xff]
    %v3784 = vld [vmem:[#allocation17 + $0x70] sm:$0xff]
    %v3785 = vld [vmem:[#allocation17 + $0x78] sm:$0xff]
    %v3786 = vld [vmem:[#allocation17 + $0x80] sm:$0xff]
    %v3787 = vld [vmem:[#allocation17 + $0x88] sm:$0xff]
    %v3788 = vld [vmem:[#allocation17 + $0x90] sm:$0xff]
    %v3789 = vld [vmem:[#allocation17 + $0x98] sm:$0xff]
    %v3790 = vld [vmem:[#allocation17 + $0xa0] sm:$0xff]
    %v3791 = vld [vmem:[#allocation17 + $0xa8] sm:$0xff]
    %v3792 = vld [vmem:[#allocation17 + $0xb0] sm:$0xff]
    %v3793 = vld [vmem:[#allocation17 + $0xb8] sm:$0xff]
    %v3794 = vld [vmem:[#allocation17 + $0xc0] sm:$0xff]
    %v3795 = vld [vmem:[#allocation17 + $0xc8] sm:$0xff]
    %v3796 = vld [vmem:[#allocation17 + $0xd0] sm:$0xff]
    %v3797 = vld [vmem:[#allocation17 + $0xd8] sm:$0xff]
    %v3798 = vld [vmem:[#allocation17 + $0xe0] sm:$0xff]
    %v3799 = vld [vmem:[#allocation17 + $0xe8] sm:$0xff]
    %v3800 = vld [vmem:[#allocation17 + $0xf0] sm:$0xff]
    %v3801 = vld [vmem:[#allocation17 + $0xf8] sm:$0xff]
    %v3802 = vld [vmem:[#allocation17 + $0x100] sm:$0xff]
    %v3803 = vld [vmem:[#allocation17 + $0x108] sm:$0xff]
    %v3804 = vld [vmem:[#allocation17 + $0x110] sm:$0xff]
    %v3805 = vld [vmem:[#allocation17 + $0x118] sm:$0xff]
    %v3806 = vld [vmem:[#allocation17 + $0x120] sm:$0xff]
    %v3807 = vld [vmem:[#allocation17 + $0x128] sm:$0xff]
    %v3808 = vld [vmem:[#allocation17 + $0x130] sm:$0xff]
    %v3809 = vld [vmem:[#allocation17 + $0x138] sm:$0xff]
    %v3810 = vld [vmem:[#allocation17 + $0x140] sm:$0xff]
    %v3811 = vld [vmem:[#allocation17 + $0x148] sm:$0xff]
    %v3812 = vld [vmem:[#allocation17 + $0x150] sm:$0xff]
    %v3813 = vld [vmem:[#allocation17 + $0x158] sm:$0xff]
    %v3814 = vld [vmem:[#allocation17 + $0x160] sm:$0xff]
    %v3815 = vld [vmem:[#allocation17 + $0x168] sm:$0xff]
    %v3816 = vld [vmem:[#allocation17 + $0x170] sm:$0xff]
    %v3817 = vld [vmem:[#allocation17 + $0x178] sm:$0xff]
    %v3818 = vld [vmem:[#allocation17 + $0x180] sm:$0xff]
    %v3819 = vld [vmem:[#allocation17 + $0x188] sm:$0xff]
    %v3820 = vld [vmem:[#allocation17 + $0x190] sm:$0xff]
    %v3821 = vld [vmem:[#allocation17 + $0x198] sm:$0xff]
    %v3822 = vld [vmem:[#allocation17 + $0x1a0] sm:$0xff]
    %v3823 = vld [vmem:[#allocation17 + $0x1a8] sm:$0xff]
    %v3824 = vld [vmem:[#allocation17 + $0x1b0] sm:$0xff]
    %v3825 = vld [vmem:[#allocation17 + $0x1b8] sm:$0xff]
    %v3826 = vld [vmem:[#allocation17 + $0x1c0] sm:$0xff]
    %v3827 = vld [vmem:[#allocation17 + $0x1c8] sm:$0xff]
    %v3828 = vld [vmem:[#allocation17 + $0x1d0] sm:$0xff]
    %v3829 = vld [vmem:[#allocation17 + $0x1d8] sm:$0xff]
    %v3830 = vld [vmem:[#allocation17 + $0x1e0] sm:$0xff]
    %v3831 = vld [vmem:[#allocation17 + $0x1e8] sm:$0xff]
    %v3832 = vld [vmem:[#allocation17 + $0x1f0] sm:$0xff]
    %v3833 = vld [vmem:[#allocation17 + $0x1f8] sm:$0xff]
    %v3834 = vld [vmem:[#allocation17 + $0x200] sm:$0xff]
    %v3835 = vld [vmem:[#allocation17 + $0x208] sm:$0xff]
    %v3836 = vld [vmem:[#allocation17 + $0x210] sm:$0xff]
    %v3837 = vld [vmem:[#allocation17 + $0x218] sm:$0xff]
    %v3838 = vld [vmem:[#allocation17 + $0x220] sm:$0xff]
    %v3839 = vld [vmem:[#allocation17 + $0x228] sm:$0xff]
    %v3840 = vld [vmem:[#allocation17 + $0x230] sm:$0xff]
    %v3841 = vld [vmem:[#allocation17 + $0x238] sm:$0xff]
    %v3842 = vld [vmem:[#allocation17 + $0x240] sm:$0xff]
    %v3843 = vld [vmem:[#allocation17 + $0x248] sm:$0xff]
    %v3844 = vld [vmem:[#allocation17 + $0x250] sm:$0xff]
    %v3845 = vld [vmem:[#allocation17 + $0x258] sm:$0xff]
    %v3846 = vld [vmem:[#allocation17 + $0x260] sm:$0xff]
    %v3847 = vld [vmem:[#allocation17 + $0x268] sm:$0xff]
    %v3848 = vld [vmem:[#allocation17 + $0x270] sm:$0xff]
    %v3849 = vld [vmem:[#allocation17 + $0x278] sm:$0xff]
    %v3850 = vld [vmem:[#allocation17 + $0x280] sm:$0xff]
    %v3851 = vld [vmem:[#allocation17 + $0x288] sm:$0xff]
    %v3852 = vld [vmem:[#allocation17 + $0x290] sm:$0xff]
    %v3853 = vld [vmem:[#allocation17 + $0x298] sm:$0xff]
    %v3854 = vld [vmem:[#allocation17 + $0x2a0] sm:$0xff]
    %v3855 = vld [vmem:[#allocation17 + $0x2a8] sm:$0xff]
    %v3856 = vld [vmem:[#allocation17 + $0x2b0] sm:$0xff]
    %v3857 = vld [vmem:[#allocation17 + $0x2b8] sm:$0xff]
    %v3858 = vld [vmem:[#allocation17 + $0x2c0] sm:$0xff]
    %v3859 = vld [vmem:[#allocation17 + $0x2c8] sm:$0xff]
    %v3860 = vld [vmem:[#allocation17 + $0x2d0] sm:$0xff]
    %v3861 = vld [vmem:[#allocation17 + $0x2d8] sm:$0xff]
    %v3862 = vld [vmem:[#allocation17 + $0x2e0] sm:$0xff]
    %v3863 = vld [vmem:[#allocation17 + $0x2e8] sm:$0xff]
    %v3864 = vld [vmem:[#allocation17 + $0x2f0] sm:$0xff]
    %v3865 = vld [vmem:[#allocation17 + $0x2f8] sm:$0xff]
    %v3866 = vld [vmem:[#allocation17 + $0x300] sm:$0xff]
    %v3867 = vld [vmem:[#allocation17 + $0x308] sm:$0xff]
    %v3868 = vld [vmem:[#allocation17 + $0x310] sm:$0xff]
    %v3869 = vld [vmem:[#allocation17 + $0x318] sm:$0xff]
    %v3870 = vld [vmem:[#allocation17 + $0x320] sm:$0xff]
    %v3871 = vld [vmem:[#allocation17 + $0x328] sm:$0xff]
    %v3872 = vld [vmem:[#allocation17 + $0x330] sm:$0xff]
    %v3873 = vld [vmem:[#allocation17 + $0x338] sm:$0xff]
    %v3874 = vld [vmem:[#allocation17 + $0x340] sm:$0xff]
    %v3875 = vld [vmem:[#allocation17 + $0x348] sm:$0xff]
    %v3876 = vld [vmem:[#allocation17 + $0x350] sm:$0xff]
    %v3877 = vld [vmem:[#allocation17 + $0x358] sm:$0xff]
    %v3878 = vld [vmem:[#allocation17 + $0x360] sm:$0xff]
    %v3879 = vld [vmem:[#allocation17 + $0x368] sm:$0xff]
    %v3880 = vld [vmem:[#allocation17 + $0x370] sm:$0xff]
    %v3881 = vld [vmem:[#allocation17 + $0x378] sm:$0xff]
    %v3882 = vld [vmem:[#allocation17 + $0x380] sm:$0xff]
    %v3883 = vld [vmem:[#allocation17 + $0x388] sm:$0xff]
    %v3884 = vld [vmem:[#allocation17 + $0x390] sm:$0xff]
    %v3885 = vld [vmem:[#allocation17 + $0x398] sm:$0xff]
    %v3886 = vld [vmem:[#allocation17 + $0x3a0] sm:$0xff]
    %v3887 = vld [vmem:[#allocation17 + $0x3a8] sm:$0xff]
    %v3888 = vld [vmem:[#allocation17 + $0x3b0] sm:$0xff]
    %v3889 = vld [vmem:[#allocation17 + $0x3b8] sm:$0xff]
    %v3890 = vld [vmem:[#allocation17 + $0x3c0] sm:$0xff]
    %v3891 = vld [vmem:[#allocation17 + $0x3c8] sm:$0xff]
    %v3892 = vld [vmem:[#allocation17 + $0x3d0] sm:$0xff]
    %v3893 = vld [vmem:[#allocation17 + $0x3d8] sm:$0xff]
    %v3894 = vld [vmem:[#allocation17 + $0x3e0] sm:$0xff]
    %v3895 = vld [vmem:[#allocation17 + $0x3e8] sm:$0xff]
    %v3896 = vld [vmem:[#allocation17 + $0x3f0] sm:$0xff]
    %v3897 = vld [vmem:[#allocation17 + $0x3f8] sm:$0xff]
    %v3898 = vld [vmem:[#allocation17 + $0x400] sm:$0xff]
    %v3899 = vld [vmem:[#allocation17 + $0x408] sm:$0xff]
    %v3900 = vld [vmem:[#allocation17 + $0x410] sm:$0xff]
    %v3901 = vld [vmem:[#allocation17 + $0x418] sm:$0xff]
    %v3902 = vld [vmem:[#allocation17 + $0x420] sm:$0xff]
    %v3903 = vld [vmem:[#allocation17 + $0x428] sm:$0xff]
    %v3904 = vld [vmem:[#allocation17 + $0x430] sm:$0xff]
    %v3905 = vld [vmem:[#allocation17 + $0x438] sm:$0xff]
    %v3906 = vld [vmem:[#allocation17 + $0x440] sm:$0xff]
    %v3907 = vld [vmem:[#allocation17 + $0x448] sm:$0xff]
    %v3908 = vld [vmem:[#allocation17 + $0x450] sm:$0xff]
    %v3909 = vld [vmem:[#allocation17 + $0x458] sm:$0xff]
    %v3910 = vld [vmem:[#allocation17 + $0x460] sm:$0xff]
    %v3911 = vld [vmem:[#allocation17 + $0x468] sm:$0xff]
    %v3912 = vld [vmem:[#allocation17 + $0x470] sm:$0xff]
    %v3913 = vld [vmem:[#allocation17 + $0x478] sm:$0xff]
    %v3914 = vld [vmem:[#allocation17 + $0x480] sm:$0xff]
    %v3915 = vld [vmem:[#allocation17 + $0x488] sm:$0xff]
    %v3916 = vld [vmem:[#allocation17 + $0x490] sm:$0xff]
    %v3917 = vld [vmem:[#allocation17 + $0x498] sm:$0xff]
    %v3918 = vld [vmem:[#allocation17 + $0x4a0] sm:$0xff]
    %v3919 = vld [vmem:[#allocation17 + $0x4a8] sm:$0xff]
    %v3920 = vld [vmem:[#allocation17 + $0x4b0] sm:$0xff]
    %v3921 = vld [vmem:[#allocation17 + $0x4b8] sm:$0xff]
    %v3922 = vld [vmem:[#allocation17 + $0x4c0] sm:$0xff]
    %v3923 = vld [vmem:[#allocation17 + $0x4c8] sm:$0xff]
    %v3924 = vld [vmem:[#allocation17 + $0x4d0] sm:$0xff]
    %v3925 = vld [vmem:[#allocation17 + $0x4d8] sm:$0xff]
    %v3926 = vld [vmem:[#allocation17 + $0x4e0] sm:$0xff]
    %v3927 = vld [vmem:[#allocation17 + $0x4e8] sm:$0xff]
    %v3928 = vld [vmem:[#allocation17 + $0x4f0] sm:$0xff]
    %v3929 = vld [vmem:[#allocation17 + $0x4f8] sm:$0xff]
    %v3930 = vld [vmem:[#allocation17 + $0x500] sm:$0xff]
    %v3931 = vld [vmem:[#allocation17 + $0x508] sm:$0xff]
    %v3932 = vld [vmem:[#allocation17 + $0x510] sm:$0xff]
    %v3933 = vld [vmem:[#allocation17 + $0x518] sm:$0xff]
    %v3934 = vld [vmem:[#allocation17 + $0x520] sm:$0xff]
    %v3935 = vld [vmem:[#allocation17 + $0x528] sm:$0xff]
    %v3936 = vld [vmem:[#allocation17 + $0x530] sm:$0xff]
    %v3937 = vld [vmem:[#allocation17 + $0x538] sm:$0xff]
    %v3938 = vld [vmem:[#allocation17 + $0x540] sm:$0xff]
    %v3939 = vld [vmem:[#allocation17 + $0x548] sm:$0xff]
    %v3940 = vld [vmem:[#allocation17 + $0x550] sm:$0xff]
    %v3941 = vld [vmem:[#allocation17 + $0x558] sm:$0xff]
    %v3942 = vld [vmem:[#allocation17 + $0x560] sm:$0xff]
    %v3943 = vld [vmem:[#allocation17 + $0x568] sm:$0xff]
    %v3944 = vld [vmem:[#allocation17 + $0x570] sm:$0xff]
    %v3945 = vld [vmem:[#allocation17 + $0x578] sm:$0xff]
    %v3946 = vld [vmem:[#allocation17 + $0x580] sm:$0xff]
    %v3947 = vld [vmem:[#allocation17 + $0x588] sm:$0xff]
    %v3948 = vld [vmem:[#allocation17 + $0x590] sm:$0xff]
    %v3949 = vld [vmem:[#allocation17 + $0x598] sm:$0xff]
    %v3950 = vld [vmem:[#allocation17 + $0x5a0] sm:$0xff]
    %v3951 = vld [vmem:[#allocation17 + $0x5a8] sm:$0xff]
    %v3952 = vld [vmem:[#allocation17 + $0x5b0] sm:$0xff]
    %v3953 = vld [vmem:[#allocation17 + $0x5b8] sm:$0xff]
    %v3954 = vld [vmem:[#allocation17 + $0x5c0] sm:$0xff]
    %v3955 = vld [vmem:[#allocation17 + $0x5c8] sm:$0xff]
    %v3956 = vld [vmem:[#allocation17 + $0x5d0] sm:$0xff]
    %v3957 = vld [vmem:[#allocation17 + $0x5d8] sm:$0xff]
    %v3958 = vld [vmem:[#allocation17 + $0x5e0] sm:$0xff]
    %v3959 = vld [vmem:[#allocation17 + $0x5e8] sm:$0xff]
    %v3960 = vld [vmem:[#allocation17 + $0x5f0] sm:$0xff]
    %v3961 = vld [vmem:[#allocation17 + $0x5f8] sm:$0xff]
    %v3962 = vld [vmem:[#allocation17 + $0x600] sm:$0xff]
    %v3963 = vld [vmem:[#allocation17 + $0x608] sm:$0xff]
    %v3964 = vld [vmem:[#allocation17 + $0x610] sm:$0xff]
    %v3965 = vld [vmem:[#allocation17 + $0x618] sm:$0xff]
    %v3966 = vld [vmem:[#allocation17 + $0x620] sm:$0xff]
    %v3967 = vld [vmem:[#allocation17 + $0x628] sm:$0xff]
    %v3968 = vld [vmem:[#allocation17 + $0x630] sm:$0xff]
    %v3969 = vld [vmem:[#allocation17 + $0x638] sm:$0xff]
    %v3970 = vld [vmem:[#allocation17 + $0x640] sm:$0xff]
    %v3971 = vld [vmem:[#allocation17 + $0x648] sm:$0xff]
    %v3972 = vld [vmem:[#allocation17 + $0x650] sm:$0xff]
    %v3973 = vld [vmem:[#allocation17 + $0x658] sm:$0xff]
    %v3974 = vld [vmem:[#allocation17 + $0x660] sm:$0xff]
    %v3975 = vld [vmem:[#allocation17 + $0x668] sm:$0xff]
    %v3976 = vld [vmem:[#allocation17 + $0x670] sm:$0xff]
    %v3977 = vld [vmem:[#allocation17 + $0x678] sm:$0xff]
    %v3978 = vld [vmem:[#allocation17 + $0x680] sm:$0xff]
    %v3979 = vld [vmem:[#allocation17 + $0x688] sm:$0xff]
    %v3980 = vld [vmem:[#allocation17 + $0x690] sm:$0xff]
    %v3981 = vld [vmem:[#allocation17 + $0x698] sm:$0xff]
    %v3982 = vld [vmem:[#allocation17 + $0x6a0] sm:$0xff]
    %v3983 = vld [vmem:[#allocation17 + $0x6a8] sm:$0xff]
    %v3984 = vld [vmem:[#allocation17 + $0x6b0] sm:$0xff]
    %v3985 = vld [vmem:[#allocation17 + $0x6b8] sm:$0xff]
    %v3986 = vld [vmem:[#allocation17 + $0x6c0] sm:$0xff]
    %v3987 = vld [vmem:[#allocation17 + $0x6c8] sm:$0xff]
    %v3988 = vld [vmem:[#allocation17 + $0x6d0] sm:$0xff]
    %v3989 = vld [vmem:[#allocation17 + $0x6d8] sm:$0xff]
    %v3990 = vld [vmem:[#allocation17 + $0x6e0] sm:$0xff]
    %v3991 = vld [vmem:[#allocation17 + $0x6e8] sm:$0xff]
    %v3992 = vld [vmem:[#allocation17 + $0x6f0] sm:$0xff]
    %v3993 = vld [vmem:[#allocation17 + $0x6f8] sm:$0xff]
    %v3994 = vld [vmem:[#allocation17 + $0x700] sm:$0xff]
    %v3995 = vld [vmem:[#allocation17 + $0x708] sm:$0xff]
    %v3996 = vld [vmem:[#allocation17 + $0x710] sm:$0xff]
    %v3997 = vld [vmem:[#allocation17 + $0x718] sm:$0xff]
    %v3998 = vld [vmem:[#allocation17 + $0x720] sm:$0xff]
    %v3999 = vld [vmem:[#allocation17 + $0x728] sm:$0xff]
    %v4000 = vld [vmem:[#allocation17 + $0x730] sm:$0xff]
    %v4001 = vld [vmem:[#allocation17 + $0x738] sm:$0xff]
    %v4002 = vld [vmem:[#allocation17 + $0x740] sm:$0xff]
    %v4003 = vld [vmem:[#allocation17 + $0x748] sm:$0xff]
    %v4004 = vld [vmem:[#allocation17 + $0x750] sm:$0xff]
    %v4005 = vld [vmem:[#allocation17 + $0x758] sm:$0xff]
    %v4006 = vld [vmem:[#allocation17 + $0x760] sm:$0xff]
    %v4007 = vld [vmem:[#allocation17 + $0x768] sm:$0xff]
    %v4008 = vld [vmem:[#allocation17 + $0x770] sm:$0xff]
    %v4009 = vld [vmem:[#allocation17 + $0x778] sm:$0xff]
    %v4010 = vld [vmem:[#allocation17 + $0x780] sm:$0xff]
    %v4011 = vld [vmem:[#allocation17 + $0x788] sm:$0xff]
    %v4012 = vld [vmem:[#allocation17 + $0x790] sm:$0xff]
    %v4013 = vld [vmem:[#allocation17 + $0x798] sm:$0xff]
    %v4014 = vld [vmem:[#allocation17 + $0x7a0] sm:$0xff]
    %v4015 = vld [vmem:[#allocation17 + $0x7a8] sm:$0xff]
    %v4016 = vld [vmem:[#allocation17 + $0x7b0] sm:$0xff]
    %v4017 = vld [vmem:[#allocation17 + $0x7b8] sm:$0xff]
    %v4018 = vld [vmem:[#allocation17 + $0x7c0] sm:$0xff]
    %v4019 = vld [vmem:[#allocation17 + $0x7c8] sm:$0xff]
    %v4020 = vld [vmem:[#allocation17 + $0x7d0] sm:$0xff]
    %v4021 = vld [vmem:[#allocation17 + $0x7d8] sm:$0xff]
    %v4022 = vld [vmem:[#allocation17 + $0x7e0] sm:$0xff]
    %v4023 = vld [vmem:[#allocation17 + $0x7e8] sm:$0xff]
    %v4024 = vld [vmem:[#allocation17 + $0x7f0] sm:$0xff]
    %v4025 = vld [vmem:[#allocation17 + $0x7f8] sm:$0xff]
    %v4026 = vld [vmem:[%s10] sm:$0xff]
    %v4028 = vperm.slane %v4026, 0
    %v4029 = vperm.slane %v4026, 1
    %v4030 = vperm.slane %v4026, 2
    %v4031 = vperm.slane %v4026, 3
    %v4032 = vperm.slane %v4026, 4
    %v4033 = vperm.slane %v4026, 5
    %v4034 = vperm.slane %v4026, 6
    %v4035 = vperm.slane %v4026, 7
    %v4300 = vunpack.c.l.b16 %v3770
    %v4301 = vunpack.c.h.b16 %v3770
    %v4302 = vunpack.c.l.b16 %v3771
    %v4303 = vunpack.c.h.b16 %v3771
    %v4304 = vunpack.c.l.b16 %v3772
    %v4305 = vunpack.c.h.b16 %v3772
    %v4306 = vunpack.c.l.b16 %v3773
    %v4307 = vunpack.c.h.b16 %v3773
    %v4308 = vunpack.c.l.b16 %v3774
    %v4309 = vunpack.c.h.b16 %v3774
    %v4310 = vunpack.c.l.b16 %v3775
    %v4311 = vunpack.c.h.b16 %v3775
    %v4312 = vunpack.c.l.b16 %v3776
    %v4313 = vunpack.c.h.b16 %v3776
    %v4314 = vunpack.c.l.b16 %v3777
    %v4315 = vunpack.c.h.b16 %v3777
    %v4316 = vunpack.c.l.b16 %v3778
    %v4317 = vunpack.c.h.b16 %v3778
    %v4318 = vunpack.c.l.b16 %v3779
    %v4319 = vunpack.c.h.b16 %v3779
    %v4320 = vunpack.c.l.b16 %v3780
    %v4321 = vunpack.c.h.b16 %v3780
    %v4322 = vunpack.c.l.b16 %v3781
    %v4323 = vunpack.c.h.b16 %v3781
    %v4324 = vunpack.c.l.b16 %v3782
    %v4325 = vunpack.c.h.b16 %v3782
    %v4326 = vunpack.c.l.b16 %v3783
    %v4327 = vunpack.c.h.b16 %v3783
    %v4328 = vunpack.c.l.b16 %v3784
    %v4329 = vunpack.c.h.b16 %v3784
    %v4330 = vunpack.c.l.b16 %v3785
    %v4331 = vunpack.c.h.b16 %v3785
    %v4332 = vunpack.c.l.b16 %v3786
    %v4333 = vunpack.c.h.b16 %v3786
    %v4334 = vunpack.c.l.b16 %v3787
    %v4335 = vunpack.c.h.b16 %v3787
    %v4336 = vunpack.c.l.b16 %v3788
    %v4337 = vunpack.c.h.b16 %v3788
    %v4338 = vunpack.c.l.b16 %v3789
    %v4339 = vunpack.c.h.b16 %v3789
    %v4340 = vunpack.c.l.b16 %v3790
    %v4341 = vunpack.c.h.b16 %v3790
    %v4342 = vunpack.c.l.b16 %v3791
    %v4343 = vunpack.c.h.b16 %v3791
    %v4344 = vunpack.c.l.b16 %v3792
    %v4345 = vunpack.c.h.b16 %v3792
    %v4346 = vunpack.c.l.b16 %v3793
    %v4347 = vunpack.c.h.b16 %v3793
    %v4348 = vunpack.c.l.b16 %v3794
    %v4349 = vunpack.c.h.b16 %v3794
    %v4350 = vunpack.c.l.b16 %v3795
    %v4351 = vunpack.c.h.b16 %v3795
    %v4352 = vunpack.c.l.b16 %v3796
    %v4353 = vunpack.c.h.b16 %v3796
    %v4354 = vunpack.c.l.b16 %v3797
    %v4355 = vunpack.c.h.b16 %v3797
    %v4356 = vunpack.c.l.b16 %v3798
    %v4357 = vunpack.c.h.b16 %v3798
    %v4358 = vunpack.c.l.b16 %v3799
    %v4359 = vunpack.c.h.b16 %v3799
    %v4360 = vunpack.c.l.b16 %v3800
    %v4361 = vunpack.c.h.b16 %v3800
    %v4362 = vunpack.c.l.b16 %v3801
    %v4363 = vunpack.c.h.b16 %v3801
    %v4364 = vunpack.c.l.b16 %v3802
    %v4365 = vunpack.c.h.b16 %v3802
    %v4366 = vunpack.c.l.b16 %v3803
    %v4367 = vunpack.c.h.b16 %v3803
    %v4368 = vunpack.c.l.b16 %v3804
    %v4369 = vunpack.c.h.b16 %v3804
    %v4370 = vunpack.c.l.b16 %v3805
    %v4371 = vunpack.c.h.b16 %v3805
    %v4372 = vunpack.c.l.b16 %v3806
    %v4373 = vunpack.c.h.b16 %v3806
    %v4374 = vunpack.c.l.b16 %v3807
    %v4375 = vunpack.c.h.b16 %v3807
    %v4376 = vunpack.c.l.b16 %v3808
    %v4377 = vunpack.c.h.b16 %v3808
    %v4378 = vunpack.c.l.b16 %v3809
    %v4379 = vunpack.c.h.b16 %v3809
    %v4380 = vunpack.c.l.b16 %v3810
    %v4381 = vunpack.c.h.b16 %v3810
    %v4382 = vunpack.c.l.b16 %v3811
    %v4383 = vunpack.c.h.b16 %v3811
    %v4384 = vunpack.c.l.b16 %v3812
    %v4385 = vunpack.c.h.b16 %v3812
    %v4386 = vunpack.c.l.b16 %v3813
    %v4387 = vunpack.c.h.b16 %v3813
    %v4388 = vunpack.c.l.b16 %v3814
    %v4389 = vunpack.c.h.b16 %v3814
    %v4390 = vunpack.c.l.b16 %v3815
    %v4391 = vunpack.c.h.b16 %v3815
    %v4392 = vunpack.c.l.b16 %v3816
    %v4393 = vunpack.c.h.b16 %v3816
    %v4394 = vunpack.c.l.b16 %v3817
    %v4395 = vunpack.c.h.b16 %v3817
    %v4396 = vunpack.c.l.b16 %v3818
    %v4397 = vunpack.c.h.b16 %v3818
    %v4398 = vunpack.c.l.b16 %v3819
    %v4399 = vunpack.c.h.b16 %v3819
    %v4400 = vunpack.c.l.b16 %v3820
    %v4401 = vunpack.c.h.b16 %v3820
    %v4402 = vunpack.c.l.b16 %v3821
    %v4403 = vunpack.c.h.b16 %v3821
    %v4404 = vunpack.c.l.b16 %v3822
    %v4405 = vunpack.c.h.b16 %v3822
    %v4406 = vunpack.c.l.b16 %v3823
    %v4407 = vunpack.c.h.b16 %v3823
    %v4408 = vunpack.c.l.b16 %v3824
    %v4409 = vunpack.c.h.b16 %v3824
    %v4410 = vunpack.c.l.b16 %v3825
    %v4411 = vunpack.c.h.b16 %v3825
    %v4412 = vunpack.c.l.b16 %v3826
    %v4413 = vunpack.c.h.b16 %v3826
    %v4414 = vunpack.c.l.b16 %v3827
    %v4415 = vunpack.c.h.b16 %v3827
    %v4416 = vunpack.c.l.b16 %v3828
    %v4417 = vunpack.c.h.b16 %v3828
    %v4418 = vunpack.c.l.b16 %v3829
    %v4419 = vunpack.c.h.b16 %v3829
    %v4420 = vunpack.c.l.b16 %v3830
    %v4421 = vunpack.c.h.b16 %v3830
    %v4422 = vunpack.c.l.b16 %v3831
    %v4423 = vunpack.c.h.b16 %v3831
    %v4424 = vunpack.c.l.b16 %v3832
    %v4425 = vunpack.c.h.b16 %v3832
    %v4426 = vunpack.c.l.b16 %v3833
    %v4427 = vunpack.c.h.b16 %v3833
    %v4428 = vunpack.c.l.b16 %v3834
    %v4429 = vunpack.c.h.b16 %v3834
    %v4430 = vunpack.c.l.b16 %v3835
    %v4431 = vunpack.c.h.b16 %v3835
    %v4432 = vunpack.c.l.b16 %v3836
    %v4433 = vunpack.c.h.b16 %v3836
    %v4434 = vunpack.c.l.b16 %v3837
    %v4435 = vunpack.c.h.b16 %v3837
    %v4436 = vunpack.c.l.b16 %v3838
    %v4437 = vunpack.c.h.b16 %v3838
    %v4438 = vunpack.c.l.b16 %v3839
    %v4439 = vunpack.c.h.b16 %v3839
    %v4440 = vunpack.c.l.b16 %v3840
    %v4441 = vunpack.c.h.b16 %v3840
    %v4442 = vunpack.c.l.b16 %v3841
    %v4443 = vunpack.c.h.b16 %v3841
    %v4444 = vunpack.c.l.b16 %v3842
    %v4445 = vunpack.c.h.b16 %v3842
    %v4446 = vunpack.c.l.b16 %v3843
    %v4447 = vunpack.c.h.b16 %v3843
    %v4448 = vunpack.c.l.b16 %v3844
    %v4449 = vunpack.c.h.b16 %v3844
    %v4450 = vunpack.c.l.b16 %v3845
    %v4451 = vunpack.c.h.b16 %v3845
    %v4452 = vunpack.c.l.b16 %v3846
    %v4453 = vunpack.c.h.b16 %v3846
    %v4454 = vunpack.c.l.b16 %v3847
    %v4455 = vunpack.c.h.b16 %v3847
    %v4456 = vunpack.c.l.b16 %v3848
    %v4457 = vunpack.c.h.b16 %v3848
    %v4458 = vunpack.c.l.b16 %v3849
    %v4459 = vunpack.c.h.b16 %v3849
    %v4460 = vunpack.c.l.b16 %v3850
    %v4461 = vunpack.c.h.b16 %v3850
    %v4462 = vunpack.c.l.b16 %v3851
    %v4463 = vunpack.c.h.b16 %v3851
    %v4464 = vunpack.c.l.b16 %v3852
    %v4465 = vunpack.c.h.b16 %v3852
    %v4466 = vunpack.c.l.b16 %v3853
    %v4467 = vunpack.c.h.b16 %v3853
    %v4468 = vunpack.c.l.b16 %v3854
    %v4469 = vunpack.c.h.b16 %v3854
    %v4470 = vunpack.c.l.b16 %v3855
    %v4471 = vunpack.c.h.b16 %v3855
    %v4472 = vunpack.c.l.b16 %v3856
    %v4473 = vunpack.c.h.b16 %v3856
    %v4474 = vunpack.c.l.b16 %v3857
    %v4475 = vunpack.c.h.b16 %v3857
    %v4476 = vunpack.c.l.b16 %v3858
    %v4477 = vunpack.c.h.b16 %v3858
    %v4478 = vunpack.c.l.b16 %v3859
    %v4479 = vunpack.c.h.b16 %v3859
    %v4480 = vunpack.c.l.b16 %v3860
    %v4481 = vunpack.c.h.b16 %v3860
    %v4482 = vunpack.c.l.b16 %v3861
    %v4483 = vunpack.c.h.b16 %v3861
    %v4484 = vunpack.c.l.b16 %v3862
    %v4485 = vunpack.c.h.b16 %v3862
    %v4486 = vunpack.c.l.b16 %v3863
    %v4487 = vunpack.c.h.b16 %v3863
    %v4488 = vunpack.c.l.b16 %v3864
    %v4489 = vunpack.c.h.b16 %v3864
    %v4490 = vunpack.c.l.b16 %v3865
    %v4491 = vunpack.c.h.b16 %v3865
    %v4492 = vunpack.c.l.b16 %v3866
    %v4493 = vunpack.c.h.b16 %v3866
    %v4494 = vunpack.c.l.b16 %v3867
    %v4495 = vunpack.c.h.b16 %v3867
    %v4496 = vunpack.c.l.b16 %v3868
    %v4497 = vunpack.c.h.b16 %v3868
    %v4498 = vunpack.c.l.b16 %v3869
    %v4499 = vunpack.c.h.b16 %v3869
    %v4500 = vunpack.c.l.b16 %v3870
    %v4501 = vunpack.c.h.b16 %v3870
    %v4502 = vunpack.c.l.b16 %v3871
    %v4503 = vunpack.c.h.b16 %v3871
    %v4504 = vunpack.c.l.b16 %v3872
    %v4505 = vunpack.c.h.b16 %v3872
    %v4506 = vunpack.c.l.b16 %v3873
    %v4507 = vunpack.c.h.b16 %v3873
    %v4508 = vunpack.c.l.b16 %v3874
    %v4509 = vunpack.c.h.b16 %v3874
    %v4510 = vunpack.c.l.b16 %v3875
    %v4511 = vunpack.c.h.b16 %v3875
    %v4512 = vunpack.c.l.b16 %v3876
    %v4513 = vunpack.c.h.b16 %v3876
    %v4514 = vunpack.c.l.b16 %v3877
    %v4515 = vunpack.c.h.b16 %v3877
    %v4516 = vunpack.c.l.b16 %v3878
    %v4517 = vunpack.c.h.b16 %v3878
    %v4518 = vunpack.c.l.b16 %v3879
    %v4519 = vunpack.c.h.b16 %v3879
    %v4520 = vunpack.c.l.b16 %v3880
    %v4521 = vunpack.c.h.b16 %v3880
    %v4522 = vunpack.c.l.b16 %v3881
    %v4523 = vunpack.c.h.b16 %v3881
    %v4524 = vunpack.c.l.b16 %v3882
    %v4525 = vunpack.c.h.b16 %v3882
    %v4526 = vunpack.c.l.b16 %v3883
    %v4527 = vunpack.c.h.b16 %v3883
    %v4528 = vunpack.c.l.b16 %v3884
    %v4529 = vunpack.c.h.b16 %v3884
    %v4530 = vunpack.c.l.b16 %v3885
    %v4531 = vunpack.c.h.b16 %v3885
    %v4532 = vunpack.c.l.b16 %v3886
    %v4533 = vunpack.c.h.b16 %v3886
    %v4534 = vunpack.c.l.b16 %v3887
    %v4535 = vunpack.c.h.b16 %v3887
    %v4536 = vunpack.c.l.b16 %v3888
    %v4537 = vunpack.c.h.b16 %v3888
    %v4538 = vunpack.c.l.b16 %v3889
    %v4539 = vunpack.c.h.b16 %v3889
    %v4540 = vunpack.c.l.b16 %v3890
    %v4541 = vunpack.c.h.b16 %v3890
    %v4542 = vunpack.c.l.b16 %v3891
    %v4543 = vunpack.c.h.b16 %v3891
    %v4544 = vunpack.c.l.b16 %v3892
    %v4545 = vunpack.c.h.b16 %v3892
    %v4546 = vunpack.c.l.b16 %v3893
    %v4547 = vunpack.c.h.b16 %v3893
    %v4548 = vunpack.c.l.b16 %v3894
    %v4549 = vunpack.c.h.b16 %v3894
    %v4550 = vunpack.c.l.b16 %v3895
    %v4551 = vunpack.c.h.b16 %v3895
    %v4552 = vunpack.c.l.b16 %v3896
    %v4553 = vunpack.c.h.b16 %v3896
    %v4554 = vunpack.c.l.b16 %v3897
    %v4555 = vunpack.c.h.b16 %v3897
    %v4556 = vunpack.c.l.b16 %v3898
    %v4557 = vunpack.c.h.b16 %v3898
    %v4558 = vunpack.c.l.b16 %v3899
    %v4559 = vunpack.c.h.b16 %v3899
    %v4560 = vunpack.c.l.b16 %v3900
    %v4561 = vunpack.c.h.b16 %v3900
    %v4562 = vunpack.c.l.b16 %v3901
    %v4563 = vunpack.c.h.b16 %v3901
    %v4564 = vunpack.c.l.b16 %v3902
    %v4565 = vunpack.c.h.b16 %v3902
    %v4566 = vunpack.c.l.b16 %v3903
    %v4567 = vunpack.c.h.b16 %v3903
    %v4568 = vunpack.c.l.b16 %v3904
    %v4569 = vunpack.c.h.b16 %v3904
    %v4570 = vunpack.c.l.b16 %v3905
    %v4571 = vunpack.c.h.b16 %v3905
    %v4572 = vunpack.c.l.b16 %v3906
    %v4573 = vunpack.c.h.b16 %v3906
    %v4574 = vunpack.c.l.b16 %v3907
    %v4575 = vunpack.c.h.b16 %v3907
    %v4576 = vunpack.c.l.b16 %v3908
    %v4577 = vunpack.c.h.b16 %v3908
    %v4578 = vunpack.c.l.b16 %v3909
    %v4579 = vunpack.c.h.b16 %v3909
    %v4580 = vunpack.c.l.b16 %v3910
    %v4581 = vunpack.c.h.b16 %v3910
    %v4582 = vunpack.c.l.b16 %v3911
    %v4583 = vunpack.c.h.b16 %v3911
    %v4584 = vunpack.c.l.b16 %v3912
    %v4585 = vunpack.c.h.b16 %v3912
    %v4586 = vunpack.c.l.b16 %v3913
    %v4587 = vunpack.c.h.b16 %v3913
    %v4588 = vunpack.c.l.b16 %v3914
    %v4589 = vunpack.c.h.b16 %v3914
    %v4590 = vunpack.c.l.b16 %v3915
    %v4591 = vunpack.c.h.b16 %v3915
    %v4592 = vunpack.c.l.b16 %v3916
    %v4593 = vunpack.c.h.b16 %v3916
    %v4594 = vunpack.c.l.b16 %v3917
    %v4595 = vunpack.c.h.b16 %v3917
    %v4596 = vunpack.c.l.b16 %v3918
    %v4597 = vunpack.c.h.b16 %v3918
    %v4598 = vunpack.c.l.b16 %v3919
    %v4599 = vunpack.c.h.b16 %v3919
    %v4600 = vunpack.c.l.b16 %v3920
    %v4601 = vunpack.c.h.b16 %v3920
    %v4602 = vunpack.c.l.b16 %v3921
    %v4603 = vunpack.c.h.b16 %v3921
    %v4604 = vunpack.c.l.b16 %v3922
    %v4605 = vunpack.c.h.b16 %v3922
    %v4606 = vunpack.c.l.b16 %v3923
    %v4607 = vunpack.c.h.b16 %v3923
    %v4608 = vunpack.c.l.b16 %v3924
    %v4609 = vunpack.c.h.b16 %v3924
    %v4610 = vunpack.c.l.b16 %v3925
    %v4611 = vunpack.c.h.b16 %v3925
    %v4612 = vunpack.c.l.b16 %v3926
    %v4613 = vunpack.c.h.b16 %v3926
    %v4614 = vunpack.c.l.b16 %v3927
    %v4615 = vunpack.c.h.b16 %v3927
    %v4616 = vunpack.c.l.b16 %v3928
    %v4617 = vunpack.c.h.b16 %v3928
    %v4618 = vunpack.c.l.b16 %v3929
    %v4619 = vunpack.c.h.b16 %v3929
    %v4620 = vunpack.c.l.b16 %v3930
    %v4621 = vunpack.c.h.b16 %v3930
    %v4622 = vunpack.c.l.b16 %v3931
    %v4623 = vunpack.c.h.b16 %v3931
    %v4624 = vunpack.c.l.b16 %v3932
    %v4625 = vunpack.c.h.b16 %v3932
    %v4626 = vunpack.c.l.b16 %v3933
    %v4627 = vunpack.c.h.b16 %v3933
    %v4628 = vunpack.c.l.b16 %v3934
    %v4629 = vunpack.c.h.b16 %v3934
    %v4630 = vunpack.c.l.b16 %v3935
    %v4631 = vunpack.c.h.b16 %v3935
    %v4632 = vunpack.c.l.b16 %v3936
    %v4633 = vunpack.c.h.b16 %v3936
    %v4634 = vunpack.c.l.b16 %v3937
    %v4635 = vunpack.c.h.b16 %v3937
    %v4636 = vunpack.c.l.b16 %v3938
    %v4637 = vunpack.c.h.b16 %v3938
    %v4638 = vunpack.c.l.b16 %v3939
    %v4639 = vunpack.c.h.b16 %v3939
    %v4640 = vunpack.c.l.b16 %v3940
    %v4641 = vunpack.c.h.b16 %v3940
    %v4642 = vunpack.c.l.b16 %v3941
    %v4643 = vunpack.c.h.b16 %v3941
    %v4644 = vunpack.c.l.b16 %v3942
    %v4645 = vunpack.c.h.b16 %v3942
    %v4646 = vunpack.c.l.b16 %v3943
    %v4647 = vunpack.c.h.b16 %v3943
    %v4648 = vunpack.c.l.b16 %v3944
    %v4649 = vunpack.c.h.b16 %v3944
    %v4650 = vunpack.c.l.b16 %v3945
    %v4651 = vunpack.c.h.b16 %v3945
    %v4652 = vunpack.c.l.b16 %v3946
    %v4653 = vunpack.c.h.b16 %v3946
    %v4654 = vunpack.c.l.b16 %v3947
    %v4655 = vunpack.c.h.b16 %v3947
    %v4656 = vunpack.c.l.b16 %v3948
    %v4657 = vunpack.c.h.b16 %v3948
    %v4658 = vunpack.c.l.b16 %v3949
    %v4659 = vunpack.c.h.b16 %v3949
    %v4660 = vunpack.c.l.b16 %v3950
    %v4661 = vunpack.c.h.b16 %v3950
    %v4662 = vunpack.c.l.b16 %v3951
    %v4663 = vunpack.c.h.b16 %v3951
    %v4664 = vunpack.c.l.b16 %v3952
    %v4665 = vunpack.c.h.b16 %v3952
    %v4666 = vunpack.c.l.b16 %v3953
    %v4667 = vunpack.c.h.b16 %v3953
    %v4668 = vunpack.c.l.b16 %v3954
    %v4669 = vunpack.c.h.b16 %v3954
    %v4670 = vunpack.c.l.b16 %v3955
    %v4671 = vunpack.c.h.b16 %v3955
    %v4672 = vunpack.c.l.b16 %v3956
    %v4673 = vunpack.c.h.b16 %v3956
    %v4674 = vunpack.c.l.b16 %v3957
    %v4675 = vunpack.c.h.b16 %v3957
    %v4676 = vunpack.c.l.b16 %v3958
    %v4677 = vunpack.c.h.b16 %v3958
    %v4678 = vunpack.c.l.b16 %v3959
    %v4679 = vunpack.c.h.b16 %v3959
    %v4680 = vunpack.c.l.b16 %v3960
    %v4681 = vunpack.c.h.b16 %v3960
    %v4682 = vunpack.c.l.b16 %v3961
    %v4683 = vunpack.c.h.b16 %v3961
    %v4684 = vunpack.c.l.b16 %v3962
    %v4685 = vunpack.c.h.b16 %v3962
    %v4686 = vunpack.c.l.b16 %v3963
    %v4687 = vunpack.c.h.b16 %v3963
    %v4688 = vunpack.c.l.b16 %v3964
    %v4689 = vunpack.c.h.b16 %v3964
    %v4690 = vunpack.c.l.b16 %v3965
    %v4691 = vunpack.c.h.b16 %v3965
    %v4692 = vunpack.c.l.b16 %v3966
    %v4693 = vunpack.c.h.b16 %v3966
    %v4694 = vunpack.c.l.b16 %v3967
    %v4695 = vunpack.c.h.b16 %v3967
    %v4696 = vunpack.c.l.b16 %v3968
    %v4697 = vunpack.c.h.b16 %v3968
    %v4698 = vunpack.c.l.b16 %v3969
    %v4699 = vunpack.c.h.b16 %v3969
    %v4700 = vunpack.c.l.b16 %v3970
    %v4701 = vunpack.c.h.b16 %v3970
    %v4702 = vunpack.c.l.b16 %v3971
    %v4703 = vunpack.c.h.b16 %v3971
    %v4704 = vunpack.c.l.b16 %v3972
    %v4705 = vunpack.c.h.b16 %v3972
    %v4706 = vunpack.c.l.b16 %v3973
    %v4707 = vunpack.c.h.b16 %v3973
    %v4708 = vunpack.c.l.b16 %v3974
    %v4709 = vunpack.c.h.b16 %v3974
    %v4710 = vunpack.c.l.b16 %v3975
    %v4711 = vunpack.c.h.b16 %v3975
    %v4712 = vunpack.c.l.b16 %v3976
    %v4713 = vunpack.c.h.b16 %v3976
    %v4714 = vunpack.c.l.b16 %v3977
    %v4715 = vunpack.c.h.b16 %v3977
    %v4716 = vunpack.c.l.b16 %v3978
    %v4717 = vunpack.c.h.b16 %v3978
    %v4718 = vunpack.c.l.b16 %v3979
    %v4719 = vunpack.c.h.b16 %v3979
    %v4720 = vunpack.c.l.b16 %v3980
    %v4721 = vunpack.c.h.b16 %v3980
    %v4722 = vunpack.c.l.b16 %v3981
    %v4723 = vunpack.c.h.b16 %v3981
    %v4724 = vunpack.c.l.b16 %v3982
    %v4725 = vunpack.c.h.b16 %v3982
    %v4726 = vunpack.c.l.b16 %v3983
    %v4727 = vunpack.c.h.b16 %v3983
    %v4728 = vunpack.c.l.b16 %v3984
    %v4729 = vunpack.c.h.b16 %v3984
    %v4730 = vunpack.c.l.b16 %v3985
    %v4731 = vunpack.c.h.b16 %v3985
    %v4732 = vunpack.c.l.b16 %v3986
    %v4733 = vunpack.c.h.b16 %v3986
    %v4734 = vunpack.c.l.b16 %v3987
    %v4735 = vunpack.c.h.b16 %v3987
    %v4736 = vunpack.c.l.b16 %v3988
    %v4737 = vunpack.c.h.b16 %v3988
    %v4738 = vunpack.c.l.b16 %v3989
    %v4739 = vunpack.c.h.b16 %v3989
    %v4740 = vunpack.c.l.b16 %v3990
    %v4741 = vunpack.c.h.b16 %v3990
    %v4742 = vunpack.c.l.b16 %v3991
    %v4743 = vunpack.c.h.b16 %v3991
    %v4744 = vunpack.c.l.b16 %v3992
    %v4745 = vunpack.c.h.b16 %v3992
    %v4746 = vunpack.c.l.b16 %v3993
    %v4747 = vunpack.c.h.b16 %v3993
    %v4748 = vunpack.c.l.b16 %v3994
    %v4749 = vunpack.c.h.b16 %v3994
    %v4750 = vunpack.c.l.b16 %v3995
    %v4751 = vunpack.c.h.b16 %v3995
    %v4752 = vunpack.c.l.b16 %v3996
    %v4753 = vunpack.c.h.b16 %v3996
    %v4754 = vunpack.c.l.b16 %v3997
    %v4755 = vunpack.c.h.b16 %v3997
    %v4756 = vunpack.c.l.b16 %v3998
    %v4757 = vunpack.c.h.b16 %v3998
    %v4758 = vunpack.c.l.b16 %v3999
    %v4759 = vunpack.c.h.b16 %v3999
    %v4760 = vunpack.c.l.b16 %v4000
    %v4761 = vunpack.c.h.b16 %v4000
    %v4762 = vunpack.c.l.b16 %v4001
    %v4763 = vunpack.c.h.b16 %v4001
    %v4764 = vunpack.c.l.b16 %v4002
    %v4765 = vunpack.c.h.b16 %v4002
    %v4766 = vunpack.c.l.b16 %v4003
    %v4767 = vunpack.c.h.b16 %v4003
    %v4768 = vunpack.c.l.b16 %v4004
    %v4769 = vunpack.c.h.b16 %v4004
    %v4770 = vunpack.c.l.b16 %v4005
    %v4771 = vunpack.c.h.b16 %v4005
    %v4772 = vunpack.c.l.b16 %v4006
    %v4773 = vunpack.c.h.b16 %v4006
    %v4774 = vunpack.c.l.b16 %v4007
    %v4775 = vunpack.c.h.b16 %v4007
    %v4776 = vunpack.c.l.b16 %v4008
    %v4777 = vunpack.c.h.b16 %v4008
    %v4778 = vunpack.c.l.b16 %v4009
    %v4779 = vunpack.c.h.b16 %v4009
    %v4780 = vunpack.c.l.b16 %v4010
    %v4781 = vunpack.c.h.b16 %v4010
    %v4782 = vunpack.c.l.b16 %v4011
    %v4783 = vunpack.c.h.b16 %v4011
    %v4784 = vunpack.c.l.b16 %v4012
    %v4785 = vunpack.c.h.b16 %v4012
    %v4786 = vunpack.c.l.b16 %v4013
    %v4787 = vunpack.c.h.b16 %v4013
    %v4788 = vunpack.c.l.b16 %v4014
    %v4789 = vunpack.c.h.b16 %v4014
    %v4790 = vunpack.c.l.b16 %v4015
    %v4791 = vunpack.c.h.b16 %v4015
    %v4792 = vunpack.c.l.b16 %v4016
    %v4793 = vunpack.c.h.b16 %v4016
    %v4794 = vunpack.c.l.b16 %v4017
    %v4795 = vunpack.c.h.b16 %v4017
    %v4796 = vunpack.c.l.b16 %v4018
    %v4797 = vunpack.c.h.b16 %v4018
    %v4798 = vunpack.c.l.b16 %v4019
    %v4799 = vunpack.c.h.b16 %v4019
    %v4800 = vunpack.c.l.b16 %v4020
    %v4801 = vunpack.c.h.b16 %v4020
    %v4802 = vunpack.c.l.b16 %v4021
    %v4803 = vunpack.c.h.b16 %v4021
    %v4804 = vunpack.c.l.b16 %v4022
    %v4805 = vunpack.c.h.b16 %v4022
    %v4806 = vunpack.c.l.b16 %v4023
    %v4807 = vunpack.c.h.b16 %v4023
    %v4808 = vunpack.c.l.b16 %v4024
    %v4809 = vunpack.c.h.b16 %v4024
    %v4810 = vunpack.c.l.b16 %v4025
    %v4811 = vunpack.c.h.b16 %v4025
    %v4812 = vpack.c.b16 %v4308, %v4300
    %v4813 = vpack.c.b16 %v4309, %v4301
    %v4814 = vpack.c.b16 %v4310, %v4302
    %v4815 = vpack.c.b16 %v4311, %v4303
    %v4816 = vpack.c.b16 %v4312, %v4304
    %v4817 = vpack.c.b16 %v4313, %v4305
    %v4818 = vpack.c.b16 %v4314, %v4306
    %v4819 = vpack.c.b16 %v4315, %v4307
    %v4820 = vpack.c.b16 %v4324, %v4316
    %v4821 = vpack.c.b16 %v4325, %v4317
    %v4822 = vpack.c.b16 %v4326, %v4318
    %v4823 = vpack.c.b16 %v4327, %v4319
    %v4824 = vpack.c.b16 %v4328, %v4320
    %v4825 = vpack.c.b16 %v4329, %v4321
    %v4826 = vpack.c.b16 %v4330, %v4322
    %v4827 = vpack.c.b16 %v4331, %v4323
    %v4828 = vpack.c.b16 %v4340, %v4332
    %v4829 = vpack.c.b16 %v4341, %v4333
    %v4830 = vpack.c.b16 %v4342, %v4334
    %v4831 = vpack.c.b16 %v4343, %v4335
    %v4832 = vpack.c.b16 %v4344, %v4336
    %v4833 = vpack.c.b16 %v4345, %v4337
    %v4834 = vpack.c.b16 %v4346, %v4338
    %v4835 = vpack.c.b16 %v4347, %v4339
    %v4836 = vpack.c.b16 %v4356, %v4348
    %v4837 = vpack.c.b16 %v4357, %v4349
    %v4838 = vpack.c.b16 %v4358, %v4350
    %v4839 = vpack.c.b16 %v4359, %v4351
    %v4840 = vpack.c.b16 %v4360, %v4352
    %v4841 = vpack.c.b16 %v4361, %v4353
    %v4842 = vpack.c.b16 %v4362, %v4354
    %v4843 = vpack.c.b16 %v4363, %v4355
    %v4844 = vpack.c.b16 %v4372, %v4364
    %v4845 = vpack.c.b16 %v4373, %v4365
    %v4846 = vpack.c.b16 %v4374, %v4366
    %v4847 = vpack.c.b16 %v4375, %v4367
    %v4848 = vpack.c.b16 %v4376, %v4368
    %v4849 = vpack.c.b16 %v4377, %v4369
    %v4850 = vpack.c.b16 %v4378, %v4370
    %v4851 = vpack.c.b16 %v4379, %v4371
    %v4852 = vpack.c.b16 %v4388, %v4380
    %v4853 = vpack.c.b16 %v4389, %v4381
    %v4854 = vpack.c.b16 %v4390, %v4382
    %v4855 = vpack.c.b16 %v4391, %v4383
    %v4856 = vpack.c.b16 %v4392, %v4384
    %v4857 = vpack.c.b16 %v4393, %v4385
    %v4858 = vpack.c.b16 %v4394, %v4386
    %v4859 = vpack.c.b16 %v4395, %v4387
    %v4860 = vpack.c.b16 %v4404, %v4396
    %v4861 = vpack.c.b16 %v4405, %v4397
    %v4862 = vpack.c.b16 %v4406, %v4398
    %v4863 = vpack.c.b16 %v4407, %v4399
    %v4864 = vpack.c.b16 %v4408, %v4400
    %v4865 = vpack.c.b16 %v4409, %v4401
    %v4866 = vpack.c.b16 %v4410, %v4402
    %v4867 = vpack.c.b16 %v4411, %v4403
    %v4868 = vpack.c.b16 %v4420, %v4412
    %v4869 = vpack.c.b16 %v4421, %v4413
    %v4870 = vpack.c.b16 %v4422, %v4414
    %v4871 = vpack.c.b16 %v4423, %v4415
    %v4872 = vpack.c.b16 %v4424, %v4416
    %v4873 = vpack.c.b16 %v4425, %v4417
    %v4874 = vpack.c.b16 %v4426, %v4418
    %v4875 = vpack.c.b16 %v4427, %v4419
    %v4876 = vpack.c.b16 %v4436, %v4428
    %v4877 = vpack.c.b16 %v4437, %v4429
    %v4878 = vpack.c.b16 %v4438, %v4430
    %v4879 = vpack.c.b16 %v4439, %v4431
    %v4880 = vpack.c.b16 %v4440, %v4432
    %v4881 = vpack.c.b16 %v4441, %v4433
    %v4882 = vpack.c.b16 %v4442, %v4434
    %v4883 = vpack.c.b16 %v4443, %v4435
    %v4884 = vpack.c.b16 %v4452, %v4444
    %v4885 = vpack.c.b16 %v4453, %v4445
    %v4886 = vpack.c.b16 %v4454, %v4446
    %v4887 = vpack.c.b16 %v4455, %v4447
    %v4888 = vpack.c.b16 %v4456, %v4448
    %v4889 = vpack.c.b16 %v4457, %v4449
    %v4890 = vpack.c.b16 %v4458, %v4450
    %v4891 = vpack.c.b16 %v4459, %v4451
    %v4892 = vpack.c.b16 %v4468, %v4460
    %v4893 = vpack.c.b16 %v4469, %v4461
    %v4894 = vpack.c.b16 %v4470, %v4462
    %v4895 = vpack.c.b16 %v4471, %v4463
    %v4896 = vpack.c.b16 %v4472, %v4464
    %v4897 = vpack.c.b16 %v4473, %v4465
    %v4898 = vpack.c.b16 %v4474, %v4466
    %v4899 = vpack.c.b16 %v4475, %v4467
    %v4900 = vpack.c.b16 %v4484, %v4476
    %v4901 = vpack.c.b16 %v4485, %v4477
    %v4902 = vpack.c.b16 %v4486, %v4478
    %v4903 = vpack.c.b16 %v4487, %v4479
    %v4904 = vpack.c.b16 %v4488, %v4480
    %v4905 = vpack.c.b16 %v4489, %v4481
    %v4906 = vpack.c.b16 %v4490, %v4482
    %v4907 = vpack.c.b16 %v4491, %v4483
    %v4908 = vpack.c.b16 %v4500, %v4492
    %v4909 = vpack.c.b16 %v4501, %v4493
    %v4910 = vpack.c.b16 %v4502, %v4494
    %v4911 = vpack.c.b16 %v4503, %v4495
    %v4912 = vpack.c.b16 %v4504, %v4496
    %v4913 = vpack.c.b16 %v4505, %v4497
    %v4914 = vpack.c.b16 %v4506, %v4498
    %v4915 = vpack.c.b16 %v4507, %v4499
    %v4916 = vpack.c.b16 %v4516, %v4508
    %v4917 = vpack.c.b16 %v4517, %v4509
    %v4918 = vpack.c.b16 %v4518, %v4510
    %v4919 = vpack.c.b16 %v4519, %v4511
    %v4920 = vpack.c.b16 %v4520, %v4512
    %v4921 = vpack.c.b16 %v4521, %v4513
    %v4922 = vpack.c.b16 %v4522, %v4514
    %v4923 = vpack.c.b16 %v4523, %v4515
    %v4924 = vpack.c.b16 %v4532, %v4524
    %v4925 = vpack.c.b16 %v4533, %v4525
    %v4926 = vpack.c.b16 %v4534, %v4526
    %v4927 = vpack.c.b16 %v4535, %v4527
    %v4928 = vpack.c.b16 %v4536, %v4528
    %v4929 = vpack.c.b16 %v4537, %v4529
    %v4930 = vpack.c.b16 %v4538, %v4530
    %v4931 = vpack.c.b16 %v4539, %v4531
    %v4932 = vpack.c.b16 %v4548, %v4540
    %v4933 = vpack.c.b16 %v4549, %v4541
    %v4934 = vpack.c.b16 %v4550, %v4542
    %v4935 = vpack.c.b16 %v4551, %v4543
    %v4936 = vpack.c.b16 %v4552, %v4544
    %v4937 = vpack.c.b16 %v4553, %v4545
    %v4938 = vpack.c.b16 %v4554, %v4546
    %v4939 = vpack.c.b16 %v4555, %v4547
    %v4940 = vpack.c.b16 %v4564, %v4556
    %v4941 = vpack.c.b16 %v4565, %v4557
    %v4942 = vpack.c.b16 %v4566, %v4558
    %v4943 = vpack.c.b16 %v4567, %v4559
    %v4944 = vpack.c.b16 %v4568, %v4560
    %v4945 = vpack.c.b16 %v4569, %v4561
    %v4946 = vpack.c.b16 %v4570, %v4562
    %v4947 = vpack.c.b16 %v4571, %v4563
    %v4948 = vpack.c.b16 %v4580, %v4572
    %v4949 = vpack.c.b16 %v4581, %v4573
    %v4950 = vpack.c.b16 %v4582, %v4574
    %v4951 = vpack.c.b16 %v4583, %v4575
    %v4952 = vpack.c.b16 %v4584, %v4576
    %v4953 = vpack.c.b16 %v4585, %v4577
    %v4954 = vpack.c.b16 %v4586, %v4578
    %v4955 = vpack.c.b16 %v4587, %v4579
    %v4956 = vpack.c.b16 %v4596, %v4588
    %v4957 = vpack.c.b16 %v4597, %v4589
    %v4958 = vpack.c.b16 %v4598, %v4590
    %v4959 = vpack.c.b16 %v4599, %v4591
    %v4960 = vpack.c.b16 %v4600, %v4592
    %v4961 = vpack.c.b16 %v4601, %v4593
    %v4962 = vpack.c.b16 %v4602, %v4594
    %v4963 = vpack.c.b16 %v4603, %v4595
    %v4964 = vpack.c.b16 %v4612, %v4604
    %v4965 = vpack.c.b16 %v4613, %v4605
    %v4966 = vpack.c.b16 %v4614, %v4606
    %v4967 = vpack.c.b16 %v4615, %v4607
    %v4968 = vpack.c.b16 %v4616, %v4608
    %v4969 = vpack.c.b16 %v4617, %v4609
    %v4970 = vpack.c.b16 %v4618, %v4610
    %v4971 = vpack.c.b16 %v4619, %v4611
    %v4972 = vpack.c.b16 %v4628, %v4620
    %v4973 = vpack.c.b16 %v4629, %v4621
    %v4974 = vpack.c.b16 %v4630, %v4622
    %v4975 = vpack.c.b16 %v4631, %v4623
    %v4976 = vpack.c.b16 %v4632, %v4624
    %v4977 = vpack.c.b16 %v4633, %v4625
    %v4978 = vpack.c.b16 %v4634, %v4626
    %v4979 = vpack.c.b16 %v4635, %v4627
    %v4980 = vpack.c.b16 %v4644, %v4636
    %v4981 = vpack.c.b16 %v4645, %v4637
    %v4982 = vpack.c.b16 %v4646, %v4638
    %v4983 = vpack.c.b16 %v4647, %v4639
    %v4984 = vpack.c.b16 %v4648, %v4640
    %v4985 = vpack.c.b16 %v4649, %v4641
    %v4986 = vpack.c.b16 %v4650, %v4642
    %v4987 = vpack.c.b16 %v4651, %v4643
    %v4988 = vpack.c.b16 %v4660, %v4652
    %v4989 = vpack.c.b16 %v4661, %v4653
    %v4990 = vpack.c.b16 %v4662, %v4654
    %v4991 = vpack.c.b16 %v4663, %v4655
    %v4992 = vpack.c.b16 %v4664, %v4656
    %v4993 = vpack.c.b16 %v4665, %v4657
    %v4994 = vpack.c.b16 %v4666, %v4658
    %v4995 = vpack.c.b16 %v4667, %v4659
    %v4996 = vpack.c.b16 %v4676, %v4668
    %v4997 = vpack.c.b16 %v4677, %v4669
    %v4998 = vpack.c.b16 %v4678, %v4670
    %v4999 = vpack.c.b16 %v4679, %v4671
    %v5000 = vpack.c.b16 %v4680, %v4672
    %v5001 = vpack.c.b16 %v4681, %v4673
    %v5002 = vpack.c.b16 %v4682, %v4674
    %v5003 = vpack.c.b16 %v4683, %v4675
    %v5004 = vpack.c.b16 %v4692, %v4684
    %v5005 = vpack.c.b16 %v4693, %v4685
    %v5006 = vpack.c.b16 %v4694, %v4686
    %v5007 = vpack.c.b16 %v4695, %v4687
    %v5008 = vpack.c.b16 %v4696, %v4688
    %v5009 = vpack.c.b16 %v4697, %v4689
    %v5010 = vpack.c.b16 %v4698, %v4690
    %v5011 = vpack.c.b16 %v4699, %v4691
    %v5012 = vpack.c.b16 %v4708, %v4700
    %v5013 = vpack.c.b16 %v4709, %v4701
    %v5014 = vpack.c.b16 %v4710, %v4702
    %v5015 = vpack.c.b16 %v4711, %v4703
    %v5016 = vpack.c.b16 %v4712, %v4704
    %v5017 = vpack.c.b16 %v4713, %v4705
    %v5018 = vpack.c.b16 %v4714, %v4706
    %v5019 = vpack.c.b16 %v4715, %v4707
    %v5020 = vpack.c.b16 %v4724, %v4716
    %v5021 = vpack.c.b16 %v4725, %v4717
    %v5022 = vpack.c.b16 %v4726, %v4718
    %v5023 = vpack.c.b16 %v4727, %v4719
    %v5024 = vpack.c.b16 %v4728, %v4720
    %v5025 = vpack.c.b16 %v4729, %v4721
    %v5026 = vpack.c.b16 %v4730, %v4722
    %v5027 = vpack.c.b16 %v4731, %v4723
    %v5028 = vpack.c.b16 %v4740, %v4732
    %v5029 = vpack.c.b16 %v4741, %v4733
    %v5030 = vpack.c.b16 %v4742, %v4734
    %v5031 = vpack.c.b16 %v4743, %v4735
    %v5032 = vpack.c.b16 %v4744, %v4736
    %v5033 = vpack.c.b16 %v4745, %v4737
    %v5034 = vpack.c.b16 %v4746, %v4738
    %v5035 = vpack.c.b16 %v4747, %v4739
    %v5036 = vpack.c.b16 %v4756, %v4748
    %v5037 = vpack.c.b16 %v4757, %v4749
    %v5038 = vpack.c.b16 %v4758, %v4750
    %v5039 = vpack.c.b16 %v4759, %v4751
    %v5040 = vpack.c.b16 %v4760, %v4752
    %v5041 = vpack.c.b16 %v4761, %v4753
    %v5042 = vpack.c.b16 %v4762, %v4754
    %v5043 = vpack.c.b16 %v4763, %v4755
    %v5044 = vpack.c.b16 %v4772, %v4764
    %v5045 = vpack.c.b16 %v4773, %v4765
    %v5046 = vpack.c.b16 %v4774, %v4766
    %v5047 = vpack.c.b16 %v4775, %v4767
    %v5048 = vpack.c.b16 %v4776, %v4768
    %v5049 = vpack.c.b16 %v4777, %v4769
    %v5050 = vpack.c.b16 %v4778, %v4770
    %v5051 = vpack.c.b16 %v4779, %v4771
    %v5052 = vpack.c.b16 %v4788, %v4780
    %v5053 = vpack.c.b16 %v4789, %v4781
    %v5054 = vpack.c.b16 %v4790, %v4782
    %v5055 = vpack.c.b16 %v4791, %v4783
    %v5056 = vpack.c.b16 %v4792, %v4784
    %v5057 = vpack.c.b16 %v4793, %v4785
    %v5058 = vpack.c.b16 %v4794, %v4786
    %v5059 = vpack.c.b16 %v4795, %v4787
    %v5060 = vpack.c.b16 %v4804, %v4796
    %v5061 = vpack.c.b16 %v4805, %v4797
    %v5062 = vpack.c.b16 %v4806, %v4798
    %v5063 = vpack.c.b16 %v4807, %v4799
    %v5064 = vpack.c.b16 %v4808, %v4800
    %v5065 = vpack.c.b16 %v4809, %v4801
    %v5066 = vpack.c.b16 %v4810, %v4802
    %v5067 = vpack.c.b16 %v4811, %v4803
    %5324 = vmatpush.bf16.msra.mxu0 %v4868
    %5325 = vmatpush.bf16.msra.mxu0 %v4860
    %5326 = vmatpush.bf16.msra.mxu0 %v4852
    %5327 = vmatpush.bf16.msra.mxu0 %v4844
    %5328 = vmatpush.bf16.msra.mxu0 %v4836
    %5329 = vmatpush.bf16.msra.mxu0 %v4828
    %5330 = vmatpush.bf16.msra.mxu0 %v4820
    %5331 = vmatpush.bf16.msra.mxu0 %v4812
    %5332 = vmatmul.bf16.gmra.mxu0 %v3766
    %v5333 = vpop.f32.mrf.mxu0
    %v5334 = vadd.f32 %v4028, %v5333
    %v5335 = vpop.f32.mrf.mxu0
    %5336 = vdwg.mxu0
    %5337 = vmatpush.bf16.msra.mxu0 %v4932
    %5338 = vmatpush.bf16.msra.mxu0 %v4924
    %5339 = vmatpush.bf16.msra.mxu0 %v4916
    %5340 = vmatpush.bf16.msra.mxu0 %v4908
    %5341 = vmatpush.bf16.msra.mxu0 %v4900
    %5342 = vmatpush.bf16.msra.mxu0 %v4892
    %5343 = vmatpush.bf16.msra.mxu0 %v4884
    %5344 = vmatpush.bf16.msra.mxu0 %v4876
    %5345 = vmatmul.bf16.gmra.mxu0 %v3767
    %v5346 = vpop.f32.mrf.mxu0
    %v5347 = vadd.f32 %v5334, %v5346
    %v5348 = vpop.f32.mrf.mxu0
    %5349 = vdwg.mxu0
    %5350 = vmatpush.bf16.msra.mxu0 %v4996
    %5351 = vmatpush.bf16.msra.mxu0 %v4988
    %5352 = vmatpush.bf16.msra.mxu0 %v4980
    %5353 = vmatpush.bf16.msra.mxu0 %v4972
    %5354 = vmatpush.bf16.msra.mxu0 %v4964
    %5355 = vmatpush.bf16.msra.mxu0 %v4956
    %5356 = vmatpush.bf16.msra.mxu0 %v4948
    %5357 = vmatpush.bf16.msra.mxu0 %v4940
    %5358 = vmatmul.bf16.gmra.mxu0 %v3768
    %v5359 = vpop.f32.mrf.mxu0
    %v5360 = vadd.f32 %v5347, %v5359
    %v5361 = vpop.f32.mrf.mxu0
    %5362 = vdwg.mxu0
    %5363 = vmatpush.bf16.msra.mxu0 %v5060
    %5364 = vmatpush.bf16.msra.mxu0 %v5052
    %5365 = vmatpush.bf16.msra.mxu0 %v5044
    %5366 = vmatpush.bf16.msra.mxu0 %v5036
    %5367 = vmatpush.bf16.msra.mxu0 %v5028
    %5368 = vmatpush.bf16.msra.mxu0 %v5020
    %5369 = vmatpush.bf16.msra.mxu0 %v5012
    %5370 = vmatpush.bf16.msra.mxu0 %v5004
    %5371 = vmatmul.bf16.gmra.mxu0 %v3769
    %v5372 = vpop.f32.mrf.mxu0
    %v5373 = vadd.f32 %v5360, %v5372
    %v5374 = vpop.f32.mrf.mxu0
    %5375 = vdwg.mxu0
    %5376 = vmatpush.bf16.msra.mxu0 %v4869
    %5377 = vmatpush.bf16.msra.mxu0 %v4861
    %5378 = vmatpush.bf16.msra.mxu0 %v4853
    %5379 = vmatpush.bf16.msra.mxu0 %v4845
    %5380 = vmatpush.bf16.msra.mxu0 %v4837
    %5381 = vmatpush.bf16.msra.mxu0 %v4829
    %5382 = vmatpush.bf16.msra.mxu0 %v4821
    %5383 = vmatpush.bf16.msra.mxu0 %v4813
    %5384 = vmatmul.bf16.gmra.mxu0 %v3766
    %v5385 = vpop.f32.mrf.mxu0
    %v5386 = vadd.f32 %v4029, %v5385
    %v5387 = vpop.f32.mrf.mxu0
    %5388 = vdwg.mxu0
    %5389 = vmatpush.bf16.msra.mxu0 %v4933
    %5390 = vmatpush.bf16.msra.mxu0 %v4925
    %5391 = vmatpush.bf16.msra.mxu0 %v4917
    %5392 = vmatpush.bf16.msra.mxu0 %v4909
    %5393 = vmatpush.bf16.msra.mxu0 %v4901
    %5394 = vmatpush.bf16.msra.mxu0 %v4893
    %5395 = vmatpush.bf16.msra.mxu0 %v4885
    %5396 = vmatpush.bf16.msra.mxu0 %v4877
    %5397 = vmatmul.bf16.gmra.mxu0 %v3767
    %v5398 = vpop.f32.mrf.mxu0
    %v5399 = vadd.f32 %v5386, %v5398
    %v5400 = vpop.f32.mrf.mxu0
    %5401 = vdwg.mxu0
    %5402 = vmatpush.bf16.msra.mxu0 %v4997
    %5403 = vmatpush.bf16.msra.mxu0 %v4989
    %5404 = vmatpush.bf16.msra.mxu0 %v4981
    %5405 = vmatpush.bf16.msra.mxu0 %v4973
    %5406 = vmatpush.bf16.msra.mxu0 %v4965
    %5407 = vmatpush.bf16.msra.mxu0 %v4957
    %5408 = vmatpush.bf16.msra.mxu0 %v4949
    %5409 = vmatpush.bf16.msra.mxu0 %v4941
    %5410 = vmatmul.bf16.gmra.mxu0 %v3768
    %v5411 = vpop.f32.mrf.mxu0
    %v5412 = vadd.f32 %v5399, %v5411
    %v5413 = vpop.f32.mrf.mxu0
    %5414 = vdwg.mxu0
    %5415 = vmatpush.bf16.msra.mxu0 %v5061
    %5416 = vmatpush.bf16.msra.mxu0 %v5053
    %5417 = vmatpush.bf16.msra.mxu0 %v5045
    %5418 = vmatpush.bf16.msra.mxu0 %v5037
    %5419 = vmatpush.bf16.msra.mxu0 %v5029
    %5420 = vmatpush.bf16.msra.mxu0 %v5021
    %5421 = vmatpush.bf16.msra.mxu0 %v5013
    %5422 = vmatpush.bf16.msra.mxu0 %v5005
    %5423 = vmatmul.bf16.gmra.mxu0 %v3769
    %v5424 = vpop.f32.mrf.mxu0
    %v5425 = vadd.f32 %v5412, %v5424
    %v5426 = vpop.f32.mrf.mxu0
    %5427 = vdwg.mxu0
    %5428 = vmatpush.bf16.msra.mxu0 %v4870
    %5429 = vmatpush.bf16.msra.mxu0 %v4862
    %5430 = vmatpush.bf16.msra.mxu0 %v4854
    %5431 = vmatpush.bf16.msra.mxu0 %v4846
    %5432 = vmatpush.bf16.msra.mxu0 %v4838
    %5433 = vmatpush.bf16.msra.mxu0 %v4830
    %5434 = vmatpush.bf16.msra.mxu0 %v4822
    %5435 = vmatpush.bf16.msra.mxu0 %v4814
    %5436 = vmatmul.bf16.gmra.mxu0 %v3766
    %v5437 = vpop.f32.mrf.mxu0
    %v5438 = vadd.f32 %v4030, %v5437
    %v5439 = vpop.f32.mrf.mxu0
    %5440 = vdwg.mxu0
    %5441 = vmatpush.bf16.msra.mxu0 %v4934
    %5442 = vmatpush.bf16.msra.mxu0 %v4926
    %5443 = vmatpush.bf16.msra.mxu0 %v4918
    %5444 = vmatpush.bf16.msra.mxu0 %v4910
    %5445 = vmatpush.bf16.msra.mxu0 %v4902
    %5446 = vmatpush.bf16.msra.mxu0 %v4894
    %5447 = vmatpush.bf16.msra.mxu0 %v4886
    %5448 = vmatpush.bf16.msra.mxu0 %v4878
    %5449 = vmatmul.bf16.gmra.mxu0 %v3767
    %v5450 = vpop.f32.mrf.mxu0
    %v5451 = vadd.f32 %v5438, %v5450
    %v5452 = vpop.f32.mrf.mxu0
    %5453 = vdwg.mxu0
    %5454 = vmatpush.bf16.msra.mxu0 %v4998
    %5455 = vmatpush.bf16.msra.mxu0 %v4990
    %5456 = vmatpush.bf16.msra.mxu0 %v4982
    %5457 = vmatpush.bf16.msra.mxu0 %v4974
    %5458 = vmatpush.bf16.msra.mxu0 %v4966
    %5459 = vmatpush.bf16.msra.mxu0 %v4958
    %5460 = vmatpush.bf16.msra.mxu0 %v4950
    %5461 = vmatpush.bf16.msra.mxu0 %v4942
    %5462 = vmatmul.bf16.gmra.mxu0 %v3768
    %v5463 = vpop.f32.mrf.mxu0
    %v5464 = vadd.f32 %v5451, %v5463
    %v5465 = vpop.f32.mrf.mxu0
    %5466 = vdwg.mxu0
    %5467 = vmatpush.bf16.msra.mxu0 %v5062
    %5468 = vmatpush.bf16.msra.mxu0 %v5054
    %5469 = vmatpush.bf16.msra.mxu0 %v5046
    %5470 = vmatpush.bf16.msra.mxu0 %v5038
    %5471 = vmatpush.bf16.msra.mxu0 %v5030
    %5472 = vmatpush.bf16.msra.mxu0 %v5022
    %5473 = vmatpush.bf16.msra.mxu0 %v5014
    %5474 = vmatpush.bf16.msra.mxu0 %v5006
    %5475 = vmatmul.bf16.gmra.mxu0 %v3769
    %v5476 = vpop.f32.mrf.mxu0
    %v5477 = vadd.f32 %v5464, %v5476
    %v5478 = vpop.f32.mrf.mxu0
    %5479 = vdwg.mxu0
    %5480 = vmatpush.bf16.msra.mxu0 %v4871
    %5481 = vmatpush.bf16.msra.mxu0 %v4863
    %5482 = vmatpush.bf16.msra.mxu0 %v4855
    %5483 = vmatpush.bf16.msra.mxu0 %v4847
    %5484 = vmatpush.bf16.msra.mxu0 %v4839
    %5485 = vmatpush.bf16.msra.mxu0 %v4831
    %5486 = vmatpush.bf16.msra.mxu0 %v4823
    %5487 = vmatpush.bf16.msra.mxu0 %v4815
    %5488 = vmatmul.bf16.gmra.mxu0 %v3766
    %v5489 = vpop.f32.mrf.mxu0
    %v5490 = vadd.f32 %v4031, %v5489
    %v5491 = vpop.f32.mrf.mxu0
    %5492 = vdwg.mxu0
    %5493 = vmatpush.bf16.msra.mxu0 %v4935
    %5494 = vmatpush.bf16.msra.mxu0 %v4927
    %5495 = vmatpush.bf16.msra.mxu0 %v4919
    %5496 = vmatpush.bf16.msra.mxu0 %v4911
    %5497 = vmatpush.bf16.msra.mxu0 %v4903
    %5498 = vmatpush.bf16.msra.mxu0 %v4895
    %5499 = vmatpush.bf16.msra.mxu0 %v4887
    %5500 = vmatpush.bf16.msra.mxu0 %v4879
    %5501 = vmatmul.bf16.gmra.mxu0 %v3767
    %v5502 = vpop.f32.mrf.mxu0
    %v5503 = vadd.f32 %v5490, %v5502
    %v5504 = vpop.f32.mrf.mxu0
    %5505 = vdwg.mxu0
    %5506 = vmatpush.bf16.msra.mxu0 %v4999
    %5507 = vmatpush.bf16.msra.mxu0 %v4991
    %5508 = vmatpush.bf16.msra.mxu0 %v4983
    %5509 = vmatpush.bf16.msra.mxu0 %v4975
    %5510 = vmatpush.bf16.msra.mxu0 %v4967
    %5511 = vmatpush.bf16.msra.mxu0 %v4959
    %5512 = vmatpush.bf16.msra.mxu0 %v4951
    %5513 = vmatpush.bf16.msra.mxu0 %v4943
    %5514 = vmatmul.bf16.gmra.mxu0 %v3768
    %v5515 = vpop.f32.mrf.mxu0
    %v5516 = vadd.f32 %v5503, %v5515
    %v5517 = vpop.f32.mrf.mxu0
    %5518 = vdwg.mxu0
    %5519 = vmatpush.bf16.msra.mxu0 %v5063
    %5520 = vmatpush.bf16.msra.mxu0 %v5055
    %5521 = vmatpush.bf16.msra.mxu0 %v5047
    %5522 = vmatpush.bf16.msra.mxu0 %v5039
    %5523 = vmatpush.bf16.msra.mxu0 %v5031
    %5524 = vmatpush.bf16.msra.mxu0 %v5023
    %5525 = vmatpush.bf16.msra.mxu0 %v5015
    %5526 = vmatpush.bf16.msra.mxu0 %v5007
    %5527 = vmatmul.bf16.gmra.mxu0 %v3769
    %v5528 = vpop.f32.mrf.mxu0
    %v5529 = vadd.f32 %v5516, %v5528
    %v5530 = vpop.f32.mrf.mxu0
    %5531 = vdwg.mxu0
    %5532 = vmatpush.bf16.msra.mxu0 %v4872
    %5533 = vmatpush.bf16.msra.mxu0 %v4864
    %5534 = vmatpush.bf16.msra.mxu0 %v4856
    %5535 = vmatpush.bf16.msra.mxu0 %v4848
    %5536 = vmatpush.bf16.msra.mxu0 %v4840
    %5537 = vmatpush.bf16.msra.mxu0 %v4832
    %5538 = vmatpush.bf16.msra.mxu0 %v4824
    %5539 = vmatpush.bf16.msra.mxu0 %v4816
    %5540 = vmatmul.bf16.gmra.mxu0 %v3766
    %v5541 = vpop.f32.mrf.mxu0
    %v5542 = vadd.f32 %v4032, %v5541
    %v5543 = vpop.f32.mrf.mxu0
    %5544 = vdwg.mxu0
    %5545 = vmatpush.bf16.msra.mxu0 %v4936
    %5546 = vmatpush.bf16.msra.mxu0 %v4928
    %5547 = vmatpush.bf16.msra.mxu0 %v4920
    %5548 = vmatpush.bf16.msra.mxu0 %v4912
    %5549 = vmatpush.bf16.msra.mxu0 %v4904
    %5550 = vmatpush.bf16.msra.mxu0 %v4896
    %5551 = vmatpush.bf16.msra.mxu0 %v4888
    %5552 = vmatpush.bf16.msra.mxu0 %v4880
    %5553 = vmatmul.bf16.gmra.mxu0 %v3767
    %v5554 = vpop.f32.mrf.mxu0
    %v5555 = vadd.f32 %v5542, %v5554
    %v5556 = vpop.f32.mrf.mxu0
    %5557 = vdwg.mxu0
    %5558 = vmatpush.bf16.msra.mxu0 %v5000
    %5559 = vmatpush.bf16.msra.mxu0 %v4992
    %5560 = vmatpush.bf16.msra.mxu0 %v4984
    %5561 = vmatpush.bf16.msra.mxu0 %v4976
    %5562 = vmatpush.bf16.msra.mxu0 %v4968
    %5563 = vmatpush.bf16.msra.mxu0 %v4960
    %5564 = vmatpush.bf16.msra.mxu0 %v4952
    %5565 = vmatpush.bf16.msra.mxu0 %v4944
    %5566 = vmatmul.bf16.gmra.mxu0 %v3768
    %v5567 = vpop.f32.mrf.mxu0
    %v5568 = vadd.f32 %v5555, %v5567
    %v5569 = vpop.f32.mrf.mxu0
    %5570 = vdwg.mxu0
    %5571 = vmatpush.bf16.msra.mxu0 %v5064
    %5572 = vmatpush.bf16.msra.mxu0 %v5056
    %5573 = vmatpush.bf16.msra.mxu0 %v5048
    %5574 = vmatpush.bf16.msra.mxu0 %v5040
    %5575 = vmatpush.bf16.msra.mxu0 %v5032
    %5576 = vmatpush.bf16.msra.mxu0 %v5024
    %5577 = vmatpush.bf16.msra.mxu0 %v5016
    %5578 = vmatpush.bf16.msra.mxu0 %v5008
    %5579 = vmatmul.bf16.gmra.mxu0 %v3769
    %v5580 = vpop.f32.mrf.mxu0
    %v5581 = vadd.f32 %v5568, %v5580
    %v5582 = vpop.f32.mrf.mxu0
    %5583 = vdwg.mxu0
    %5584 = vmatpush.bf16.msra.mxu0 %v4873
    %5585 = vmatpush.bf16.msra.mxu0 %v4865
    %5586 = vmatpush.bf16.msra.mxu0 %v4857
    %5587 = vmatpush.bf16.msra.mxu0 %v4849
    %5588 = vmatpush.bf16.msra.mxu0 %v4841
    %5589 = vmatpush.bf16.msra.mxu0 %v4833
    %5590 = vmatpush.bf16.msra.mxu0 %v4825
    %5591 = vmatpush.bf16.msra.mxu0 %v4817
    %5592 = vmatmul.bf16.gmra.mxu0 %v3766
    %v5593 = vpop.f32.mrf.mxu0
    %v5594 = vadd.f32 %v4033, %v5593
    %v5595 = vpop.f32.mrf.mxu0
    %5596 = vdwg.mxu0
    %5597 = vmatpush.bf16.msra.mxu0 %v4937
    %5598 = vmatpush.bf16.msra.mxu0 %v4929
    %5599 = vmatpush.bf16.msra.mxu0 %v4921
    %5600 = vmatpush.bf16.msra.mxu0 %v4913
    %5601 = vmatpush.bf16.msra.mxu0 %v4905
    %5602 = vmatpush.bf16.msra.mxu0 %v4897
    %5603 = vmatpush.bf16.msra.mxu0 %v4889
    %5604 = vmatpush.bf16.msra.mxu0 %v4881
    %5605 = vmatmul.bf16.gmra.mxu0 %v3767
    %v5606 = vpop.f32.mrf.mxu0
    %v5607 = vadd.f32 %v5594, %v5606
    %v5608 = vpop.f32.mrf.mxu0
    %5609 = vdwg.mxu0
    %5610 = vmatpush.bf16.msra.mxu0 %v5001
    %5611 = vmatpush.bf16.msra.mxu0 %v4993
    %5612 = vmatpush.bf16.msra.mxu0 %v4985
    %5613 = vmatpush.bf16.msra.mxu0 %v4977
    %5614 = vmatpush.bf16.msra.mxu0 %v4969
    %5615 = vmatpush.bf16.msra.mxu0 %v4961
    %5616 = vmatpush.bf16.msra.mxu0 %v4953
    %5617 = vmatpush.bf16.msra.mxu0 %v4945
    %5618 = vmatmul.bf16.gmra.mxu0 %v3768
    %v5619 = vpop.f32.mrf.mxu0
    %v5620 = vadd.f32 %v5607, %v5619
    %v5621 = vpop.f32.mrf.mxu0
    %5622 = vdwg.mxu0
    %5623 = vmatpush.bf16.msra.mxu0 %v5065
    %5624 = vmatpush.bf16.msra.mxu0 %v5057
    %5625 = vmatpush.bf16.msra.mxu0 %v5049
    %5626 = vmatpush.bf16.msra.mxu0 %v5041
    %5627 = vmatpush.bf16.msra.mxu0 %v5033
    %5628 = vmatpush.bf16.msra.mxu0 %v5025
    %5629 = vmatpush.bf16.msra.mxu0 %v5017
    %5630 = vmatpush.bf16.msra.mxu0 %v5009
    %5631 = vmatmul.bf16.gmra.mxu0 %v3769
    %v5632 = vpop.f32.mrf.mxu0
    %v5633 = vadd.f32 %v5620, %v5632
    %v5634 = vpop.f32.mrf.mxu0
    %5635 = vdwg.mxu0
    %5636 = vmatpush.bf16.msra.mxu0 %v4874
    %5637 = vmatpush.bf16.msra.mxu0 %v4866
    %5638 = vmatpush.bf16.msra.mxu0 %v4858
    %5639 = vmatpush.bf16.msra.mxu0 %v4850
    %5640 = vmatpush.bf16.msra.mxu0 %v4842
    %5641 = vmatpush.bf16.msra.mxu0 %v4834
    %5642 = vmatpush.bf16.msra.mxu0 %v4826
    %5643 = vmatpush.bf16.msra.mxu0 %v4818
    %5644 = vmatmul.bf16.gmra.mxu0 %v3766
    %v5645 = vpop.f32.mrf.mxu0
    %v5646 = vadd.f32 %v4034, %v5645
    %v5647 = vpop.f32.mrf.mxu0
    %5648 = vdwg.mxu0
    %5649 = vmatpush.bf16.msra.mxu0 %v4938
    %5650 = vmatpush.bf16.msra.mxu0 %v4930
    %5651 = vmatpush.bf16.msra.mxu0 %v4922
    %5652 = vmatpush.bf16.msra.mxu0 %v4914
    %5653 = vmatpush.bf16.msra.mxu0 %v4906
    %5654 = vmatpush.bf16.msra.mxu0 %v4898
    %5655 = vmatpush.bf16.msra.mxu0 %v4890
    %5656 = vmatpush.bf16.msra.mxu0 %v4882
    %5657 = vmatmul.bf16.gmra.mxu0 %v3767
    %v5658 = vpop.f32.mrf.mxu0
    %v5659 = vadd.f32 %v5646, %v5658
    %v5660 = vpop.f32.mrf.mxu0
    %5661 = vdwg.mxu0
    %5662 = vmatpush.bf16.msra.mxu0 %v5002
    %5663 = vmatpush.bf16.msra.mxu0 %v4994
    %5664 = vmatpush.bf16.msra.mxu0 %v4986
    %5665 = vmatpush.bf16.msra.mxu0 %v4978
    %5666 = vmatpush.bf16.msra.mxu0 %v4970
    %5667 = vmatpush.bf16.msra.mxu0 %v4962
    %5668 = vmatpush.bf16.msra.mxu0 %v4954
    %5669 = vmatpush.bf16.msra.mxu0 %v4946
    %5670 = vmatmul.bf16.gmra.mxu0 %v3768
    %v5671 = vpop.f32.mrf.mxu0
    %v5672 = vadd.f32 %v5659, %v5671
    %v5673 = vpop.f32.mrf.mxu0
    %5674 = vdwg.mxu0
    %5675 = vmatpush.bf16.msra.mxu0 %v5066
    %5676 = vmatpush.bf16.msra.mxu0 %v5058
    %5677 = vmatpush.bf16.msra.mxu0 %v5050
    %5678 = vmatpush.bf16.msra.mxu0 %v5042
    %5679 = vmatpush.bf16.msra.mxu0 %v5034
    %5680 = vmatpush.bf16.msra.mxu0 %v5026
    %5681 = vmatpush.bf16.msra.mxu0 %v5018
    %5682 = vmatpush.bf16.msra.mxu0 %v5010
    %5683 = vmatmul.bf16.gmra.mxu0 %v3769
    %v5684 = vpop.f32.mrf.mxu0
    %v5685 = vadd.f32 %v5672, %v5684
    %v5686 = vpop.f32.mrf.mxu0
    %5687 = vdwg.mxu0
    %5688 = vmatpush.bf16.msra.mxu0 %v4875
    %5689 = vmatpush.bf16.msra.mxu0 %v4867
    %5690 = vmatpush.bf16.msra.mxu0 %v4859
    %5691 = vmatpush.bf16.msra.mxu0 %v4851
    %5692 = vmatpush.bf16.msra.mxu0 %v4843
    %5693 = vmatpush.bf16.msra.mxu0 %v4835
    %5694 = vmatpush.bf16.msra.mxu0 %v4827
    %5695 = vmatpush.bf16.msra.mxu0 %v4819
    %5696 = vmatmul.bf16.gmra.mxu0 %v3766
    %v5697 = vpop.f32.mrf.mxu0
    %v5698 = vadd.f32 %v4035, %v5697
    %v5699 = vpop.f32.mrf.mxu0
    %5700 = vdwg.mxu0
    %5701 = vmatpush.bf16.msra.mxu0 %v4939
    %5702 = vmatpush.bf16.msra.mxu0 %v4931
    %5703 = vmatpush.bf16.msra.mxu0 %v4923
    %5704 = vmatpush.bf16.msra.mxu0 %v4915
    %5705 = vmatpush.bf16.msra.mxu0 %v4907
    %5706 = vmatpush.bf16.msra.mxu0 %v4899
    %5707 = vmatpush.bf16.msra.mxu0 %v4891
    %5708 = vmatpush.bf16.msra.mxu0 %v4883
    %5709 = vmatmul.bf16.gmra.mxu0 %v3767
    %v5710 = vpop.f32.mrf.mxu0
    %v5711 = vadd.f32 %v5698, %v5710
    %v5712 = vpop.f32.mrf.mxu0
    %5713 = vdwg.mxu0
    %5714 = vmatpush.bf16.msra.mxu0 %v5003
    %5715 = vmatpush.bf16.msra.mxu0 %v4995
    %5716 = vmatpush.bf16.msra.mxu0 %v4987
    %5717 = vmatpush.bf16.msra.mxu0 %v4979
    %5718 = vmatpush.bf16.msra.mxu0 %v4971
    %5719 = vmatpush.bf16.msra.mxu0 %v4963
    %5720 = vmatpush.bf16.msra.mxu0 %v4955
    %5721 = vmatpush.bf16.msra.mxu0 %v4947
    %5722 = vmatmul.bf16.gmra.mxu0 %v3768
    %v5723 = vpop.f32.mrf.mxu0
    %v5724 = vadd.f32 %v5711, %v5723
    %v5725 = vpop.f32.mrf.mxu0
    %5726 = vdwg.mxu0
    %5727 = vmatpush.bf16.msra.mxu0 %v5067
    %5728 = vmatpush.bf16.msra.mxu0 %v5059
    %5729 = vmatpush.bf16.msra.mxu0 %v5051
    %5730 = vmatpush.bf16.msra.mxu0 %v5043
    %5731 = vmatpush.bf16.msra.mxu0 %v5035
    %5732 = vmatpush.bf16.msra.mxu0 %v5027
    %5733 = vmatpush.bf16.msra.mxu0 %v5019
    %5734 = vmatpush.bf16.msra.mxu0 %v5011
    %5735 = vmatmul.bf16.gmra.mxu0 %v3769
    %v5736 = vpop.f32.mrf.mxu0
    %v5737 = vadd.f32 %v5724, %v5736
    %v5738 = vpop.f32.mrf.mxu0
    %5739 = vdwg.mxu0
    %v5740 = vmax.f32 %v5373, 0.0
    %v5741 = vmax.f32 %v5425, 0.0
    %v5742 = vmax.f32 %v5477, 0.0
    %v5743 = vmax.f32 %v5529, 0.0
    %v5744 = vmax.f32 %v5581, 0.0
    %v5745 = vmax.f32 %v5633, 0.0
    %v5746 = vmax.f32 %v5685, 0.0
    %v5747 = vmax.f32 %v5737, 0.0
    %v5748 = vpack.c.bf16 %v5740, %v5740
    %v5749 = vpack.c.bf16 %v5741, %v5741
    %v5750 = vpack.c.bf16 %v5742, %v5742
    %v5751 = vpack.c.bf16 %v5743, %v5743
    %v5752 = vpack.c.bf16 %v5744, %v5744
    %v5753 = vpack.c.bf16 %v5745, %v5745
    %v5754 = vpack.c.bf16 %v5746, %v5746
    %v5755 = vpack.c.bf16 %v5747, %v5747
    %v5756 = vld [vmem:[#allocation19] sm:$0xff]
    %v5757 = vld [vmem:[#allocation19 + $0x8] sm:$0xff]
    %v5758 = vld [vmem:[#allocation19 + $0x10] sm:$0xff]
    %v5759 = vld [vmem:[#allocation19 + $0x18] sm:$0xff]
    %v5760 = vld [vmem:[#allocation19 + $0x20] sm:$0xff]
    %v5761 = vld [vmem:[#allocation19 + $0x28] sm:$0xff]
    %v5762 = vld [vmem:[#allocation19 + $0x30] sm:$0xff]
    %v5763 = vld [vmem:[#allocation19 + $0x38] sm:$0xff]
    %v5764 = vld [vmem:[#allocation19 + $0x40] sm:$0xff]
    %v5765 = vld [vmem:[#allocation19 + $0x48] sm:$0xff]
    %v5766 = vld [vmem:[#allocation19 + $0x50] sm:$0xff]
    %v5767 = vld [vmem:[#allocation19 + $0x58] sm:$0xff]
    %v5768 = vld [vmem:[#allocation19 + $0x60] sm:$0xff]
    %v5769 = vld [vmem:[#allocation19 + $0x68] sm:$0xff]
    %v5770 = vld [vmem:[#allocation19 + $0x70] sm:$0xff]
    %v5771 = vld [vmem:[#allocation19 + $0x78] sm:$0xff]
    %v5772 = vld [vmem:[#allocation19 + $0x80] sm:$0xff]
    %v5773 = vld [vmem:[#allocation19 + $0x88] sm:$0xff]
    %v5774 = vld [vmem:[#allocation19 + $0x90] sm:$0xff]
    %v5775 = vld [vmem:[#allocation19 + $0x98] sm:$0xff]
    %v5776 = vld [vmem:[#allocation19 + $0xa0] sm:$0xff]
    %v5777 = vld [vmem:[#allocation19 + $0xa8] sm:$0xff]
    %v5778 = vld [vmem:[#allocation19 + $0xb0] sm:$0xff]
    %v5779 = vld [vmem:[#allocation19 + $0xb8] sm:$0xff]
    %v5780 = vld [vmem:[#allocation19 + $0xc0] sm:$0xff]
    %v5781 = vld [vmem:[#allocation19 + $0xc8] sm:$0xff]
    %v5782 = vld [vmem:[#allocation19 + $0xd0] sm:$0xff]
    %v5783 = vld [vmem:[#allocation19 + $0xd8] sm:$0xff]
    %v5784 = vld [vmem:[#allocation19 + $0xe0] sm:$0xff]
    %v5785 = vld [vmem:[#allocation19 + $0xe8] sm:$0xff]
    %v5786 = vld [vmem:[#allocation19 + $0xf0] sm:$0xff]
    %v5787 = vld [vmem:[#allocation19 + $0xf8] sm:$0xff]
    %v5788 = vld [vmem:[#allocation19 + $0x100] sm:$0xff]
    %v5789 = vld [vmem:[#allocation19 + $0x108] sm:$0xff]
    %v5790 = vld [vmem:[#allocation19 + $0x110] sm:$0xff]
    %v5791 = vld [vmem:[#allocation19 + $0x118] sm:$0xff]
    %v5792 = vld [vmem:[#allocation19 + $0x120] sm:$0xff]
    %v5793 = vld [vmem:[#allocation19 + $0x128] sm:$0xff]
    %v5794 = vld [vmem:[#allocation19 + $0x130] sm:$0xff]
    %v5795 = vld [vmem:[#allocation19 + $0x138] sm:$0xff]
    %v5796 = vld [vmem:[#allocation19 + $0x140] sm:$0xff]
    %v5797 = vld [vmem:[#allocation19 + $0x148] sm:$0xff]
    %v5798 = vld [vmem:[#allocation19 + $0x150] sm:$0xff]
    %v5799 = vld [vmem:[#allocation19 + $0x158] sm:$0xff]
    %v5800 = vld [vmem:[#allocation19 + $0x160] sm:$0xff]
    %v5801 = vld [vmem:[#allocation19 + $0x168] sm:$0xff]
    %v5802 = vld [vmem:[#allocation19 + $0x170] sm:$0xff]
    %v5803 = vld [vmem:[#allocation19 + $0x178] sm:$0xff]
    %v5804 = vld [vmem:[#allocation19 + $0x180] sm:$0xff]
    %v5805 = vld [vmem:[#allocation19 + $0x188] sm:$0xff]
    %v5806 = vld [vmem:[#allocation19 + $0x190] sm:$0xff]
    %v5807 = vld [vmem:[#allocation19 + $0x198] sm:$0xff]
    %v5808 = vld [vmem:[#allocation19 + $0x1a0] sm:$0xff]
    %v5809 = vld [vmem:[#allocation19 + $0x1a8] sm:$0xff]
    %v5810 = vld [vmem:[#allocation19 + $0x1b0] sm:$0xff]
    %v5811 = vld [vmem:[#allocation19 + $0x1b8] sm:$0xff]
    %v5812 = vld [vmem:[#allocation19 + $0x1c0] sm:$0xff]
    %v5813 = vld [vmem:[#allocation19 + $0x1c8] sm:$0xff]
    %v5814 = vld [vmem:[#allocation19 + $0x1d0] sm:$0xff]
    %v5815 = vld [vmem:[#allocation19 + $0x1d8] sm:$0xff]
    %v5816 = vld [vmem:[#allocation19 + $0x1e0] sm:$0xff]
    %v5817 = vld [vmem:[#allocation19 + $0x1e8] sm:$0xff]
    %v5818 = vld [vmem:[#allocation19 + $0x1f0] sm:$0xff]
    %v5819 = vld [vmem:[#allocation19 + $0x1f8] sm:$0xff]
    %v5820 = vld [vmem:[#allocation19 + $0x200] sm:$0xff]
    %v5821 = vld [vmem:[#allocation19 + $0x208] sm:$0xff]
    %v5822 = vld [vmem:[#allocation19 + $0x210] sm:$0xff]
    %v5823 = vld [vmem:[#allocation19 + $0x218] sm:$0xff]
    %v5824 = vld [vmem:[#allocation19 + $0x220] sm:$0xff]
    %v5825 = vld [vmem:[#allocation19 + $0x228] sm:$0xff]
    %v5826 = vld [vmem:[#allocation19 + $0x230] sm:$0xff]
    %v5827 = vld [vmem:[#allocation19 + $0x238] sm:$0xff]
    %v5828 = vld [vmem:[#allocation19 + $0x240] sm:$0xff]
    %v5829 = vld [vmem:[#allocation19 + $0x248] sm:$0xff]
    %v5830 = vld [vmem:[#allocation19 + $0x250] sm:$0xff]
    %v5831 = vld [vmem:[#allocation19 + $0x258] sm:$0xff]
    %v5832 = vld [vmem:[#allocation19 + $0x260] sm:$0xff]
    %v5833 = vld [vmem:[#allocation19 + $0x268] sm:$0xff]
    %v5834 = vld [vmem:[#allocation19 + $0x270] sm:$0xff]
    %v5835 = vld [vmem:[#allocation19 + $0x278] sm:$0xff]
    %v5836 = vld [vmem:[#allocation19 + $0x280] sm:$0xff]
    %v5837 = vld [vmem:[#allocation19 + $0x288] sm:$0xff]
    %v5838 = vld [vmem:[#allocation19 + $0x290] sm:$0xff]
    %v5839 = vld [vmem:[#allocation19 + $0x298] sm:$0xff]
    %v5840 = vld [vmem:[#allocation19 + $0x2a0] sm:$0xff]
    %v5841 = vld [vmem:[#allocation19 + $0x2a8] sm:$0xff]
    %v5842 = vld [vmem:[#allocation19 + $0x2b0] sm:$0xff]
    %v5843 = vld [vmem:[#allocation19 + $0x2b8] sm:$0xff]
    %v5844 = vld [vmem:[#allocation19 + $0x2c0] sm:$0xff]
    %v5845 = vld [vmem:[#allocation19 + $0x2c8] sm:$0xff]
    %v5846 = vld [vmem:[#allocation19 + $0x2d0] sm:$0xff]
    %v5847 = vld [vmem:[#allocation19 + $0x2d8] sm:$0xff]
    %v5848 = vld [vmem:[#allocation19 + $0x2e0] sm:$0xff]
    %v5849 = vld [vmem:[#allocation19 + $0x2e8] sm:$0xff]
    %v5850 = vld [vmem:[#allocation19 + $0x2f0] sm:$0xff]
    %v5851 = vld [vmem:[#allocation19 + $0x2f8] sm:$0xff]
    %v5852 = vld [vmem:[#allocation19 + $0x300] sm:$0xff]
    %v5853 = vld [vmem:[#allocation19 + $0x308] sm:$0xff]
    %v5854 = vld [vmem:[#allocation19 + $0x310] sm:$0xff]
    %v5855 = vld [vmem:[#allocation19 + $0x318] sm:$0xff]
    %v5856 = vld [vmem:[#allocation19 + $0x320] sm:$0xff]
    %v5857 = vld [vmem:[#allocation19 + $0x328] sm:$0xff]
    %v5858 = vld [vmem:[#allocation19 + $0x330] sm:$0xff]
    %v5859 = vld [vmem:[#allocation19 + $0x338] sm:$0xff]
    %v5860 = vld [vmem:[#allocation19 + $0x340] sm:$0xff]
    %v5861 = vld [vmem:[#allocation19 + $0x348] sm:$0xff]
    %v5862 = vld [vmem:[#allocation19 + $0x350] sm:$0xff]
    %v5863 = vld [vmem:[#allocation19 + $0x358] sm:$0xff]
    %v5864 = vld [vmem:[#allocation19 + $0x360] sm:$0xff]
    %v5865 = vld [vmem:[#allocation19 + $0x368] sm:$0xff]
    %v5866 = vld [vmem:[#allocation19 + $0x370] sm:$0xff]
    %v5867 = vld [vmem:[#allocation19 + $0x378] sm:$0xff]
    %v5868 = vld [vmem:[#allocation19 + $0x380] sm:$0xff]
    %v5869 = vld [vmem:[#allocation19 + $0x388] sm:$0xff]
    %v5870 = vld [vmem:[#allocation19 + $0x390] sm:$0xff]
    %v5871 = vld [vmem:[#allocation19 + $0x398] sm:$0xff]
    %v5872 = vld [vmem:[#allocation19 + $0x3a0] sm:$0xff]
    %v5873 = vld [vmem:[#allocation19 + $0x3a8] sm:$0xff]
    %v5874 = vld [vmem:[#allocation19 + $0x3b0] sm:$0xff]
    %v5875 = vld [vmem:[#allocation19 + $0x3b8] sm:$0xff]
    %v5876 = vld [vmem:[#allocation19 + $0x3c0] sm:$0xff]
    %v5877 = vld [vmem:[#allocation19 + $0x3c8] sm:$0xff]
    %v5878 = vld [vmem:[#allocation19 + $0x3d0] sm:$0xff]
    %v5879 = vld [vmem:[#allocation19 + $0x3d8] sm:$0xff]
    %v5880 = vld [vmem:[#allocation19 + $0x3e0] sm:$0xff]
    %v5881 = vld [vmem:[#allocation19 + $0x3e8] sm:$0xff]
    %v5882 = vld [vmem:[#allocation19 + $0x3f0] sm:$0xff]
    %v5883 = vld [vmem:[#allocation19 + $0x3f8] sm:$0xff]
    %v5884 = vld [vmem:[%s12] sm:$0x3]
    %v5886 = vperm.slane %v5884, 0
    %v5887 = vperm.slane %v5884, 1
    %v6018 = vunpack.c.l.b16 %v5756
    %v6019 = vunpack.c.h.b16 %v5756
    %v6020 = vunpack.c.l.b16 %v5757
    %v6021 = vunpack.c.h.b16 %v5757
    %v6022 = vunpack.c.l.b16 %v5758
    %v6023 = vunpack.c.h.b16 %v5758
    %v6024 = vunpack.c.l.b16 %v5759
    %v6025 = vunpack.c.h.b16 %v5759
    %v6026 = vunpack.c.l.b16 %v5760
    %v6027 = vunpack.c.h.b16 %v5760
    %v6028 = vunpack.c.l.b16 %v5761
    %v6029 = vunpack.c.h.b16 %v5761
    %v6030 = vunpack.c.l.b16 %v5762
    %v6031 = vunpack.c.h.b16 %v5762
    %v6032 = vunpack.c.l.b16 %v5763
    %v6033 = vunpack.c.h.b16 %v5763
    %v6034 = vunpack.c.l.b16 %v5764
    %v6035 = vunpack.c.h.b16 %v5764
    %v6036 = vunpack.c.l.b16 %v5765
    %v6037 = vunpack.c.h.b16 %v5765
    %v6038 = vunpack.c.l.b16 %v5766
    %v6039 = vunpack.c.h.b16 %v5766
    %v6040 = vunpack.c.l.b16 %v5767
    %v6041 = vunpack.c.h.b16 %v5767
    %v6042 = vunpack.c.l.b16 %v5768
    %v6043 = vunpack.c.h.b16 %v5768
    %v6044 = vunpack.c.l.b16 %v5769
    %v6045 = vunpack.c.h.b16 %v5769
    %v6046 = vunpack.c.l.b16 %v5770
    %v6047 = vunpack.c.h.b16 %v5770
    %v6048 = vunpack.c.l.b16 %v5771
    %v6049 = vunpack.c.h.b16 %v5771
    %v6050 = vunpack.c.l.b16 %v5772
    %v6051 = vunpack.c.h.b16 %v5772
    %v6052 = vunpack.c.l.b16 %v5773
    %v6053 = vunpack.c.h.b16 %v5773
    %v6054 = vunpack.c.l.b16 %v5774
    %v6055 = vunpack.c.h.b16 %v5774
    %v6056 = vunpack.c.l.b16 %v5775
    %v6057 = vunpack.c.h.b16 %v5775
    %v6058 = vunpack.c.l.b16 %v5776
    %v6059 = vunpack.c.h.b16 %v5776
    %v6060 = vunpack.c.l.b16 %v5777
    %v6061 = vunpack.c.h.b16 %v5777
    %v6062 = vunpack.c.l.b16 %v5778
    %v6063 = vunpack.c.h.b16 %v5778
    %v6064 = vunpack.c.l.b16 %v5779
    %v6065 = vunpack.c.h.b16 %v5779
    %v6066 = vunpack.c.l.b16 %v5780
    %v6067 = vunpack.c.h.b16 %v5780
    %v6068 = vunpack.c.l.b16 %v5781
    %v6069 = vunpack.c.h.b16 %v5781
    %v6070 = vunpack.c.l.b16 %v5782
    %v6071 = vunpack.c.h.b16 %v5782
    %v6072 = vunpack.c.l.b16 %v5783
    %v6073 = vunpack.c.h.b16 %v5783
    %v6074 = vunpack.c.l.b16 %v5784
    %v6075 = vunpack.c.h.b16 %v5784
    %v6076 = vunpack.c.l.b16 %v5785
    %v6077 = vunpack.c.h.b16 %v5785
    %v6078 = vunpack.c.l.b16 %v5786
    %v6079 = vunpack.c.h.b16 %v5786
    %v6080 = vunpack.c.l.b16 %v5787
    %v6081 = vunpack.c.h.b16 %v5787
    %v6082 = vunpack.c.l.b16 %v5788
    %v6083 = vunpack.c.h.b16 %v5788
    %v6084 = vunpack.c.l.b16 %v5789
    %v6085 = vunpack.c.h.b16 %v5789
    %v6086 = vunpack.c.l.b16 %v5790
    %v6087 = vunpack.c.h.b16 %v5790
    %v6088 = vunpack.c.l.b16 %v5791
    %v6089 = vunpack.c.h.b16 %v5791
    %v6090 = vunpack.c.l.b16 %v5792
    %v6091 = vunpack.c.h.b16 %v5792
    %v6092 = vunpack.c.l.b16 %v5793
    %v6093 = vunpack.c.h.b16 %v5793
    %v6094 = vunpack.c.l.b16 %v5794
    %v6095 = vunpack.c.h.b16 %v5794
    %v6096 = vunpack.c.l.b16 %v5795
    %v6097 = vunpack.c.h.b16 %v5795
    %v6098 = vunpack.c.l.b16 %v5796
    %v6099 = vunpack.c.h.b16 %v5796
    %v6100 = vunpack.c.l.b16 %v5797
    %v6101 = vunpack.c.h.b16 %v5797
    %v6102 = vunpack.c.l.b16 %v5798
    %v6103 = vunpack.c.h.b16 %v5798
    %v6104 = vunpack.c.l.b16 %v5799
    %v6105 = vunpack.c.h.b16 %v5799
    %v6106 = vunpack.c.l.b16 %v5800
    %v6107 = vunpack.c.h.b16 %v5800
    %v6108 = vunpack.c.l.b16 %v5801
    %v6109 = vunpack.c.h.b16 %v5801
    %v6110 = vunpack.c.l.b16 %v5802
    %v6111 = vunpack.c.h.b16 %v5802
    %v6112 = vunpack.c.l.b16 %v5803
    %v6113 = vunpack.c.h.b16 %v5803
    %v6114 = vunpack.c.l.b16 %v5804
    %v6115 = vunpack.c.h.b16 %v5804
    %v6116 = vunpack.c.l.b16 %v5805
    %v6117 = vunpack.c.h.b16 %v5805
    %v6118 = vunpack.c.l.b16 %v5806
    %v6119 = vunpack.c.h.b16 %v5806
    %v6120 = vunpack.c.l.b16 %v5807
    %v6121 = vunpack.c.h.b16 %v5807
    %v6122 = vunpack.c.l.b16 %v5808
    %v6123 = vunpack.c.h.b16 %v5808
    %v6124 = vunpack.c.l.b16 %v5809
    %v6125 = vunpack.c.h.b16 %v5809
    %v6126 = vunpack.c.l.b16 %v5810
    %v6127 = vunpack.c.h.b16 %v5810
    %v6128 = vunpack.c.l.b16 %v5811
    %v6129 = vunpack.c.h.b16 %v5811
    %v6130 = vunpack.c.l.b16 %v5812
    %v6131 = vunpack.c.h.b16 %v5812
    %v6132 = vunpack.c.l.b16 %v5813
    %v6133 = vunpack.c.h.b16 %v5813
    %v6134 = vunpack.c.l.b16 %v5814
    %v6135 = vunpack.c.h.b16 %v5814
    %v6136 = vunpack.c.l.b16 %v5815
    %v6137 = vunpack.c.h.b16 %v5815
    %v6138 = vunpack.c.l.b16 %v5816
    %v6139 = vunpack.c.h.b16 %v5816
    %v6140 = vunpack.c.l.b16 %v5817
    %v6141 = vunpack.c.h.b16 %v5817
    %v6142 = vunpack.c.l.b16 %v5818
    %v6143 = vunpack.c.h.b16 %v5818
    %v6144 = vunpack.c.l.b16 %v5819
    %v6145 = vunpack.c.h.b16 %v5819
    %v6146 = vunpack.c.l.b16 %v5820
    %v6147 = vunpack.c.h.b16 %v5820
    %v6148 = vunpack.c.l.b16 %v5821
    %v6149 = vunpack.c.h.b16 %v5821
    %v6150 = vunpack.c.l.b16 %v5822
    %v6151 = vunpack.c.h.b16 %v5822
    %v6152 = vunpack.c.l.b16 %v5823
    %v6153 = vunpack.c.h.b16 %v5823
    %v6154 = vunpack.c.l.b16 %v5824
    %v6155 = vunpack.c.h.b16 %v5824
    %v6156 = vunpack.c.l.b16 %v5825
    %v6157 = vunpack.c.h.b16 %v5825
    %v6158 = vunpack.c.l.b16 %v5826
    %v6159 = vunpack.c.h.b16 %v5826
    %v6160 = vunpack.c.l.b16 %v5827
    %v6161 = vunpack.c.h.b16 %v5827
    %v6162 = vunpack.c.l.b16 %v5828
    %v6163 = vunpack.c.h.b16 %v5828
    %v6164 = vunpack.c.l.b16 %v5829
    %v6165 = vunpack.c.h.b16 %v5829
    %v6166 = vunpack.c.l.b16 %v5830
    %v6167 = vunpack.c.h.b16 %v5830
    %v6168 = vunpack.c.l.b16 %v5831
    %v6169 = vunpack.c.h.b16 %v5831
    %v6170 = vunpack.c.l.b16 %v5832
    %v6171 = vunpack.c.h.b16 %v5832
    %v6172 = vunpack.c.l.b16 %v5833
    %v6173 = vunpack.c.h.b16 %v5833
    %v6174 = vunpack.c.l.b16 %v5834
    %v6175 = vunpack.c.h.b16 %v5834
    %v6176 = vunpack.c.l.b16 %v5835
    %v6177 = vunpack.c.h.b16 %v5835
    %v6178 = vunpack.c.l.b16 %v5836
    %v6179 = vunpack.c.h.b16 %v5836
    %v6180 = vunpack.c.l.b16 %v5837
    %v6181 = vunpack.c.h.b16 %v5837
    %v6182 = vunpack.c.l.b16 %v5838
    %v6183 = vunpack.c.h.b16 %v5838
    %v6184 = vunpack.c.l.b16 %v5839
    %v6185 = vunpack.c.h.b16 %v5839
    %v6186 = vunpack.c.l.b16 %v5840
    %v6187 = vunpack.c.h.b16 %v5840
    %v6188 = vunpack.c.l.b16 %v5841
    %v6189 = vunpack.c.h.b16 %v5841
    %v6190 = vunpack.c.l.b16 %v5842
    %v6191 = vunpack.c.h.b16 %v5842
    %v6192 = vunpack.c.l.b16 %v5843
    %v6193 = vunpack.c.h.b16 %v5843
    %v6194 = vunpack.c.l.b16 %v5844
    %v6195 = vunpack.c.h.b16 %v5844
    %v6196 = vunpack.c.l.b16 %v5845
    %v6197 = vunpack.c.h.b16 %v5845
    %v6198 = vunpack.c.l.b16 %v5846
    %v6199 = vunpack.c.h.b16 %v5846
    %v6200 = vunpack.c.l.b16 %v5847
    %v6201 = vunpack.c.h.b16 %v5847
    %v6202 = vunpack.c.l.b16 %v5848
    %v6203 = vunpack.c.h.b16 %v5848
    %v6204 = vunpack.c.l.b16 %v5849
    %v6205 = vunpack.c.h.b16 %v5849
    %v6206 = vunpack.c.l.b16 %v5850
    %v6207 = vunpack.c.h.b16 %v5850
    %v6208 = vunpack.c.l.b16 %v5851
    %v6209 = vunpack.c.h.b16 %v5851
    %v6210 = vunpack.c.l.b16 %v5852
    %v6211 = vunpack.c.h.b16 %v5852
    %v6212 = vunpack.c.l.b16 %v5853
    %v6213 = vunpack.c.h.b16 %v5853
    %v6214 = vunpack.c.l.b16 %v5854
    %v6215 = vunpack.c.h.b16 %v5854
    %v6216 = vunpack.c.l.b16 %v5855
    %v6217 = vunpack.c.h.b16 %v5855
    %v6218 = vunpack.c.l.b16 %v5856
    %v6219 = vunpack.c.h.b16 %v5856
    %v6220 = vunpack.c.l.b16 %v5857
    %v6221 = vunpack.c.h.b16 %v5857
    %v6222 = vunpack.c.l.b16 %v5858
    %v6223 = vunpack.c.h.b16 %v5858
    %v6224 = vunpack.c.l.b16 %v5859
    %v6225 = vunpack.c.h.b16 %v5859
    %v6226 = vunpack.c.l.b16 %v5860
    %v6227 = vunpack.c.h.b16 %v5860
    %v6228 = vunpack.c.l.b16 %v5861
    %v6229 = vunpack.c.h.b16 %v5861
    %v6230 = vunpack.c.l.b16 %v5862
    %v6231 = vunpack.c.h.b16 %v5862
    %v6232 = vunpack.c.l.b16 %v5863
    %v6233 = vunpack.c.h.b16 %v5863
    %v6234 = vunpack.c.l.b16 %v5864
    %v6235 = vunpack.c.h.b16 %v5864
    %v6236 = vunpack.c.l.b16 %v5865
    %v6237 = vunpack.c.h.b16 %v5865
    %v6238 = vunpack.c.l.b16 %v5866
    %v6239 = vunpack.c.h.b16 %v5866
    %v6240 = vunpack.c.l.b16 %v5867
    %v6241 = vunpack.c.h.b16 %v5867
    %v6242 = vunpack.c.l.b16 %v5868
    %v6243 = vunpack.c.h.b16 %v5868
    %v6244 = vunpack.c.l.b16 %v5869
    %v6245 = vunpack.c.h.b16 %v5869
    %v6246 = vunpack.c.l.b16 %v5870
    %v6247 = vunpack.c.h.b16 %v5870
    %v6248 = vunpack.c.l.b16 %v5871
    %v6249 = vunpack.c.h.b16 %v5871
    %v6250 = vunpack.c.l.b16 %v5872
    %v6251 = vunpack.c.h.b16 %v5872
    %v6252 = vunpack.c.l.b16 %v5873
    %v6253 = vunpack.c.h.b16 %v5873
    %v6254 = vunpack.c.l.b16 %v5874
    %v6255 = vunpack.c.h.b16 %v5874
    %v6256 = vunpack.c.l.b16 %v5875
    %v6257 = vunpack.c.h.b16 %v5875
    %v6258 = vunpack.c.l.b16 %v5876
    %v6259 = vunpack.c.h.b16 %v5876
    %v6260 = vunpack.c.l.b16 %v5877
    %v6261 = vunpack.c.h.b16 %v5877
    %v6262 = vunpack.c.l.b16 %v5878
    %v6263 = vunpack.c.h.b16 %v5878
    %v6264 = vunpack.c.l.b16 %v5879
    %v6265 = vunpack.c.h.b16 %v5879
    %v6266 = vunpack.c.l.b16 %v5880
    %v6267 = vunpack.c.h.b16 %v5880
    %v6268 = vunpack.c.l.b16 %v5881
    %v6269 = vunpack.c.h.b16 %v5881
    %v6270 = vunpack.c.l.b16 %v5882
    %v6271 = vunpack.c.h.b16 %v5882
    %v6272 = vunpack.c.l.b16 %v5883
    %v6273 = vunpack.c.h.b16 %v5883
    %v6274 = vpack.c.b16 %v6020, %v6018
    %v6275 = vpack.c.b16 %v6021, %v6019
    %v6276 = vpack.c.b16 %v6024, %v6022
    %v6277 = vpack.c.b16 %v6025, %v6023
    %v6278 = vpack.c.b16 %v6028, %v6026
    %v6279 = vpack.c.b16 %v6029, %v6027
    %v6280 = vpack.c.b16 %v6032, %v6030
    %v6281 = vpack.c.b16 %v6033, %v6031
    %v6282 = vpack.c.b16 %v6036, %v6034
    %v6283 = vpack.c.b16 %v6037, %v6035
    %v6284 = vpack.c.b16 %v6040, %v6038
    %v6285 = vpack.c.b16 %v6041, %v6039
    %v6286 = vpack.c.b16 %v6044, %v6042
    %v6287 = vpack.c.b16 %v6045, %v6043
    %v6288 = vpack.c.b16 %v6048, %v6046
    %v6289 = vpack.c.b16 %v6049, %v6047
    %v6290 = vpack.c.b16 %v6052, %v6050
    %v6291 = vpack.c.b16 %v6053, %v6051
    %v6292 = vpack.c.b16 %v6056, %v6054
    %v6293 = vpack.c.b16 %v6057, %v6055
    %v6294 = vpack.c.b16 %v6060, %v6058
    %v6295 = vpack.c.b16 %v6061, %v6059
    %v6296 = vpack.c.b16 %v6064, %v6062
    %v6297 = vpack.c.b16 %v6065, %v6063
    %v6298 = vpack.c.b16 %v6068, %v6066
    %v6299 = vpack.c.b16 %v6069, %v6067
    %v6300 = vpack.c.b16 %v6072, %v6070
    %v6301 = vpack.c.b16 %v6073, %v6071
    %v6302 = vpack.c.b16 %v6076, %v6074
    %v6303 = vpack.c.b16 %v6077, %v6075
    %v6304 = vpack.c.b16 %v6080, %v6078
    %v6305 = vpack.c.b16 %v6081, %v6079
    %v6306 = vpack.c.b16 %v6084, %v6082
    %v6307 = vpack.c.b16 %v6085, %v6083
    %v6308 = vpack.c.b16 %v6088, %v6086
    %v6309 = vpack.c.b16 %v6089, %v6087
    %v6310 = vpack.c.b16 %v6092, %v6090
    %v6311 = vpack.c.b16 %v6093, %v6091
    %v6312 = vpack.c.b16 %v6096, %v6094
    %v6313 = vpack.c.b16 %v6097, %v6095
    %v6314 = vpack.c.b16 %v6100, %v6098
    %v6315 = vpack.c.b16 %v6101, %v6099
    %v6316 = vpack.c.b16 %v6104, %v6102
    %v6317 = vpack.c.b16 %v6105, %v6103
    %v6318 = vpack.c.b16 %v6108, %v6106
    %v6319 = vpack.c.b16 %v6109, %v6107
    %v6320 = vpack.c.b16 %v6112, %v6110
    %v6321 = vpack.c.b16 %v6113, %v6111
    %v6322 = vpack.c.b16 %v6116, %v6114
    %v6323 = vpack.c.b16 %v6117, %v6115
    %v6324 = vpack.c.b16 %v6120, %v6118
    %v6325 = vpack.c.b16 %v6121, %v6119
    %v6326 = vpack.c.b16 %v6124, %v6122
    %v6327 = vpack.c.b16 %v6125, %v6123
    %v6328 = vpack.c.b16 %v6128, %v6126
    %v6329 = vpack.c.b16 %v6129, %v6127
    %v6330 = vpack.c.b16 %v6132, %v6130
    %v6331 = vpack.c.b16 %v6133, %v6131
    %v6332 = vpack.c.b16 %v6136, %v6134
    %v6333 = vpack.c.b16 %v6137, %v6135
    %v6334 = vpack.c.b16 %v6140, %v6138
    %v6335 = vpack.c.b16 %v6141, %v6139
    %v6336 = vpack.c.b16 %v6144, %v6142
    %v6337 = vpack.c.b16 %v6145, %v6143
    %v6338 = vpack.c.b16 %v6148, %v6146
    %v6339 = vpack.c.b16 %v6149, %v6147
    %v6340 = vpack.c.b16 %v6152, %v6150
    %v6341 = vpack.c.b16 %v6153, %v6151
    %v6342 = vpack.c.b16 %v6156, %v6154
    %v6343 = vpack.c.b16 %v6157, %v6155
    %v6344 = vpack.c.b16 %v6160, %v6158
    %v6345 = vpack.c.b16 %v6161, %v6159
    %v6346 = vpack.c.b16 %v6164, %v6162
    %v6347 = vpack.c.b16 %v6165, %v6163
    %v6348 = vpack.c.b16 %v6168, %v6166
    %v6349 = vpack.c.b16 %v6169, %v6167
    %v6350 = vpack.c.b16 %v6172, %v6170
    %v6351 = vpack.c.b16 %v6173, %v6171
    %v6352 = vpack.c.b16 %v6176, %v6174
    %v6353 = vpack.c.b16 %v6177, %v6175
    %v6354 = vpack.c.b16 %v6180, %v6178
    %v6355 = vpack.c.b16 %v6181, %v6179
    %v6356 = vpack.c.b16 %v6184, %v6182
    %v6357 = vpack.c.b16 %v6185, %v6183
    %v6358 = vpack.c.b16 %v6188, %v6186
    %v6359 = vpack.c.b16 %v6189, %v6187
    %v6360 = vpack.c.b16 %v6192, %v6190
    %v6361 = vpack.c.b16 %v6193, %v6191
    %v6362 = vpack.c.b16 %v6196, %v6194
    %v6363 = vpack.c.b16 %v6197, %v6195
    %v6364 = vpack.c.b16 %v6200, %v6198
    %v6365 = vpack.c.b16 %v6201, %v6199
    %v6366 = vpack.c.b16 %v6204, %v6202
    %v6367 = vpack.c.b16 %v6205, %v6203
    %v6368 = vpack.c.b16 %v6208, %v6206
    %v6369 = vpack.c.b16 %v6209, %v6207
    %v6370 = vpack.c.b16 %v6212, %v6210
    %v6371 = vpack.c.b16 %v6213, %v6211
    %v6372 = vpack.c.b16 %v6216, %v6214
    %v6373 = vpack.c.b16 %v6217, %v6215
    %v6374 = vpack.c.b16 %v6220, %v6218
    %v6375 = vpack.c.b16 %v6221, %v6219
    %v6376 = vpack.c.b16 %v6224, %v6222
    %v6377 = vpack.c.b16 %v6225, %v6223
    %v6378 = vpack.c.b16 %v6228, %v6226
    %v6379 = vpack.c.b16 %v6229, %v6227
    %v6380 = vpack.c.b16 %v6232, %v6230
    %v6381 = vpack.c.b16 %v6233, %v6231
    %v6382 = vpack.c.b16 %v6236, %v6234
    %v6383 = vpack.c.b16 %v6237, %v6235
    %v6384 = vpack.c.b16 %v6240, %v6238
    %v6385 = vpack.c.b16 %v6241, %v6239
    %v6386 = vpack.c.b16 %v6244, %v6242
    %v6387 = vpack.c.b16 %v6245, %v6243
    %v6388 = vpack.c.b16 %v6248, %v6246
    %v6389 = vpack.c.b16 %v6249, %v6247
    %v6390 = vpack.c.b16 %v6252, %v6250
    %v6391 = vpack.c.b16 %v6253, %v6251
    %v6392 = vpack.c.b16 %v6256, %v6254
    %v6393 = vpack.c.b16 %v6257, %v6255
    %v6394 = vpack.c.b16 %v6260, %v6258
    %v6395 = vpack.c.b16 %v6261, %v6259
    %v6396 = vpack.c.b16 %v6264, %v6262
    %v6397 = vpack.c.b16 %v6265, %v6263
    %v6398 = vpack.c.b16 %v6268, %v6266
    %v6399 = vpack.c.b16 %v6269, %v6267
    %v6400 = vpack.c.b16 %v6272, %v6270
    %v6401 = vpack.c.b16 %v6273, %v6271
    %6530 = vmatpush.bf16.msra.mxu0 %v6288
    %6531 = vmatpush.bf16.msra.mxu0 %v6286
    %6532 = vmatpush.bf16.msra.mxu0 %v6284
    %6533 = vmatpush.bf16.msra.mxu0 %v6282
    %6534 = vmatpush.bf16.msra.mxu0 %v6280
    %6535 = vmatpush.bf16.msra.mxu0 %v6278
    %6536 = vmatpush.bf16.msra.mxu0 %v6276
    %6537 = vmatpush.bf16.msra.mxu0 %v6274
    %6538 = vmatmul.bf16.gmra.mxu0 %v5748
    %v6539 = vpop.f32.mrf.mxu0
    %v6540 = vadd.f32 %v5886, %v6539
    %v6541 = vpop.f32.mrf.mxu0
    %6542 = vdwg.mxu0
    %6543 = vmatpush.bf16.msra.mxu0 %v6304
    %6544 = vmatpush.bf16.msra.mxu0 %v6302
    %6545 = vmatpush.bf16.msra.mxu0 %v6300
    %6546 = vmatpush.bf16.msra.mxu0 %v6298
    %6547 = vmatpush.bf16.msra.mxu0 %v6296
    %6548 = vmatpush.bf16.msra.mxu0 %v6294
    %6549 = vmatpush.bf16.msra.mxu0 %v6292
    %6550 = vmatpush.bf16.msra.mxu0 %v6290
    %6551 = vmatmul.bf16.gmra.mxu0 %v5749
    %v6552 = vpop.f32.mrf.mxu0
    %v6553 = vadd.f32 %v6540, %v6552
    %v6554 = vpop.f32.mrf.mxu0
    %6555 = vdwg.mxu0
    %6556 = vmatpush.bf16.msra.mxu0 %v6320
    %6557 = vmatpush.bf16.msra.mxu0 %v6318
    %6558 = vmatpush.bf16.msra.mxu0 %v6316
    %6559 = vmatpush.bf16.msra.mxu0 %v6314
    %6560 = vmatpush.bf16.msra.mxu0 %v6312
    %6561 = vmatpush.bf16.msra.mxu0 %v6310
    %6562 = vmatpush.bf16.msra.mxu0 %v6308
    %6563 = vmatpush.bf16.msra.mxu0 %v6306
    %6564 = vmatmul.bf16.gmra.mxu0 %v5750
    %v6565 = vpop.f32.mrf.mxu0
    %v6566 = vadd.f32 %v6553, %v6565
    %v6567 = vpop.f32.mrf.mxu0
    %6568 = vdwg.mxu0
    %6569 = vmatpush.bf16.msra.mxu0 %v6336
    %6570 = vmatpush.bf16.msra.mxu0 %v6334
    %6571 = vmatpush.bf16.msra.mxu0 %v6332
    %6572 = vmatpush.bf16.msra.mxu0 %v6330
    %6573 = vmatpush.bf16.msra.mxu0 %v6328
    %6574 = vmatpush.bf16.msra.mxu0 %v6326
    %6575 = vmatpush.bf16.msra.mxu0 %v6324
    %6576 = vmatpush.bf16.msra.mxu0 %v6322
    %6577 = vmatmul.bf16.gmra.mxu0 %v5751
    %v6578 = vpop.f32.mrf.mxu0
    %v6579 = vadd.f32 %v6566, %v6578
    %v6580 = vpop.f32.mrf.mxu0
    %6581 = vdwg.mxu0
    %6582 = vmatpush.bf16.msra.mxu0 %v6352
    %6583 = vmatpush.bf16.msra.mxu0 %v6350
    %6584 = vmatpush.bf16.msra.mxu0 %v6348
    %6585 = vmatpush.bf16.msra.mxu0 %v6346
    %6586 = vmatpush.bf16.msra.mxu0 %v6344
    %6587 = vmatpush.bf16.msra.mxu0 %v6342
    %6588 = vmatpush.bf16.msra.mxu0 %v6340
    %6589 = vmatpush.bf16.msra.mxu0 %v6338
    %6590 = vmatmul.bf16.gmra.mxu0 %v5752
    %v6591 = vpop.f32.mrf.mxu0
    %v6592 = vadd.f32 %v6579, %v6591
    %v6593 = vpop.f32.mrf.mxu0
    %6594 = vdwg.mxu0
    %6595 = vmatpush.bf16.msra.mxu0 %v6368
    %6596 = vmatpush.bf16.msra.mxu0 %v6366
    %6597 = vmatpush.bf16.msra.mxu0 %v6364
    %6598 = vmatpush.bf16.msra.mxu0 %v6362
    %6599 = vmatpush.bf16.msra.mxu0 %v6360
    %6600 = vmatpush.bf16.msra.mxu0 %v6358
    %6601 = vmatpush.bf16.msra.mxu0 %v6356
    %6602 = vmatpush.bf16.msra.mxu0 %v6354
    %6603 = vmatmul.bf16.gmra.mxu0 %v5753
    %v6604 = vpop.f32.mrf.mxu0
    %v6605 = vadd.f32 %v6592, %v6604
    %v6606 = vpop.f32.mrf.mxu0
    %6607 = vdwg.mxu0
    %6608 = vmatpush.bf16.msra.mxu0 %v6384
    %6609 = vmatpush.bf16.msra.mxu0 %v6382
    %6610 = vmatpush.bf16.msra.mxu0 %v6380
    %6611 = vmatpush.bf16.msra.mxu0 %v6378
    %6612 = vmatpush.bf16.msra.mxu0 %v6376
    %6613 = vmatpush.bf16.msra.mxu0 %v6374
    %6614 = vmatpush.bf16.msra.mxu0 %v6372
    %6615 = vmatpush.bf16.msra.mxu0 %v6370
    %6616 = vmatmul.bf16.gmra.mxu0 %v5754
    %v6617 = vpop.f32.mrf.mxu0
    %v6618 = vadd.f32 %v6605, %v6617
    %v6619 = vpop.f32.mrf.mxu0
    %6620 = vdwg.mxu0
    %6621 = vmatpush.bf16.msra.mxu0 %v6400
    %6622 = vmatpush.bf16.msra.mxu0 %v6398
    %6623 = vmatpush.bf16.msra.mxu0 %v6396
    %6624 = vmatpush.bf16.msra.mxu0 %v6394
    %6625 = vmatpush.bf16.msra.mxu0 %v6392
    %6626 = vmatpush.bf16.msra.mxu0 %v6390
    %6627 = vmatpush.bf16.msra.mxu0 %v6388
    %6628 = vmatpush.bf16.msra.mxu0 %v6386
    %6629 = vmatmul.bf16.gmra.mxu0 %v5755
    %v6630 = vpop.f32.mrf.mxu0
    %v6631 = vadd.f32 %v6618, %v6630
    %v6632 = vpop.f32.mrf.mxu0
    %6633 = vdwg.mxu0
    %6634 = vmatpush.bf16.msra.mxu0 %v6289
    %6635 = vmatpush.bf16.msra.mxu0 %v6287
    %6636 = vmatpush.bf16.msra.mxu0 %v6285
    %6637 = vmatpush.bf16.msra.mxu0 %v6283
    %6638 = vmatpush.bf16.msra.mxu0 %v6281
    %6639 = vmatpush.bf16.msra.mxu0 %v6279
    %6640 = vmatpush.bf16.msra.mxu0 %v6277
    %6641 = vmatpush.bf16.msra.mxu0 %v6275
    %6642 = vmatmul.bf16.gmra.mxu0 %v5748
    %v6643 = vpop.f32.mrf.mxu0
    %v6644 = vadd.f32 %v5887, %v6643
    %v6645 = vpop.f32.mrf.mxu0
    %6646 = vdwg.mxu0
    %6647 = vmatpush.bf16.msra.mxu0 %v6305
    %6648 = vmatpush.bf16.msra.mxu0 %v6303
    %6649 = vmatpush.bf16.msra.mxu0 %v6301
    %6650 = vmatpush.bf16.msra.mxu0 %v6299
    %6651 = vmatpush.bf16.msra.mxu0 %v6297
    %6652 = vmatpush.bf16.msra.mxu0 %v6295
    %6653 = vmatpush.bf16.msra.mxu0 %v6293
    %6654 = vmatpush.bf16.msra.mxu0 %v6291
    %6655 = vmatmul.bf16.gmra.mxu0 %v5749
    %v6656 = vpop.f32.mrf.mxu0
    %v6657 = vadd.f32 %v6644, %v6656
    %v6658 = vpop.f32.mrf.mxu0
    %6659 = vdwg.mxu0
    %6660 = vmatpush.bf16.msra.mxu0 %v6321
    %6661 = vmatpush.bf16.msra.mxu0 %v6319
    %6662 = vmatpush.bf16.msra.mxu0 %v6317
    %6663 = vmatpush.bf16.msra.mxu0 %v6315
    %6664 = vmatpush.bf16.msra.mxu0 %v6313
    %6665 = vmatpush.bf16.msra.mxu0 %v6311
    %6666 = vmatpush.bf16.msra.mxu0 %v6309
    %6667 = vmatpush.bf16.msra.mxu0 %v6307
    %6668 = vmatmul.bf16.gmra.mxu0 %v5750
    %v6669 = vpop.f32.mrf.mxu0
    %v6670 = vadd.f32 %v6657, %v6669
    %v6671 = vpop.f32.mrf.mxu0
    %6672 = vdwg.mxu0
    %6673 = vmatpush.bf16.msra.mxu0 %v6337
    %6674 = vmatpush.bf16.msra.mxu0 %v6335
    %6675 = vmatpush.bf16.msra.mxu0 %v6333
    %6676 = vmatpush.bf16.msra.mxu0 %v6331
    %6677 = vmatpush.bf16.msra.mxu0 %v6329
    %6678 = vmatpush.bf16.msra.mxu0 %v6327
    %6679 = vmatpush.bf16.msra.mxu0 %v6325
    %6680 = vmatpush.bf16.msra.mxu0 %v6323
    %6681 = vmatmul.bf16.gmra.mxu0 %v5751
    %v6682 = vpop.f32.mrf.mxu0
    %v6683 = vadd.f32 %v6670, %v6682
    %v6684 = vpop.f32.mrf.mxu0
    %6685 = vdwg.mxu0
    %6686 = vmatpush.bf16.msra.mxu0 %v6353
    %6687 = vmatpush.bf16.msra.mxu0 %v6351
    %6688 = vmatpush.bf16.msra.mxu0 %v6349
    %6689 = vmatpush.bf16.msra.mxu0 %v6347
    %6690 = vmatpush.bf16.msra.mxu0 %v6345
    %6691 = vmatpush.bf16.msra.mxu0 %v6343
    %6692 = vmatpush.bf16.msra.mxu0 %v6341
    %6693 = vmatpush.bf16.msra.mxu0 %v6339
    %6694 = vmatmul.bf16.gmra.mxu0 %v5752
    %v6695 = vpop.f32.mrf.mxu0
    %v6696 = vadd.f32 %v6683, %v6695
    %v6697 = vpop.f32.mrf.mxu0
    %6698 = vdwg.mxu0
    %6699 = vmatpush.bf16.msra.mxu0 %v6369
    %6700 = vmatpush.bf16.msra.mxu0 %v6367
    %6701 = vmatpush.bf16.msra.mxu0 %v6365
    %6702 = vmatpush.bf16.msra.mxu0 %v6363
    %6703 = vmatpush.bf16.msra.mxu0 %v6361
    %6704 = vmatpush.bf16.msra.mxu0 %v6359
    %6705 = vmatpush.bf16.msra.mxu0 %v6357
    %6706 = vmatpush.bf16.msra.mxu0 %v6355
    %6707 = vmatmul.bf16.gmra.mxu0 %v5753
    %v6708 = vpop.f32.mrf.mxu0
    %v6709 = vadd.f32 %v6696, %v6708
    %v6710 = vpop.f32.mrf.mxu0
    %6711 = vdwg.mxu0
    %6712 = vmatpush.bf16.msra.mxu0 %v6385
    %6713 = vmatpush.bf16.msra.mxu0 %v6383
    %6714 = vmatpush.bf16.msra.mxu0 %v6381
    %6715 = vmatpush.bf16.msra.mxu0 %v6379
    %6716 = vmatpush.bf16.msra.mxu0 %v6377
    %6717 = vmatpush.bf16.msra.mxu0 %v6375
    %6718 = vmatpush.bf16.msra.mxu0 %v6373
    %6719 = vmatpush.bf16.msra.mxu0 %v6371
    %6720 = vmatmul.bf16.gmra.mxu0 %v5754
    %v6721 = vpop.f32.mrf.mxu0
    %v6722 = vadd.f32 %v6709, %v6721
    %v6723 = vpop.f32.mrf.mxu0
    %6724 = vdwg.mxu0
    %6725 = vmatpush.bf16.msra.mxu0 %v6401
    %6726 = vmatpush.bf16.msra.mxu0 %v6399
    %6727 = vmatpush.bf16.msra.mxu0 %v6397
    %6728 = vmatpush.bf16.msra.mxu0 %v6395
    %6729 = vmatpush.bf16.msra.mxu0 %v6393
    %6730 = vmatpush.bf16.msra.mxu0 %v6391
    %6731 = vmatpush.bf16.msra.mxu0 %v6389
    %6732 = vmatpush.bf16.msra.mxu0 %v6387
    %6733 = vmatmul.bf16.gmra.mxu0 %v5755
    %v6734 = vpop.f32.mrf.mxu0
    %v6735 = vadd.f32 %v6722, %v6734
    %v6736 = vpop.f32.mrf.mxu0
    %6737 = vdwg.mxu0
    %v6738 = vxor.u32 %v6631, 2147483648
    %v6739 = vxor.u32 %v6735, 2147483648
    %v6740 = vmul.f32 %v6738, 1.442695
    %v6741 = vpow.pop %v6740
    %v6742 = vmul.f32 %v6739, 1.442695
    %v6743 = vpow.pop %v6742
    %v6744 = vadd.f32 %v6741, 1.0
    %v6745 = vadd.f32 %v6743, 1.0
    %v6746 = vrcp.pop %v6744
    %v6747 = vmul.f32 %v6744, %v6746
    %v6748 = vsub.f32 1.0, %v6747
    %v6749 = vmul.f32 %v6746, %v6748
    %v6750 = vadd.f32 %v6746, %v6749
    %vm6751 = vweird.f32 %v6744
    %vm6752 = vweird.f32 %v6746
    %vm6753 = vmor %vm6751, %vm6752
    %v6754 = vsel %vm6753, %v6746, %v6750
    %v6755 = vand.u32 2147483647, %v6744
    %vm6756 = vcmp.eq.f32.partialorder %v6755, 8.507059e+37
    %v6757 = vand.u32 %v6744, 2147483648
    %v6758 = vor.u32 1.1754944e-38, %v6757
    %v6759 = vsel %vm6756, %v6758, %v6754
    %v6760 = vmul.f32 1.0, %v6759
    %v6761 = vrcp.pop %v6745
    %v6762 = vmul.f32 %v6745, %v6761
    %v6763 = vsub.f32 1.0, %v6762
    %v6764 = vmul.f32 %v6761, %v6763
    %v6765 = vadd.f32 %v6761, %v6764
    %vm6766 = vweird.f32 %v6745
    %vm6767 = vweird.f32 %v6761
    %vm6768 = vmor %vm6766, %vm6767
    %v6769 = vsel %vm6768, %v6761, %v6765
    %v6770 = vand.u32 2147483647, %v6745
    %vm6771 = vcmp.eq.f32.partialorder %v6770, 8.507059e+37
    %v6772 = vand.u32 %v6745, 2147483648
    %v6773 = vor.u32 1.1754944e-38, %v6772
    %v6774 = vsel %vm6771, %v6773, %v6769
    %v6775 = vmul.f32 1.0, %v6774
    %6776 = vst [vmem:[#allocation20] sm:$0xff] %v6760
    %6777 = vst [vmem:[#allocation20 + $0x8] sm:$0xff] %v6775
    // Predicated region
    $region98: #{tpu_custom_call.1} parent=1 // pred_check
      _
    $region99: #{tpu_custom_call.1} parent=1 // pred_check_branch
      %6779 = sbr.rel (0) target = $region101
    $region100: #{tpu_custom_call.1} parent=1 // pred_region
      %6781 = vsyncadd [#allocation4], 0
      %s6783 = sshll.u32 [#allocation20], 4
      %s6784 = int_to_ptr.vmem [resolvable:$true] %s6783
      %s6785 = sshll.u32 %s13, 4
      %s6786 = int_to_ptr.hbm [resolvable:$true] %s6785
      %6788 = dma.vmem_to_hbm [thread:$0]  %s6784, 256, %s6786, [#allocation4]
    $region101: #{tpu_custom_call.1} parent=1 // pred_fallthru
      _
    // Predicated region
    $region102: #{tpu_custom_call.1} parent=1 // pred_check
      _
    $region103: #{tpu_custom_call.1} parent=1 // pred_check_branch
      %6790 = sbr.rel (0) target = $region105
    $region104: #{tpu_custom_call.1} parent=1 // pred_region
      %6792 = dma.done [#allocation4], 256
    $region105: #{tpu_custom_call.1} parent=1 // pred_fallthru
      _
    %6793 = vsyncpa [#allocation3], 1
    %6794 = vsyncpa [#allocation6], 1
    %6795 = vsyncpa [#allocation9], 1
    %6796 = vsyncpa [#allocation12], 1
    %6797 = vsyncpa [#allocation15], 1
    %6798 = vsyncpa [#allocation18], 1
    %6799 = vsyncpa [#allocation4], 1

</llo_original>
